<compile_context>
chip_gen: v7x
topology: tpu7x:2x2x1
jax: 0.10.0
libtpu: 0.0.40
codegen_flags: <defaults>
</compile_context>

<pallas_src>
import jax
import jax.numpy as jnp
from jax.experimental import pallas as pl
from jax.experimental.pallas import tpu as pltpu

H = W = 128


def _make_decode_kernel(indim):
    def kernel(x_ref, wc_ref, bc_ref, w3_ref, b3_ref, o_ref):
        # x_ref : SMEM (B, indim)           input vectors
        # wc_ref: SMEM (27,)                conv weight flattened as (c, dy, dx)
        # bc_ref: SMEM (3,)                 conv bias
        # w3_ref: VMEM (indim, 128, 128)    Linear1 weight viewed as per-feature images
        # b3_ref: VMEM (128, 128)           Linear1 bias viewed as an image
        # o_ref : VMEM (1, 3, 128, 128)     per-batch output (NCHW)
        b = pl.program_id(0)

        # ---- hoist every scalar (SMEM) read out of the compute loops ----
        xv = [x_ref[b, k] for k in range(indim)]
        wv = [wc_ref[i] for i in range(27)]
        bv = [bc_ref[c] for c in range(3)]

        # ---- Linear1: img[r, c] = b1[128*r + c] + sum_k x[k] * W1[k, 128*r + c] ----
        img = b3_ref[...]
        for k in range(indim):
            img = img + xv[k] * w3_ref[k]

        # ---- Conv2d(1 -> 3, 3x3, stride 1, pad 1) + ReLU ----
        row = jax.lax.broadcasted_iota(jnp.int32, (H, W), 0)
        col = jax.lax.broadcasted_iota(jnp.int32, (H, W), 1)

        def shift_h(a, sx):
            # t[i, j] = a[i, j + sx], zero outside the image
            if sx == 0:
                return a
            t = pltpu.roll(a, (-sx) % W, axis=1)
            if sx > 0:
                return jnp.where(col >= W - sx, 0.0, t)
            return jnp.where(col < -sx, 0.0, t)

        def shift_v(a, sy):
            # t[i, j] = a[i + sy, j], zero outside the image
            if sy == 0:
                return a
            t = pltpu.roll(a, (-sy) % H, axis=0)
            if sy > 0:
                return jnp.where(row >= H - sy, 0.0, t)
            return jnp.where(row < -sy, 0.0, t)

        acc = [jnp.zeros((H, W), jnp.float32) for _ in range(3)]
        for dx in range(3):
            hx = shift_h(img, dx - 1)
            for dy in range(3):
                tap = shift_v(hx, dy - 1)  # one shifted tap shared by all 3 channels
                for c in range(3):
                    acc[c] = acc[c] + wv[c * 9 + dy * 3 + dx] * tap

        for c in range(3):
            o_ref[0, c, :, :] = jnp.maximum(acc[c] + bv[c], 0.0).astype(o_ref.dtype)

    return kernel


def decode_forward(x, w1, b1, wc, bc):
    """x: (B, indim) f32; w1: (indim, 16384); b1: (16384,); wc: (3,1,3,3); bc: (3,).
    Returns (B, 3, 128, 128) f32 (NCHW), matching the PyTorch Decode forward."""
    B, indim = x.shape
    w3 = w1.reshape(indim, H, W)   # free XLA reshape (metadata only)
    b3 = b1.reshape(H, W)
    kernel = _make_decode_kernel(indim)
    return pl.pallas_call(
        kernel,
        out_shape=jax.ShapeDtypeStruct((B, 3, H, W), jnp.float32),
        grid=(B,),
        in_specs=[
            pl.BlockSpec(memory_space=pltpu.MemorySpace.SMEM),      # x (B, indim)
            pl.BlockSpec(memory_space=pltpu.MemorySpace.SMEM),      # conv weight (27,)
            pl.BlockSpec(memory_space=pltpu.MemorySpace.SMEM),      # conv bias (3,)
            pl.BlockSpec((indim, H, W), lambda b: (0, 0, 0)),       # W1: VMEM-resident
            pl.BlockSpec((H, W), lambda b: (0, 0)),                 # b1: VMEM-resident
        ],
        out_specs=pl.BlockSpec((1, 3, H, W), lambda b: (b, 0, 0, 0)),
        compiler_params=pltpu.CompilerParams(
            dimension_semantics=("parallel",),
        ),
    )(x, wc.reshape(27), bc, w3, b3)


def decode_reference(x, w1, b1, wc, bc):
    """Pure-JAX reference matching PyTorch semantics."""
    B = x.shape[0]
    y = x @ w1 + b1
    img = y.reshape(B, 1, H, W)
    out = jax.lax.conv_general_dilated(
        img, wc, window_strides=(1, 1), padding=((1, 1), (1, 1)),
        dimension_numbers=("NCHW", "OIHW", "NCHW"))
    out = out + bc.reshape(1, 3, 1, 1)
    return jnp.maximum(out, 0.0)


if __name__ == "__main__":
    B, indim = 2, 32
    N = H * W

    key = jax.random.PRNGKey(0)
    k_x, k_w1, k_b1, k_wc, k_bc = jax.random.split(key, 5)

    x = jax.random.normal(k_x, (B, indim), dtype=jnp.float32)
    # Linear1 params (stored already transposed: (indim, 16384))
    w1 = jax.random.normal(k_w1, (indim, N), dtype=jnp.float32) * 0.02
    b1 = jax.random.normal(k_b1, (N,), dtype=jnp.float32) * 0.02
    # Conv2 params: (out_ch=3, in_ch=1, 3, 3) and bias (3,)
    wc = jax.random.normal(k_wc, (3, 1, 3, 3), dtype=jnp.float32) * 0.1
    bc = jax.random.normal(k_bc, (3,), dtype=jnp.float32) * 0.1

    out = jax.block_until_ready(decode_forward(x, w1, b1, wc, bc))

    ref = decode_reference(x, w1, b1, wc, bc)
    assert out.shape == (B, 3, H, W)
    assert jnp.allclose(out, ref, rtol=1e-3, atol=1e-3)

    print("KERNEL_OK")
</pallas_src>

<mosaic_0001>
module attributes {stable_mosaic.version = 11 : i64} {
  func.func @kernel(%arg0: i32, %arg1: memref<2x32xf32, #tpu.memory_space<smem>>, %arg2: memref<27xf32, #tpu.memory_space<smem>>, %arg3: memref<3xf32, #tpu.memory_space<smem>>, %arg4: memref<32x128x128xf32, #tpu.memory_space<vmem>>, %arg5: memref<128x128xf32, #tpu.memory_space<vmem>>, %arg6: memref<1x3x128x128xf32, #tpu.memory_space<vmem>>) attributes {dimension_semantics = [#tpu.dimension_semantics<parallel>], iteration_bounds = array<i64: 2>, scalar_prefetch = 0 : i64, scratch_operands = 0 : i64, tpu.core_type = #tpu.core_type<tc>, window_params = [{transform_indices = @transform_0, window_bounds = array<i64: 2, 32>}, {transform_indices = @transform_1, window_bounds = array<i64: 27>}, {transform_indices = @transform_2, window_bounds = array<i64: 3>}, {pipeline_mode = #tpu.pipeline_mode<synchronous>, transform_indices = @transform_3, window_bounds = array<i64: 32, 128, 128>}, {pipeline_mode = #tpu.pipeline_mode<synchronous>, transform_indices = @transform_4, window_bounds = array<i64: 128, 128>}, {transform_indices = @transform_5, window_bounds = array<i64: 1, 3, 128, 128>}]} {
    %0 = arith.index_cast %arg0 : i32 to index
    %c0 = arith.constant 0 : index
    %1 = memref.load %arg1[%0, %c0] : memref<2x32xf32, #tpu.memory_space<smem>>
    %2 = arith.index_cast %arg0 : i32 to index
    %c1 = arith.constant 1 : index
    %3 = memref.load %arg1[%2, %c1] : memref<2x32xf32, #tpu.memory_space<smem>>
    %4 = arith.index_cast %arg0 : i32 to index
    %c2 = arith.constant 2 : index
    %5 = memref.load %arg1[%4, %c2] : memref<2x32xf32, #tpu.memory_space<smem>>
    %6 = arith.index_cast %arg0 : i32 to index
    %c3 = arith.constant 3 : index
    %7 = memref.load %arg1[%6, %c3] : memref<2x32xf32, #tpu.memory_space<smem>>
    %8 = arith.index_cast %arg0 : i32 to index
    %c4 = arith.constant 4 : index
    %9 = memref.load %arg1[%8, %c4] : memref<2x32xf32, #tpu.memory_space<smem>>
    %10 = arith.index_cast %arg0 : i32 to index
    %c5 = arith.constant 5 : index
    %11 = memref.load %arg1[%10, %c5] : memref<2x32xf32, #tpu.memory_space<smem>>
    %12 = arith.index_cast %arg0 : i32 to index
    %c6 = arith.constant 6 : index
    %13 = memref.load %arg1[%12, %c6] : memref<2x32xf32, #tpu.memory_space<smem>>
    %14 = arith.index_cast %arg0 : i32 to index
    %c7 = arith.constant 7 : index
    %15 = memref.load %arg1[%14, %c7] : memref<2x32xf32, #tpu.memory_space<smem>>
    %16 = arith.index_cast %arg0 : i32 to index
    %c8 = arith.constant 8 : index
    %17 = memref.load %arg1[%16, %c8] : memref<2x32xf32, #tpu.memory_space<smem>>
    %18 = arith.index_cast %arg0 : i32 to index
    %c9 = arith.constant 9 : index
    %19 = memref.load %arg1[%18, %c9] : memref<2x32xf32, #tpu.memory_space<smem>>
    %20 = arith.index_cast %arg0 : i32 to index
    %c10 = arith.constant 10 : index
    %21 = memref.load %arg1[%20, %c10] : memref<2x32xf32, #tpu.memory_space<smem>>
    %22 = arith.index_cast %arg0 : i32 to index
    %c11 = arith.constant 11 : index
    %23 = memref.load %arg1[%22, %c11] : memref<2x32xf32, #tpu.memory_space<smem>>
    %24 = arith.index_cast %arg0 : i32 to index
    %c12 = arith.constant 12 : index
    %25 = memref.load %arg1[%24, %c12] : memref<2x32xf32, #tpu.memory_space<smem>>
    %26 = arith.index_cast %arg0 : i32 to index
    %c13 = arith.constant 13 : index
    %27 = memref.load %arg1[%26, %c13] : memref<2x32xf32, #tpu.memory_space<smem>>
    %28 = arith.index_cast %arg0 : i32 to index
    %c14 = arith.constant 14 : index
    %29 = memref.load %arg1[%28, %c14] : memref<2x32xf32, #tpu.memory_space<smem>>
    %30 = arith.index_cast %arg0 : i32 to index
    %c15 = arith.constant 15 : index
    %31 = memref.load %arg1[%30, %c15] : memref<2x32xf32, #tpu.memory_space<smem>>
    %32 = arith.index_cast %arg0 : i32 to index
    %c16 = arith.constant 16 : index
    %33 = memref.load %arg1[%32, %c16] : memref<2x32xf32, #tpu.memory_space<smem>>
    %34 = arith.index_cast %arg0 : i32 to index
    %c17 = arith.constant 17 : index
    %35 = memref.load %arg1[%34, %c17] : memref<2x32xf32, #tpu.memory_space<smem>>
    %36 = arith.index_cast %arg0 : i32 to index
    %c18 = arith.constant 18 : index
    %37 = memref.load %arg1[%36, %c18] : memref<2x32xf32, #tpu.memory_space<smem>>
    %38 = arith.index_cast %arg0 : i32 to index
    %c19 = arith.constant 19 : index
    %39 = memref.load %arg1[%38, %c19] : memref<2x32xf32, #tpu.memory_space<smem>>
    %40 = arith.index_cast %arg0 : i32 to index
    %c20 = arith.constant 20 : index
    %41 = memref.load %arg1[%40, %c20] : memref<2x32xf32, #tpu.memory_space<smem>>
    %42 = arith.index_cast %arg0 : i32 to index
    %c21 = arith.constant 21 : index
    %43 = memref.load %arg1[%42, %c21] : memref<2x32xf32, #tpu.memory_space<smem>>
    %44 = arith.index_cast %arg0 : i32 to index
    %c22 = arith.constant 22 : index
    %45 = memref.load %arg1[%44, %c22] : memref<2x32xf32, #tpu.memory_space<smem>>
    %46 = arith.index_cast %arg0 : i32 to index
    %c23 = arith.constant 23 : index
    %47 = memref.load %arg1[%46, %c23] : memref<2x32xf32, #tpu.memory_space<smem>>
    %48 = arith.index_cast %arg0 : i32 to index
    %c24 = arith.constant 24 : index
    %49 = memref.load %arg1[%48, %c24] : memref<2x32xf32, #tpu.memory_space<smem>>
    %50 = arith.index_cast %arg0 : i32 to index
    %c25 = arith.constant 25 : index
    %51 = memref.load %arg1[%50, %c25] : memref<2x32xf32, #tpu.memory_space<smem>>
    %52 = arith.index_cast %arg0 : i32 to index
    %c26 = arith.constant 26 : index
    %53 = memref.load %arg1[%52, %c26] : memref<2x32xf32, #tpu.memory_space<smem>>
    %54 = arith.index_cast %arg0 : i32 to index
    %c27 = arith.constant 27 : index
    %55 = memref.load %arg1[%54, %c27] : memref<2x32xf32, #tpu.memory_space<smem>>
    %56 = arith.index_cast %arg0 : i32 to index
    %c28 = arith.constant 28 : index
    %57 = memref.load %arg1[%56, %c28] : memref<2x32xf32, #tpu.memory_space<smem>>
    %58 = arith.index_cast %arg0 : i32 to index
    %c29 = arith.constant 29 : index
    %59 = memref.load %arg1[%58, %c29] : memref<2x32xf32, #tpu.memory_space<smem>>
    %60 = arith.index_cast %arg0 : i32 to index
    %c30 = arith.constant 30 : index
    %61 = memref.load %arg1[%60, %c30] : memref<2x32xf32, #tpu.memory_space<smem>>
    %62 = arith.index_cast %arg0 : i32 to index
    %c31 = arith.constant 31 : index
    %63 = memref.load %arg1[%62, %c31] : memref<2x32xf32, #tpu.memory_space<smem>>
    %c0_0 = arith.constant 0 : index
    %64 = memref.load %arg2[%c0_0] : memref<27xf32, #tpu.memory_space<smem>>
    %c1_1 = arith.constant 1 : index
    %65 = memref.load %arg2[%c1_1] : memref<27xf32, #tpu.memory_space<smem>>
    %c2_2 = arith.constant 2 : index
    %66 = memref.load %arg2[%c2_2] : memref<27xf32, #tpu.memory_space<smem>>
    %c3_3 = arith.constant 3 : index
    %67 = memref.load %arg2[%c3_3] : memref<27xf32, #tpu.memory_space<smem>>
    %c4_4 = arith.constant 4 : index
    %68 = memref.load %arg2[%c4_4] : memref<27xf32, #tpu.memory_space<smem>>
    %c5_5 = arith.constant 5 : index
    %69 = memref.load %arg2[%c5_5] : memref<27xf32, #tpu.memory_space<smem>>
    %c6_6 = arith.constant 6 : index
    %70 = memref.load %arg2[%c6_6] : memref<27xf32, #tpu.memory_space<smem>>
    %c7_7 = arith.constant 7 : index
    %71 = memref.load %arg2[%c7_7] : memref<27xf32, #tpu.memory_space<smem>>
    %c8_8 = arith.constant 8 : index
    %72 = memref.load %arg2[%c8_8] : memref<27xf32, #tpu.memory_space<smem>>
    %c9_9 = arith.constant 9 : index
    %73 = memref.load %arg2[%c9_9] : memref<27xf32, #tpu.memory_space<smem>>
    %c10_10 = arith.constant 10 : index
    %74 = memref.load %arg2[%c10_10] : memref<27xf32, #tpu.memory_space<smem>>
    %c11_11 = arith.constant 11 : index
    %75 = memref.load %arg2[%c11_11] : memref<27xf32, #tpu.memory_space<smem>>
    %c12_12 = arith.constant 12 : index
    %76 = memref.load %arg2[%c12_12] : memref<27xf32, #tpu.memory_space<smem>>
    %c13_13 = arith.constant 13 : index
    %77 = memref.load %arg2[%c13_13] : memref<27xf32, #tpu.memory_space<smem>>
    %c14_14 = arith.constant 14 : index
    %78 = memref.load %arg2[%c14_14] : memref<27xf32, #tpu.memory_space<smem>>
    %c15_15 = arith.constant 15 : index
    %79 = memref.load %arg2[%c15_15] : memref<27xf32, #tpu.memory_space<smem>>
    %c16_16 = arith.constant 16 : index
    %80 = memref.load %arg2[%c16_16] : memref<27xf32, #tpu.memory_space<smem>>
    %c17_17 = arith.constant 17 : index
    %81 = memref.load %arg2[%c17_17] : memref<27xf32, #tpu.memory_space<smem>>
    %c18_18 = arith.constant 18 : index
    %82 = memref.load %arg2[%c18_18] : memref<27xf32, #tpu.memory_space<smem>>
    %c19_19 = arith.constant 19 : index
    %83 = memref.load %arg2[%c19_19] : memref<27xf32, #tpu.memory_space<smem>>
    %c20_20 = arith.constant 20 : index
    %84 = memref.load %arg2[%c20_20] : memref<27xf32, #tpu.memory_space<smem>>
    %c21_21 = arith.constant 21 : index
    %85 = memref.load %arg2[%c21_21] : memref<27xf32, #tpu.memory_space<smem>>
    %c22_22 = arith.constant 22 : index
    %86 = memref.load %arg2[%c22_22] : memref<27xf32, #tpu.memory_space<smem>>
    %c23_23 = arith.constant 23 : index
    %87 = memref.load %arg2[%c23_23] : memref<27xf32, #tpu.memory_space<smem>>
    %c24_24 = arith.constant 24 : index
    %88 = memref.load %arg2[%c24_24] : memref<27xf32, #tpu.memory_space<smem>>
    %c25_25 = arith.constant 25 : index
    %89 = memref.load %arg2[%c25_25] : memref<27xf32, #tpu.memory_space<smem>>
    %c26_26 = arith.constant 26 : index
    %90 = memref.load %arg2[%c26_26] : memref<27xf32, #tpu.memory_space<smem>>
    %c0_27 = arith.constant 0 : index
    %91 = memref.load %arg3[%c0_27] : memref<3xf32, #tpu.memory_space<smem>>
    %c1_28 = arith.constant 1 : index
    %92 = memref.load %arg3[%c1_28] : memref<3xf32, #tpu.memory_space<smem>>
    %c2_29 = arith.constant 2 : index
    %93 = memref.load %arg3[%c2_29] : memref<3xf32, #tpu.memory_space<smem>>
    %c0_30 = arith.constant 0 : index
    %c0_31 = arith.constant 0 : index
    %94 = vector.load %arg5[%c0_30, %c0_31] : memref<128x128xf32, #tpu.memory_space<vmem>>, vector<128x128xf32>
    %c0_32 = arith.constant 0 : index
    %c0_33 = arith.constant 0 : index
    %c0_34 = arith.constant 0 : index
    %95 = vector.load %arg4[%c0_32, %c0_33, %c0_34] : memref<32x128x128xf32, #tpu.memory_space<vmem>>, vector<1x128x128xf32>
    %96 = vector.shape_cast %95 : vector<1x128x128xf32> to vector<128x128xf32>
    %97 = vector.broadcast %1 : f32 to vector<128x128xf32>
    %98 = arith.mulf %97, %96 : vector<128x128xf32>
    %99 = arith.addf %94, %98 : vector<128x128xf32>
    %c1_35 = arith.constant 1 : index
    %c0_36 = arith.constant 0 : index
    %c0_37 = arith.constant 0 : index
    %100 = vector.load %arg4[%c1_35, %c0_36, %c0_37] : memref<32x128x128xf32, #tpu.memory_space<vmem>>, vector<1x128x128xf32>
    %101 = vector.shape_cast %100 : vector<1x128x128xf32> to vector<128x128xf32>
    %102 = vector.broadcast %3 : f32 to vector<128x128xf32>
    %103 = arith.mulf %102, %101 : vector<128x128xf32>
    %104 = arith.addf %99, %103 : vector<128x128xf32>
    %c2_38 = arith.constant 2 : index
    %c0_39 = arith.constant 0 : index
    %c0_40 = arith.constant 0 : index
    %105 = vector.load %arg4[%c2_38, %c0_39, %c0_40] : memref<32x128x128xf32, #tpu.memory_space<vmem>>, vector<1x128x128xf32>
    %106 = vector.shape_cast %105 : vector<1x128x128xf32> to vector<128x128xf32>
    %107 = vector.broadcast %5 : f32 to vector<128x128xf32>
    %108 = arith.mulf %107, %106 : vector<128x128xf32>
    %109 = arith.addf %104, %108 : vector<128x128xf32>
    %c3_41 = arith.constant 3 : index
    %c0_42 = arith.constant 0 : index
    %c0_43 = arith.constant 0 : index
    %110 = vector.load %arg4[%c3_41, %c0_42, %c0_43] : memref<32x128x128xf32, #tpu.memory_space<vmem>>, vector<1x128x128xf32>
    %111 = vector.shape_cast %110 : vector<1x128x128xf32> to vector<128x128xf32>
    %112 = vector.broadcast %7 : f32 to vector<128x128xf32>
    %113 = arith.mulf %112, %111 : vector<128x128xf32>
    %114 = arith.addf %109, %113 : vector<128x128xf32>
    %c4_44 = arith.constant 4 : index
    %c0_45 = arith.constant 0 : index
    %c0_46 = arith.constant 0 : index
    %115 = vector.load %arg4[%c4_44, %c0_45, %c0_46] : memref<32x128x128xf32, #tpu.memory_space<vmem>>, vector<1x128x128xf32>
    %116 = vector.shape_cast %115 : vector<1x128x128xf32> to vector<128x128xf32>
    %117 = vector.broadcast %9 : f32 to vector<128x128xf32>
    %118 = arith.mulf %117, %116 : vector<128x128xf32>
    %119 = arith.addf %114, %118 : vector<128x128xf32>
    %c5_47 = arith.constant 5 : index
    %c0_48 = arith.constant 0 : index
    %c0_49 = arith.constant 0 : index
    %120 = vector.load %arg4[%c5_47, %c0_48, %c0_49] : memref<32x128x128xf32, #tpu.memory_space<vmem>>, vector<1x128x128xf32>
    %121 = vector.shape_cast %120 : vector<1x128x128xf32> to vector<128x128xf32>
    %122 = vector.broadcast %11 : f32 to vector<128x128xf32>
    %123 = arith.mulf %122, %121 : vector<128x128xf32>
    %124 = arith.addf %119, %123 : vector<128x128xf32>
    %c6_50 = arith.constant 6 : index
    %c0_51 = arith.constant 0 : index
    %c0_52 = arith.constant 0 : index
    %125 = vector.load %arg4[%c6_50, %c0_51, %c0_52] : memref<32x128x128xf32, #tpu.memory_space<vmem>>, vector<1x128x128xf32>
    %126 = vector.shape_cast %125 : vector<1x128x128xf32> to vector<128x128xf32>
    %127 = vector.broadcast %13 : f32 to vector<128x128xf32>
    %128 = arith.mulf %127, %126 : vector<128x128xf32>
    %129 = arith.addf %124, %128 : vector<128x128xf32>
    %c7_53 = arith.constant 7 : index
    %c0_54 = arith.constant 0 : index
    %c0_55 = arith.constant 0 : index
    %130 = vector.load %arg4[%c7_53, %c0_54, %c0_55] : memref<32x128x128xf32, #tpu.memory_space<vmem>>, vector<1x128x128xf32>
    %131 = vector.shape_cast %130 : vector<1x128x128xf32> to vector<128x128xf32>
    %132 = vector.broadcast %15 : f32 to vector<128x128xf32>
    %133 = arith.mulf %132, %131 : vector<128x128xf32>
    %134 = arith.addf %129, %133 : vector<128x128xf32>
    %c8_56 = arith.constant 8 : index
    %c0_57 = arith.constant 0 : index
    %c0_58 = arith.constant 0 : index
    %135 = vector.load %arg4[%c8_56, %c0_57, %c0_58] : memref<32x128x128xf32, #tpu.memory_space<vmem>>, vector<1x128x128xf32>
    %136 = vector.shape_cast %135 : vector<1x128x128xf32> to vector<128x128xf32>
    %137 = vector.broadcast %17 : f32 to vector<128x128xf32>
    %138 = arith.mulf %137, %136 : vector<128x128xf32>
    %139 = arith.addf %134, %138 : vector<128x128xf32>
    %c9_59 = arith.constant 9 : index
    %c0_60 = arith.constant 0 : index
    %c0_61 = arith.constant 0 : index
    %140 = vector.load %arg4[%c9_59, %c0_60, %c0_61] : memref<32x128x128xf32, #tpu.memory_space<vmem>>, vector<1x128x128xf32>
    %141 = vector.shape_cast %140 : vector<1x128x128xf32> to vector<128x128xf32>
    %142 = vector.broadcast %19 : f32 to vector<128x128xf32>
    %143 = arith.mulf %142, %141 : vector<128x128xf32>
    %144 = arith.addf %139, %143 : vector<128x128xf32>
    %c10_62 = arith.constant 10 : index
    %c0_63 = arith.constant 0 : index
    %c0_64 = arith.constant 0 : index
    %145 = vector.load %arg4[%c10_62, %c0_63, %c0_64] : memref<32x128x128xf32, #tpu.memory_space<vmem>>, vector<1x128x128xf32>
    %146 = vector.shape_cast %145 : vector<1x128x128xf32> to vector<128x128xf32>
    %147 = vector.broadcast %21 : f32 to vector<128x128xf32>
    %148 = arith.mulf %147, %146 : vector<128x128xf32>
    %149 = arith.addf %144, %148 : vector<128x128xf32>
    %c11_65 = arith.constant 11 : index
    %c0_66 = arith.constant 0 : index
    %c0_67 = arith.constant 0 : index
    %150 = vector.load %arg4[%c11_65, %c0_66, %c0_67] : memref<32x128x128xf32, #tpu.memory_space<vmem>>, vector<1x128x128xf32>
    %151 = vector.shape_cast %150 : vector<1x128x128xf32> to vector<128x128xf32>
    %152 = vector.broadcast %23 : f32 to vector<128x128xf32>
    %153 = arith.mulf %152, %151 : vector<128x128xf32>
    %154 = arith.addf %149, %153 : vector<128x128xf32>
    %c12_68 = arith.constant 12 : index
    %c0_69 = arith.constant 0 : index
    %c0_70 = arith.constant 0 : index
    %155 = vector.load %arg4[%c12_68, %c0_69, %c0_70] : memref<32x128x128xf32, #tpu.memory_space<vmem>>, vector<1x128x128xf32>
    %156 = vector.shape_cast %155 : vector<1x128x128xf32> to vector<128x128xf32>
    %157 = vector.broadcast %25 : f32 to vector<128x128xf32>
    %158 = arith.mulf %157, %156 : vector<128x128xf32>
    %159 = arith.addf %154, %158 : vector<128x128xf32>
    %c13_71 = arith.constant 13 : index
    %c0_72 = arith.constant 0 : index
    %c0_73 = arith.constant 0 : index
    %160 = vector.load %arg4[%c13_71, %c0_72, %c0_73] : memref<32x128x128xf32, #tpu.memory_space<vmem>>, vector<1x128x128xf32>
    %161 = vector.shape_cast %160 : vector<1x128x128xf32> to vector<128x128xf32>
    %162 = vector.broadcast %27 : f32 to vector<128x128xf32>
    %163 = arith.mulf %162, %161 : vector<128x128xf32>
    %164 = arith.addf %159, %163 : vector<128x128xf32>
    %c14_74 = arith.constant 14 : index
    %c0_75 = arith.constant 0 : index
    %c0_76 = arith.constant 0 : index
    %165 = vector.load %arg4[%c14_74, %c0_75, %c0_76] : memref<32x128x128xf32, #tpu.memory_space<vmem>>, vector<1x128x128xf32>
    %166 = vector.shape_cast %165 : vector<1x128x128xf32> to vector<128x128xf32>
    %167 = vector.broadcast %29 : f32 to vector<128x128xf32>
    %168 = arith.mulf %167, %166 : vector<128x128xf32>
    %169 = arith.addf %164, %168 : vector<128x128xf32>
    %c15_77 = arith.constant 15 : index
    %c0_78 = arith.constant 0 : index
    %c0_79 = arith.constant 0 : index
    %170 = vector.load %arg4[%c15_77, %c0_78, %c0_79] : memref<32x128x128xf32, #tpu.memory_space<vmem>>, vector<1x128x128xf32>
    %171 = vector.shape_cast %170 : vector<1x128x128xf32> to vector<128x128xf32>
    %172 = vector.broadcast %31 : f32 to vector<128x128xf32>
    %173 = arith.mulf %172, %171 : vector<128x128xf32>
    %174 = arith.addf %169, %173 : vector<128x128xf32>
    %c16_80 = arith.constant 16 : index
    %c0_81 = arith.constant 0 : index
    %c0_82 = arith.constant 0 : index
    %175 = vector.load %arg4[%c16_80, %c0_81, %c0_82] : memref<32x128x128xf32, #tpu.memory_space<vmem>>, vector<1x128x128xf32>
    %176 = vector.shape_cast %175 : vector<1x128x128xf32> to vector<128x128xf32>
    %177 = vector.broadcast %33 : f32 to vector<128x128xf32>
    %178 = arith.mulf %177, %176 : vector<128x128xf32>
    %179 = arith.addf %174, %178 : vector<128x128xf32>
    %c17_83 = arith.constant 17 : index
    %c0_84 = arith.constant 0 : index
    %c0_85 = arith.constant 0 : index
    %180 = vector.load %arg4[%c17_83, %c0_84, %c0_85] : memref<32x128x128xf32, #tpu.memory_space<vmem>>, vector<1x128x128xf32>
    %181 = vector.shape_cast %180 : vector<1x128x128xf32> to vector<128x128xf32>
    %182 = vector.broadcast %35 : f32 to vector<128x128xf32>
    %183 = arith.mulf %182, %181 : vector<128x128xf32>
    %184 = arith.addf %179, %183 : vector<128x128xf32>
    %c18_86 = arith.constant 18 : index
    %c0_87 = arith.constant 0 : index
    %c0_88 = arith.constant 0 : index
    %185 = vector.load %arg4[%c18_86, %c0_87, %c0_88] : memref<32x128x128xf32, #tpu.memory_space<vmem>>, vector<1x128x128xf32>
    %186 = vector.shape_cast %185 : vector<1x128x128xf32> to vector<128x128xf32>
    %187 = vector.broadcast %37 : f32 to vector<128x128xf32>
    %188 = arith.mulf %187, %186 : vector<128x128xf32>
    %189 = arith.addf %184, %188 : vector<128x128xf32>
    %c19_89 = arith.constant 19 : index
    %c0_90 = arith.constant 0 : index
    %c0_91 = arith.constant 0 : index
    %190 = vector.load %arg4[%c19_89, %c0_90, %c0_91] : memref<32x128x128xf32, #tpu.memory_space<vmem>>, vector<1x128x128xf32>
    %191 = vector.shape_cast %190 : vector<1x128x128xf32> to vector<128x128xf32>
    %192 = vector.broadcast %39 : f32 to vector<128x128xf32>
    %193 = arith.mulf %192, %191 : vector<128x128xf32>
    %194 = arith.addf %189, %193 : vector<128x128xf32>
    %c20_92 = arith.constant 20 : index
    %c0_93 = arith.constant 0 : index
    %c0_94 = arith.constant 0 : index
    %195 = vector.load %arg4[%c20_92, %c0_93, %c0_94] : memref<32x128x128xf32, #tpu.memory_space<vmem>>, vector<1x128x128xf32>
    %196 = vector.shape_cast %195 : vector<1x128x128xf32> to vector<128x128xf32>
    %197 = vector.broadcast %41 : f32 to vector<128x128xf32>
    %198 = arith.mulf %197, %196 : vector<128x128xf32>
    %199 = arith.addf %194, %198 : vector<128x128xf32>
    %c21_95 = arith.constant 21 : index
    %c0_96 = arith.constant 0 : index
    %c0_97 = arith.constant 0 : index
    %200 = vector.load %arg4[%c21_95, %c0_96, %c0_97] : memref<32x128x128xf32, #tpu.memory_space<vmem>>, vector<1x128x128xf32>
    %201 = vector.shape_cast %200 : vector<1x128x128xf32> to vector<128x128xf32>
    %202 = vector.broadcast %43 : f32 to vector<128x128xf32>
    %203 = arith.mulf %202, %201 : vector<128x128xf32>
    %204 = arith.addf %199, %203 : vector<128x128xf32>
    %c22_98 = arith.constant 22 : index
    %c0_99 = arith.constant 0 : index
    %c0_100 = arith.constant 0 : index
    %205 = vector.load %arg4[%c22_98, %c0_99, %c0_100] : memref<32x128x128xf32, #tpu.memory_space<vmem>>, vector<1x128x128xf32>
    %206 = vector.shape_cast %205 : vector<1x128x128xf32> to vector<128x128xf32>
    %207 = vector.broadcast %45 : f32 to vector<128x128xf32>
    %208 = arith.mulf %207, %206 : vector<128x128xf32>
    %209 = arith.addf %204, %208 : vector<128x128xf32>
    %c23_101 = arith.constant 23 : index
    %c0_102 = arith.constant 0 : index
    %c0_103 = arith.constant 0 : index
    %210 = vector.load %arg4[%c23_101, %c0_102, %c0_103] : memref<32x128x128xf32, #tpu.memory_space<vmem>>, vector<1x128x128xf32>
    %211 = vector.shape_cast %210 : vector<1x128x128xf32> to vector<128x128xf32>
    %212 = vector.broadcast %47 : f32 to vector<128x128xf32>
    %213 = arith.mulf %212, %211 : vector<128x128xf32>
    %214 = arith.addf %209, %213 : vector<128x128xf32>
    %c24_104 = arith.constant 24 : index
    %c0_105 = arith.constant 0 : index
    %c0_106 = arith.constant 0 : index
    %215 = vector.load %arg4[%c24_104, %c0_105, %c0_106] : memref<32x128x128xf32, #tpu.memory_space<vmem>>, vector<1x128x128xf32>
    %216 = vector.shape_cast %215 : vector<1x128x128xf32> to vector<128x128xf32>
    %217 = vector.broadcast %49 : f32 to vector<128x128xf32>
    %218 = arith.mulf %217, %216 : vector<128x128xf32>
    %219 = arith.addf %214, %218 : vector<128x128xf32>
    %c25_107 = arith.constant 25 : index
    %c0_108 = arith.constant 0 : index
    %c0_109 = arith.constant 0 : index
    %220 = vector.load %arg4[%c25_107, %c0_108, %c0_109] : memref<32x128x128xf32, #tpu.memory_space<vmem>>, vector<1x128x128xf32>
    %221 = vector.shape_cast %220 : vector<1x128x128xf32> to vector<128x128xf32>
    %222 = vector.broadcast %51 : f32 to vector<128x128xf32>
    %223 = arith.mulf %222, %221 : vector<128x128xf32>
    %224 = arith.addf %219, %223 : vector<128x128xf32>
    %c26_110 = arith.constant 26 : index
    %c0_111 = arith.constant 0 : index
    %c0_112 = arith.constant 0 : index
    %225 = vector.load %arg4[%c26_110, %c0_111, %c0_112] : memref<32x128x128xf32, #tpu.memory_space<vmem>>, vector<1x128x128xf32>
    %226 = vector.shape_cast %225 : vector<1x128x128xf32> to vector<128x128xf32>
    %227 = vector.broadcast %53 : f32 to vector<128x128xf32>
    %228 = arith.mulf %227, %226 : vector<128x128xf32>
    %229 = arith.addf %224, %228 : vector<128x128xf32>
    %c27_113 = arith.constant 27 : index
    %c0_114 = arith.constant 0 : index
    %c0_115 = arith.constant 0 : index
    %230 = vector.load %arg4[%c27_113, %c0_114, %c0_115] : memref<32x128x128xf32, #tpu.memory_space<vmem>>, vector<1x128x128xf32>
    %231 = vector.shape_cast %230 : vector<1x128x128xf32> to vector<128x128xf32>
    %232 = vector.broadcast %55 : f32 to vector<128x128xf32>
    %233 = arith.mulf %232, %231 : vector<128x128xf32>
    %234 = arith.addf %229, %233 : vector<128x128xf32>
    %c28_116 = arith.constant 28 : index
    %c0_117 = arith.constant 0 : index
    %c0_118 = arith.constant 0 : index
    %235 = vector.load %arg4[%c28_116, %c0_117, %c0_118] : memref<32x128x128xf32, #tpu.memory_space<vmem>>, vector<1x128x128xf32>
    %236 = vector.shape_cast %235 : vector<1x128x128xf32> to vector<128x128xf32>
    %237 = vector.broadcast %57 : f32 to vector<128x128xf32>
    %238 = arith.mulf %237, %236 : vector<128x128xf32>
    %239 = arith.addf %234, %238 : vector<128x128xf32>
    %c29_119 = arith.constant 29 : index
    %c0_120 = arith.constant 0 : index
    %c0_121 = arith.constant 0 : index
    %240 = vector.load %arg4[%c29_119, %c0_120, %c0_121] : memref<32x128x128xf32, #tpu.memory_space<vmem>>, vector<1x128x128xf32>
    %241 = vector.shape_cast %240 : vector<1x128x128xf32> to vector<128x128xf32>
    %242 = vector.broadcast %59 : f32 to vector<128x128xf32>
    %243 = arith.mulf %242, %241 : vector<128x128xf32>
    %244 = arith.addf %239, %243 : vector<128x128xf32>
    %c30_122 = arith.constant 30 : index
    %c0_123 = arith.constant 0 : index
    %c0_124 = arith.constant 0 : index
    %245 = vector.load %arg4[%c30_122, %c0_123, %c0_124] : memref<32x128x128xf32, #tpu.memory_space<vmem>>, vector<1x128x128xf32>
    %246 = vector.shape_cast %245 : vector<1x128x128xf32> to vector<128x128xf32>
    %247 = vector.broadcast %61 : f32 to vector<128x128xf32>
    %248 = arith.mulf %247, %246 : vector<128x128xf32>
    %249 = arith.addf %244, %248 : vector<128x128xf32>
    %c31_125 = arith.constant 31 : index
    %c0_126 = arith.constant 0 : index
    %c0_127 = arith.constant 0 : index
    %250 = vector.load %arg4[%c31_125, %c0_126, %c0_127] : memref<32x128x128xf32, #tpu.memory_space<vmem>>, vector<1x128x128xf32>
    %251 = vector.shape_cast %250 : vector<1x128x128xf32> to vector<128x128xf32>
    %252 = vector.broadcast %63 : f32 to vector<128x128xf32>
    %253 = arith.mulf %252, %251 : vector<128x128xf32>
    %254 = arith.addf %249, %253 : vector<128x128xf32>
    %255 = tpu.iota {dimensions = array<i32: 0>} : vector<128x128xi32>
    %256 = tpu.iota {dimensions = array<i32: 1>} : vector<128x128xi32>
    %cst = arith.constant 0.000000e+00 : f32
    %257 = vector.broadcast %cst : f32 to vector<128x128xf32>
    %cst_128 = arith.constant 0.000000e+00 : f32
    %258 = vector.broadcast %cst_128 : f32 to vector<128x128xf32>
    %cst_129 = arith.constant 0.000000e+00 : f32
    %259 = vector.broadcast %cst_129 : f32 to vector<128x128xf32>
    %c1_i32 = arith.constant 1 : i32
    %260 = tpu.dynamic_rotate %254 by %c1_i32 dim 1 : vector<128x128xf32>, i32 -> vector<128x128xf32>
    %c1_i32_130 = arith.constant 1 : i32
    %261 = vector.broadcast %c1_i32_130 : i32 to vector<128x128xi32>
    %262 = arith.cmpi slt, %256, %261 : vector<128x128xi32>
    %cst_131 = arith.constant 0.000000e+00 : f32
    %263 = vector.broadcast %cst_131 : f32 to vector<128x128xf32>
    %264 = arith.select %262, %263, %260 : vector<128x128xi1>, vector<128x128xf32>
    %c1_i32_132 = arith.constant 1 : i32
    %265 = tpu.dynamic_rotate %264 by %c1_i32_132 dim 0 : vector<128x128xf32>, i32 -> vector<128x128xf32>
    %c1_i32_133 = arith.constant 1 : i32
    %266 = vector.broadcast %c1_i32_133 : i32 to vector<128x128xi32>
    %267 = arith.cmpi slt, %255, %266 : vector<128x128xi32>
    %cst_134 = arith.constant 0.000000e+00 : f32
    %268 = vector.broadcast %cst_134 : f32 to vector<128x128xf32>
    %269 = arith.select %267, %268, %265 : vector<128x128xi1>, vector<128x128xf32>
    %270 = vector.broadcast %64 : f32 to vector<128x128xf32>
    %271 = arith.mulf %270, %269 : vector<128x128xf32>
    %272 = arith.addf %257, %271 : vector<128x128xf32>
    %273 = vector.broadcast %73 : f32 to vector<128x128xf32>
    %274 = arith.mulf %273, %269 : vector<128x128xf32>
    %275 = arith.addf %258, %274 : vector<128x128xf32>
    %276 = vector.broadcast %82 : f32 to vector<128x128xf32>
    %277 = arith.mulf %276, %269 : vector<128x128xf32>
    %278 = arith.addf %259, %277 : vector<128x128xf32>
    %279 = vector.broadcast %67 : f32 to vector<128x128xf32>
    %280 = arith.mulf %279, %264 : vector<128x128xf32>
    %281 = arith.addf %272, %280 : vector<128x128xf32>
    %282 = vector.broadcast %76 : f32 to vector<128x128xf32>
    %283 = arith.mulf %282, %264 : vector<128x128xf32>
    %284 = arith.addf %275, %283 : vector<128x128xf32>
    %285 = vector.broadcast %85 : f32 to vector<128x128xf32>
    %286 = arith.mulf %285, %264 : vector<128x128xf32>
    %287 = arith.addf %278, %286 : vector<128x128xf32>
    %c127_i32 = arith.constant 127 : i32
    %288 = tpu.dynamic_rotate %264 by %c127_i32 dim 0 : vector<128x128xf32>, i32 -> vector<128x128xf32>
    %c127_i32_135 = arith.constant 127 : i32
    %289 = vector.broadcast %c127_i32_135 : i32 to vector<128x128xi32>
    %290 = arith.cmpi sge, %255, %289 : vector<128x128xi32>
    %cst_136 = arith.constant 0.000000e+00 : f32
    %291 = vector.broadcast %cst_136 : f32 to vector<128x128xf32>
    %292 = arith.select %290, %291, %288 : vector<128x128xi1>, vector<128x128xf32>
    %293 = vector.broadcast %70 : f32 to vector<128x128xf32>
    %294 = arith.mulf %293, %292 : vector<128x128xf32>
    %295 = arith.addf %281, %294 : vector<128x128xf32>
    %296 = vector.broadcast %79 : f32 to vector<128x128xf32>
    %297 = arith.mulf %296, %292 : vector<128x128xf32>
    %298 = arith.addf %284, %297 : vector<128x128xf32>
    %299 = vector.broadcast %88 : f32 to vector<128x128xf32>
    %300 = arith.mulf %299, %292 : vector<128x128xf32>
    %301 = arith.addf %287, %300 : vector<128x128xf32>
    %c1_i32_137 = arith.constant 1 : i32
    %302 = tpu.dynamic_rotate %254 by %c1_i32_137 dim 0 : vector<128x128xf32>, i32 -> vector<128x128xf32>
    %c1_i32_138 = arith.constant 1 : i32
    %303 = vector.broadcast %c1_i32_138 : i32 to vector<128x128xi32>
    %304 = arith.cmpi slt, %255, %303 : vector<128x128xi32>
    %cst_139 = arith.constant 0.000000e+00 : f32
    %305 = vector.broadcast %cst_139 : f32 to vector<128x128xf32>
    %306 = arith.select %304, %305, %302 : vector<128x128xi1>, vector<128x128xf32>
    %307 = vector.broadcast %65 : f32 to vector<128x128xf32>
    %308 = arith.mulf %307, %306 : vector<128x128xf32>
    %309 = arith.addf %295, %308 : vector<128x128xf32>
    %310 = vector.broadcast %74 : f32 to vector<128x128xf32>
    %311 = arith.mulf %310, %306 : vector<128x128xf32>
    %312 = arith.addf %298, %311 : vector<128x128xf32>
    %313 = vector.broadcast %83 : f32 to vector<128x128xf32>
    %314 = arith.mulf %313, %306 : vector<128x128xf32>
    %315 = arith.addf %301, %314 : vector<128x128xf32>
    %316 = vector.broadcast %68 : f32 to vector<128x128xf32>
    %317 = arith.mulf %316, %254 : vector<128x128xf32>
    %318 = arith.addf %309, %317 : vector<128x128xf32>
    %319 = vector.broadcast %77 : f32 to vector<128x128xf32>
    %320 = arith.mulf %319, %254 : vector<128x128xf32>
    %321 = arith.addf %312, %320 : vector<128x128xf32>
    %322 = vector.broadcast %86 : f32 to vector<128x128xf32>
    %323 = arith.mulf %322, %254 : vector<128x128xf32>
    %324 = arith.addf %315, %323 : vector<128x128xf32>
    %c127_i32_140 = arith.constant 127 : i32
    %325 = tpu.dynamic_rotate %254 by %c127_i32_140 dim 0 : vector<128x128xf32>, i32 -> vector<128x128xf32>
    %c127_i32_141 = arith.constant 127 : i32
    %326 = vector.broadcast %c127_i32_141 : i32 to vector<128x128xi32>
    %327 = arith.cmpi sge, %255, %326 : vector<128x128xi32>
    %cst_142 = arith.constant 0.000000e+00 : f32
    %328 = vector.broadcast %cst_142 : f32 to vector<128x128xf32>
    %329 = arith.select %327, %328, %325 : vector<128x128xi1>, vector<128x128xf32>
    %330 = vector.broadcast %71 : f32 to vector<128x128xf32>
    %331 = arith.mulf %330, %329 : vector<128x128xf32>
    %332 = arith.addf %318, %331 : vector<128x128xf32>
    %333 = vector.broadcast %80 : f32 to vector<128x128xf32>
    %334 = arith.mulf %333, %329 : vector<128x128xf32>
    %335 = arith.addf %321, %334 : vector<128x128xf32>
    %336 = vector.broadcast %89 : f32 to vector<128x128xf32>
    %337 = arith.mulf %336, %329 : vector<128x128xf32>
    %338 = arith.addf %324, %337 : vector<128x128xf32>
    %c127_i32_143 = arith.constant 127 : i32
    %339 = tpu.dynamic_rotate %254 by %c127_i32_143 dim 1 : vector<128x128xf32>, i32 -> vector<128x128xf32>
    %c127_i32_144 = arith.constant 127 : i32
    %340 = vector.broadcast %c127_i32_144 : i32 to vector<128x128xi32>
    %341 = arith.cmpi sge, %256, %340 : vector<128x128xi32>
    %cst_145 = arith.constant 0.000000e+00 : f32
    %342 = vector.broadcast %cst_145 : f32 to vector<128x128xf32>
    %343 = arith.select %341, %342, %339 : vector<128x128xi1>, vector<128x128xf32>
    %c1_i32_146 = arith.constant 1 : i32
    %344 = tpu.dynamic_rotate %343 by %c1_i32_146 dim 0 : vector<128x128xf32>, i32 -> vector<128x128xf32>
    %c1_i32_147 = arith.constant 1 : i32
    %345 = vector.broadcast %c1_i32_147 : i32 to vector<128x128xi32>
    %346 = arith.cmpi slt, %255, %345 : vector<128x128xi32>
    %cst_148 = arith.constant 0.000000e+00 : f32
    %347 = vector.broadcast %cst_148 : f32 to vector<128x128xf32>
    %348 = arith.select %346, %347, %344 : vector<128x128xi1>, vector<128x128xf32>
    %349 = vector.broadcast %66 : f32 to vector<128x128xf32>
    %350 = arith.mulf %349, %348 : vector<128x128xf32>
    %351 = arith.addf %332, %350 : vector<128x128xf32>
    %352 = vector.broadcast %75 : f32 to vector<128x128xf32>
    %353 = arith.mulf %352, %348 : vector<128x128xf32>
    %354 = arith.addf %335, %353 : vector<128x128xf32>
    %355 = vector.broadcast %84 : f32 to vector<128x128xf32>
    %356 = arith.mulf %355, %348 : vector<128x128xf32>
    %357 = arith.addf %338, %356 : vector<128x128xf32>
    %358 = vector.broadcast %69 : f32 to vector<128x128xf32>
    %359 = arith.mulf %358, %343 : vector<128x128xf32>
    %360 = arith.addf %351, %359 : vector<128x128xf32>
    %361 = vector.broadcast %78 : f32 to vector<128x128xf32>
    %362 = arith.mulf %361, %343 : vector<128x128xf32>
    %363 = arith.addf %354, %362 : vector<128x128xf32>
    %364 = vector.broadcast %87 : f32 to vector<128x128xf32>
    %365 = arith.mulf %364, %343 : vector<128x128xf32>
    %366 = arith.addf %357, %365 : vector<128x128xf32>
    %c127_i32_149 = arith.constant 127 : i32
    %367 = tpu.dynamic_rotate %343 by %c127_i32_149 dim 0 : vector<128x128xf32>, i32 -> vector<128x128xf32>
    %c127_i32_150 = arith.constant 127 : i32
    %368 = vector.broadcast %c127_i32_150 : i32 to vector<128x128xi32>
    %369 = arith.cmpi sge, %255, %368 : vector<128x128xi32>
    %cst_151 = arith.constant 0.000000e+00 : f32
    %370 = vector.broadcast %cst_151 : f32 to vector<128x128xf32>
    %371 = arith.select %369, %370, %367 : vector<128x128xi1>, vector<128x128xf32>
    %372 = vector.broadcast %72 : f32 to vector<128x128xf32>
    %373 = arith.mulf %372, %371 : vector<128x128xf32>
    %374 = arith.addf %360, %373 : vector<128x128xf32>
    %375 = vector.broadcast %81 : f32 to vector<128x128xf32>
    %376 = arith.mulf %375, %371 : vector<128x128xf32>
    %377 = arith.addf %363, %376 : vector<128x128xf32>
    %378 = vector.broadcast %90 : f32 to vector<128x128xf32>
    %379 = arith.mulf %378, %371 : vector<128x128xf32>
    %380 = arith.addf %366, %379 : vector<128x128xf32>
    %381 = vector.broadcast %91 : f32 to vector<128x128xf32>
    %382 = arith.addf %374, %381 : vector<128x128xf32>
    %cst_152 = arith.constant 0.000000e+00 : f32
    %383 = vector.broadcast %cst_152 : f32 to vector<128x128xf32>
    %384 = arith.maximumf %382, %383 : vector<128x128xf32>
    %c0_153 = arith.constant 0 : index
    %c0_154 = arith.constant 0 : index
    %c0_155 = arith.constant 0 : index
    %c0_156 = arith.constant 0 : index
    %385 = vector.load %arg6[%c0_153, %c0_154, %c0_155, %c0_156] : memref<1x3x128x128xf32, #tpu.memory_space<vmem>>, vector<1x1x128x128xf32>
    %386 = vector.shape_cast %385 : vector<1x1x128x128xf32> to vector<128x128xf32>
    %387 = vector.shape_cast %384 : vector<128x128xf32> to vector<1x1x128x128xf32>
    tpu.vector_store %arg6[%c0_153, %c0_154, %c0_155, %c0_156], %387 {strides = array<i32>} : memref<1x3x128x128xf32, #tpu.memory_space<vmem>>, vector<1x1x128x128xf32>,
    %388 = vector.broadcast %92 : f32 to vector<128x128xf32>
    %389 = arith.addf %377, %388 : vector<128x128xf32>
    %cst_157 = arith.constant 0.000000e+00 : f32
    %390 = vector.broadcast %cst_157 : f32 to vector<128x128xf32>
    %391 = arith.maximumf %389, %390 : vector<128x128xf32>
    %c0_158 = arith.constant 0 : index
    %c1_159 = arith.constant 1 : index
    %c0_160 = arith.constant 0 : index
    %c0_161 = arith.constant 0 : index
    %392 = vector.load %arg6[%c0_158, %c1_159, %c0_160, %c0_161] : memref<1x3x128x128xf32, #tpu.memory_space<vmem>>, vector<1x1x128x128xf32>
    %393 = vector.shape_cast %392 : vector<1x1x128x128xf32> to vector<128x128xf32>
    %394 = vector.shape_cast %391 : vector<128x128xf32> to vector<1x1x128x128xf32>
    tpu.vector_store %arg6[%c0_158, %c1_159, %c0_160, %c0_161], %394 {strides = array<i32>} : memref<1x3x128x128xf32, #tpu.memory_space<vmem>>, vector<1x1x128x128xf32>,
    %395 = vector.broadcast %93 : f32 to vector<128x128xf32>
    %396 = arith.addf %380, %395 : vector<128x128xf32>
    %cst_162 = arith.constant 0.000000e+00 : f32
    %397 = vector.broadcast %cst_162 : f32 to vector<128x128xf32>
    %398 = arith.maximumf %396, %397 : vector<128x128xf32>
    %c0_163 = arith.constant 0 : index
    %c2_164 = arith.constant 2 : index
    %c0_165 = arith.constant 0 : index
    %c0_166 = arith.constant 0 : index
    %399 = vector.load %arg6[%c0_163, %c2_164, %c0_165, %c0_166] : memref<1x3x128x128xf32, #tpu.memory_space<vmem>>, vector<1x1x128x128xf32>
    %400 = vector.shape_cast %399 : vector<1x1x128x128xf32> to vector<128x128xf32>
    %401 = vector.shape_cast %398 : vector<128x128xf32> to vector<1x1x128x128xf32>
    tpu.vector_store %arg6[%c0_163, %c2_164, %c0_165, %c0_166], %401 {strides = array<i32>} : memref<1x3x128x128xf32, #tpu.memory_space<vmem>>, vector<1x1x128x128xf32>,
    return
  }
  func.func @transform_0(%arg0: i32) -> (i32, i32) {
    %c0_i32 = arith.constant 0 : i32
    %c0_i32_0 = arith.constant 0 : i32
    %c0_i32_1 = arith.constant 0 : i32
    return %c0_i32, %c0_i32_0 : i32, i32
  }
  func.func @transform_1(%arg0: i32) -> i32 {
    %c0_i32 = arith.constant 0 : i32
    %c0_i32_0 = arith.constant 0 : i32
    return %c0_i32 : i32
  }
  func.func @transform_2(%arg0: i32) -> i32 {
    %c0_i32 = arith.constant 0 : i32
    %c0_i32_0 = arith.constant 0 : i32
    return %c0_i32 : i32
  }
  func.func @transform_3(%arg0: i32) -> (i32, i32, i32) {
    %c0_i32 = arith.constant 0 : i32
    %c0_i32_0 = arith.constant 0 : i32
    %c0_i32_1 = arith.constant 0 : i32
    %c0_i32_2 = arith.constant 0 : i32
    return %c0_i32, %c0_i32_0, %c0_i32_1 : i32, i32, i32
  }
  func.func @transform_4(%arg0: i32) -> (i32, i32) {
    %c0_i32 = arith.constant 0 : i32
    %c0_i32_0 = arith.constant 0 : i32
    %c0_i32_1 = arith.constant 0 : i32
    return %c0_i32, %c0_i32_0 : i32, i32
  }
  func.func @transform_5(%arg0: i32) -> (i32, i32, i32, i32) {
    %c0_i32 = arith.constant 0 : i32
    %c0_i32_0 = arith.constant 0 : i32
    %c0_i32_1 = arith.constant 0 : i32
    %c0_i32_2 = arith.constant 0 : i32
    return %arg0, %c0_i32, %c0_i32_0, %c0_i32_1 : i32, i32, i32, i32
  }
}

</mosaic_0001>

<llo_original>
// kernel: tpu_custom_call.1
$region0: #{tpu_custom_call.1}
  #allocation0 [shape = 'u32[]', space=smem, size = 0x4, offset = 0x4, fixed_abs, tag = 'smem constant byte address 0x4 - core index']
  #allocation1 [shape = 'u32[144,128]{1,0:T(1,128)}', space=vmem, size = 0x12000, scoped, tag = 'internal scratch']
  %s0 = inlined_call_operand.hbm [shape: f32[2,32], index: 0, kind: input, shape index: {}]
  %s1 = inlined_call_operand.hbm [shape: f32[27], index: 1, kind: input, shape index: {}]
  %s2 = inlined_call_operand.hbm [shape: f32[3], index: 2, kind: input, shape index: {}]
  %s3 = inlined_call_operand.hbm [shape: f32[32,128,128], index: 3, kind: input, shape index: {}]
  %s4 = inlined_call_operand.hbm [shape: f32[128,128], index: 4, kind: input, shape index: {}]
  %s5 = inlined_call_operand.hbm [shape: f32[2,3,128,128], index: 5, kind: output, shape index: {}]
  %s6 = sld [smem:[#allocation0]]
  $region73: #{tpu_custom_call.1} parent=0
    _
  %s8 = ssub.s32 1, %s6
  %s9 = scalar_select 0, %s8, %s6
  $region1: #{tpu_custom_call.1} parent=0
    #allocation2 [shape = 'u8[1024]{0}', space=smem, size = 0x400, scoped, tag = 'input window, operand 0, single buffered']
    #allocation3 [shape = 's32[2]{0}', space=sflag, size = 0x8, scoped, tag = 'scoped memory for tpu_custom_call.1']
    #allocation4 [shape = 's32[2]{0}', space=sflag, size = 0x8, scoped, tag = 'scoped memory for tpu_custom_call.1']
    #allocation5 [shape = 's32[2]{0}', space=sflag, size = 0x8, scoped, tag = 'scoped memory for tpu_custom_call.1']
    #allocation6 [shape = 'u8[512]{0}', space=smem, size = 0x200, scoped, tag = 'input window, operand 1, single buffered']
    #allocation7 [shape = 's32[1]{0}', space=sflag, size = 0x4, scoped, tag = 'scoped memory for tpu_custom_call.1']
    #allocation8 [shape = 'u8[512]{0}', space=smem, size = 0x200, scoped, tag = 'input window, operand 2, single buffered']
    #allocation9 [shape = 'u8[2097152]{0}', space=vmem, size = 0x200000, scoped, tag = 'input window, operand 3, single buffered']
    #allocation10 [shape = 'u8[65536]{0}', space=vmem, size = 0x10000, scoped, tag = 'input window, operand 4, single buffered']
    #allocation11 [shape = 's32[1]{0}', space=sflag, size = 0x4, scoped, tag = 'scoped memory for tpu_custom_call.1']
    #allocation12 [shape = 'u8[393216]{0}', space=vmem, size = 0x60000, scoped, tag = 'output window, operand 0']
    %10 = vsyncpa [#allocation5], 0
    %11 = vsyncpa [#allocation7], 0
    %12 = vsyncpa [#allocation3], 0
    %13 = vsyncpa [#allocation11], 0
    %14 = vsyncpa [#allocation4], 0
    %s15 = scalar_lea.sflag [#allocation4], 1
    %16 = vsyncpa %s15, 0
    loop: start=0, step=1, limit=4
    $region2: #{tpu_custom_call.1} parent=1 // loop_pre_header
      _
    $region3: #{tpu_custom_call.1} parent=1 // loop_header
      %s18 = sphi 0, %s22
      %p19 = scmp.ge.s32.totalorder %s18, 4
      %s26 = sphi 0, %s26
      %s28 = sphi 0, %s26
      %s29 = sphi 0, %s28
      %s43 = sphi 0, %s29
      %s47 = sphi 0, %s47
      %s49 = sphi 0, %s47
      %s50 = sphi 0, %s49
      %s64 = sphi 0, %s50
      %s68 = sphi 0, %s68
      %s70 = sphi 0, %s68
      %s71 = sphi 0, %s70
      %s85 = sphi 0, %s71
      %s89 = sphi 0, %s89
      %s91 = sphi 0, %s89
      %s92 = sphi 0, %s91
      %s106 = sphi 0, %s92
      %s110 = sphi 0, %s110
      %s112 = sphi 0, %s110
      %s113 = sphi 0, %s112
      %s127 = sphi 0, %s113
      %s133 = sphi 0, %s135
      %s136 = sphi 0, %s133
      %s137 = sphi 0, %s136
      %s153 = sphi 0, %s137
    $region4: #{tpu_custom_call.1} parent=1 // loop_header_branch
      %21 = sbr.rel (%p19) target = $region8
    $region5: #{tpu_custom_call.1} parent=1 // loop_body
      %s23 = ssub.s32 %s18, 1
      %s24 = ssub.s32 %s18, 2
      %s25 = sadd.s32 %s18, 1
      %s27 = sadd.s32 %s26, 1
      %p30 = scmp.eq.s32.totalorder %s18, 1
      %p31 = scmp.ne.s32.totalorder %s26, %s28
      %p32 = scmp.eq.s32.totalorder %s18, 0
      %p33 = por %p31, %p32
      %p34 = scmp.ne.s32.totalorder %s26, %s28
      %p35 = scmp.eq.s32.totalorder %s23, 1
      %p36 = por %p34, %p35
      %p37 = scmp.ne.s32.totalorder %s28, %s29
      %p38 = scmp.eq.s32.totalorder %s23, 0
      %p39 = por %p37, %p38
      %p40 = scmp.ne.s32.totalorder %s28, %s29
      %p41 = scmp.eq.s32.totalorder %s24, 1
      %p42 = por %p40, %p41
      %p44 = scmp.ne.s32.totalorder %s29, %s43
      %p45 = scmp.eq.s32.totalorder %s24, 0
      %p46 = por %p44, %p45
      %s48 = sadd.s32 %s47, 1
      %p51 = scmp.eq.s32.totalorder %s18, 1
      %p52 = scmp.ne.s32.totalorder %s47, %s49
      %p53 = scmp.eq.s32.totalorder %s18, 0
      %p54 = por %p52, %p53
      %p55 = scmp.ne.s32.totalorder %s47, %s49
      %p56 = scmp.eq.s32.totalorder %s23, 1
      %p57 = por %p55, %p56
      %p58 = scmp.ne.s32.totalorder %s49, %s50
      %p59 = scmp.eq.s32.totalorder %s23, 0
      %p60 = por %p58, %p59
      %p61 = scmp.ne.s32.totalorder %s49, %s50
      %p62 = scmp.eq.s32.totalorder %s24, 1
      %p63 = por %p61, %p62
      %p65 = scmp.ne.s32.totalorder %s50, %s64
      %p66 = scmp.eq.s32.totalorder %s24, 0
      %p67 = por %p65, %p66
      %s69 = sadd.s32 %s68, 1
      %p72 = scmp.eq.s32.totalorder %s18, 1
      %p73 = scmp.ne.s32.totalorder %s68, %s70
      %p74 = scmp.eq.s32.totalorder %s18, 0
      %p75 = por %p73, %p74
      %p76 = scmp.ne.s32.totalorder %s68, %s70
      %p77 = scmp.eq.s32.totalorder %s23, 1
      %p78 = por %p76, %p77
      %p79 = scmp.ne.s32.totalorder %s70, %s71
      %p80 = scmp.eq.s32.totalorder %s23, 0
      %p81 = por %p79, %p80
      %p82 = scmp.ne.s32.totalorder %s70, %s71
      %p83 = scmp.eq.s32.totalorder %s24, 1
      %p84 = por %p82, %p83
      %p86 = scmp.ne.s32.totalorder %s71, %s85
      %p87 = scmp.eq.s32.totalorder %s24, 0
      %p88 = por %p86, %p87
      %s90 = sadd.s32 %s89, 1
      %p93 = scmp.eq.s32.totalorder %s18, 1
      %p94 = scmp.ne.s32.totalorder %s89, %s91
      %p95 = scmp.eq.s32.totalorder %s18, 0
      %p96 = por %p94, %p95
      %p97 = scmp.ne.s32.totalorder %s89, %s91
      %p98 = scmp.eq.s32.totalorder %s23, 1
      %p99 = por %p97, %p98
      %p100 = scmp.ne.s32.totalorder %s91, %s92
      %p101 = scmp.eq.s32.totalorder %s23, 0
      %p102 = por %p100, %p101
      %p103 = scmp.ne.s32.totalorder %s91, %s92
      %p104 = scmp.eq.s32.totalorder %s24, 1
      %p105 = por %p103, %p104
      %p107 = scmp.ne.s32.totalorder %s92, %s106
      %p108 = scmp.eq.s32.totalorder %s24, 0
      %p109 = por %p107, %p108
      %s111 = sadd.s32 %s110, 1
      %p114 = scmp.eq.s32.totalorder %s18, 1
      %p115 = scmp.ne.s32.totalorder %s110, %s112
      %p116 = scmp.eq.s32.totalorder %s18, 0
      %p117 = por %p115, %p116
      %p118 = scmp.ne.s32.totalorder %s110, %s112
      %p119 = scmp.eq.s32.totalorder %s23, 1
      %p120 = por %p118, %p119
      %p121 = scmp.ne.s32.totalorder %s112, %s113
      %p122 = scmp.eq.s32.totalorder %s23, 0
      %p123 = por %p121, %p122
      %p124 = scmp.ne.s32.totalorder %s112, %s113
      %p125 = scmp.eq.s32.totalorder %s24, 1
      %p126 = por %p124, %p125
      %p128 = scmp.ne.s32.totalorder %s113, %s127
      %p129 = scmp.eq.s32.totalorder %s24, 0
      %p130 = por %p128, %p129
      %s131 = ssub.s32 %s18, %s25
      %p132 = scmp.eq.s32.totalorder %s131, 0
      %s134 = sadd.s32 %s133, 1
      %s135 = scalar_select %p132, %s133, %s134
      %p138 = pneg %p132
      %p139 = scmp.eq.s32.totalorder %s18, 1
      %p140 = por %p138, %p139
      %p141 = scmp.ne.s32.totalorder %s133, %s136
      %p142 = scmp.eq.s32.totalorder %s18, 0
      %p143 = por %p141, %p142
      %p144 = scmp.ne.s32.totalorder %s133, %s136
      %p145 = scmp.eq.s32.totalorder %s23, 1
      %p146 = por %p144, %p145
      %p147 = scmp.ne.s32.totalorder %s136, %s137
      %p148 = scmp.eq.s32.totalorder %s23, 0
      %p149 = por %p147, %p148
      %p150 = scmp.ne.s32.totalorder %s136, %s137
      %p151 = scmp.eq.s32.totalorder %s24, 1
      %p152 = por %p150, %p151
      %p154 = scmp.ne.s32.totalorder %s137, %s153
      %p155 = scmp.eq.s32.totalorder %s24, 0
      %p156 = por %p154, %p155
      %p157 = scmp.le.s32.totalorder 1, %s18
      %p158 = scmp.lt.s32.totalorder %s18, 3
      %p159 = pnand %p157, %p158
      %p160 = pneg %p159
      // Predicated region
      $region9: #{tpu_custom_call.1} parent=5 // pred_check
        _
      $region10: #{tpu_custom_call.1} parent=5 // pred_check_branch
        %162 = sbr.rel (%p159) target = $region12
      $region11: #{tpu_custom_call.1} parent=5 // pred_region
        %s163 = ssub.s32 %s18, 1
        // Predicated region
        $region13: #{tpu_custom_call.1} parent=11 // pred_check
          %p164 = pneg %p39
        $region14: #{tpu_custom_call.1} parent=11 // pred_check_branch
          %166 = sbr.rel (%p164) target = $region16
        $region15: #{tpu_custom_call.1} parent=11 // pred_region
          %s168 = ssub.s32 32, 32
          %169 = vsyncadd [#allocation5], %s168
          %172 = dma.hbm_to_smem %s0, 32, [#allocation2], [#allocation5]
        $region16: #{tpu_custom_call.1} parent=11 // pred_fallthru
          _
        // Predicated region
        $region17: #{tpu_custom_call.1} parent=11 // pred_check
          %p173 = pneg %p60
        $region18: #{tpu_custom_call.1} parent=11 // pred_check_branch
          %175 = sbr.rel (%p173) target = $region20
        $region19: #{tpu_custom_call.1} parent=11 // pred_region
          %s177 = ssub.s32 16, 16
          %178 = vsyncadd [#allocation7], %s177
          %181 = dma.hbm_to_smem %s1, 16, [#allocation6], [#allocation7]
        $region20: #{tpu_custom_call.1} parent=11 // pred_fallthru
          _
        // Predicated region
        $region21: #{tpu_custom_call.1} parent=11 // pred_check
          %p182 = pneg %p81
        $region22: #{tpu_custom_call.1} parent=11 // pred_check_branch
          %184 = sbr.rel (%p182) target = $region24
        $region23: #{tpu_custom_call.1} parent=11 // pred_region
          %s186 = ssub.s32 16, 16
          %187 = vsyncadd [#allocation7], %s186
          %190 = dma.hbm_to_smem %s2, 16, [#allocation8], [#allocation7]
        $region24: #{tpu_custom_call.1} parent=11 // pred_fallthru
          _
        // Predicated region
        $region25: #{tpu_custom_call.1} parent=11 // pred_check
          %p191 = pneg %p102
        $region26: #{tpu_custom_call.1} parent=11 // pred_check_branch
          %193 = sbr.rel (%p191) target = $region28
        $region27: #{tpu_custom_call.1} parent=11 // pred_region
          %s195 = ssub.s32 65536, 65536
          %196 = vsyncadd [#allocation3], %s195
          %s197 = sshll.u32 [#allocation9], 4
          %s198 = int_to_ptr.vmem [resolvable:$true] %s197
          %203 = dma.hbm_to_vmem [thread:$0]  %s3, 65536, %s198, [#allocation3], 128, 128, 8
        $region28: #{tpu_custom_call.1} parent=11 // pred_fallthru
          _
        // Predicated region
        $region29: #{tpu_custom_call.1} parent=11 // pred_check
          %p204 = pneg %p123
        $region30: #{tpu_custom_call.1} parent=11 // pred_check_branch
          %206 = sbr.rel (%p204) target = $region32
        $region31: #{tpu_custom_call.1} parent=11 // pred_region
          %s208 = ssub.s32 2048, 2048
          %209 = vsyncadd [#allocation11], %s208
          %s210 = sshll.u32 [#allocation10], 4
          %s211 = int_to_ptr.vmem [resolvable:$true] %s210
          %216 = dma.hbm_to_vmem [thread:$0]  %s4, 2048, %s211, [#allocation11], 128, 128, 8
        $region32: #{tpu_custom_call.1} parent=11 // pred_fallthru
          _
      $region12: #{tpu_custom_call.1} parent=5 // pred_fallthru
        _
      %p217 = scmp.lt.s32.totalorder %s18, 2
      // Predicated region
      $region33: #{tpu_custom_call.1} parent=5 // pred_check
        %p218 = pneg %p217
      $region34: #{tpu_custom_call.1} parent=5 // pred_check_branch
        %220 = sbr.rel (%p218) target = $region36
      $region35: #{tpu_custom_call.1} parent=5 // pred_region
        _
      $region36: #{tpu_custom_call.1} parent=5 // pred_fallthru
        _
      %p221 = scmp.le.s32.totalorder 1, %s18
      %p222 = scmp.lt.s32.totalorder %s18, 3
      %p223 = pnand %p221, %p222
      %p224 = pneg %p223
      // Predicated region
      $region37: #{tpu_custom_call.1} parent=5 // pred_check
        _
      $region38: #{tpu_custom_call.1} parent=5 // pred_check_branch
        %226 = sbr.rel (%p223) target = $region40
      $region39: #{tpu_custom_call.1} parent=5 // pred_region
        %s227 = ssub.s32 %s18, 1
        // Predicated region
        $region41: #{tpu_custom_call.1} parent=39 // pred_check
          %p228 = pneg %p39
        $region42: #{tpu_custom_call.1} parent=39 // pred_check_branch
          %230 = sbr.rel (%p228) target = $region44
        $region43: #{tpu_custom_call.1} parent=39 // pred_region
          %231 = dma.done [#allocation5], 32
        $region44: #{tpu_custom_call.1} parent=39 // pred_fallthru
          _
        // Predicated region
        $region45: #{tpu_custom_call.1} parent=39 // pred_check
          %p232 = pneg %p60
        $region46: #{tpu_custom_call.1} parent=39 // pred_check_branch
          %234 = sbr.rel (%p232) target = $region48
        $region47: #{tpu_custom_call.1} parent=39 // pred_region
          %235 = dma.done [#allocation7], 16
        $region48: #{tpu_custom_call.1} parent=39 // pred_fallthru
          _
        // Predicated region
        $region49: #{tpu_custom_call.1} parent=39 // pred_check
          %p236 = pneg %p81
        $region50: #{tpu_custom_call.1} parent=39 // pred_check_branch
          %238 = sbr.rel (%p236) target = $region52
        $region51: #{tpu_custom_call.1} parent=39 // pred_region
          %239 = dma.done [#allocation7], 16
        $region52: #{tpu_custom_call.1} parent=39 // pred_fallthru
          _
        // Predicated region
        $region53: #{tpu_custom_call.1} parent=39 // pred_check
          %p240 = pneg %p102
        $region54: #{tpu_custom_call.1} parent=39 // pred_check_branch
          %242 = sbr.rel (%p240) target = $region56
        $region55: #{tpu_custom_call.1} parent=39 // pred_region
          %243 = dma.done [#allocation3], 65536
        $region56: #{tpu_custom_call.1} parent=39 // pred_fallthru
          _
        // Predicated region
        $region57: #{tpu_custom_call.1} parent=39 // pred_check
          %p244 = pneg %p123
        $region58: #{tpu_custom_call.1} parent=39 // pred_check_branch
          %246 = sbr.rel (%p244) target = $region60
        $region59: #{tpu_custom_call.1} parent=39 // pred_region
          %247 = dma.done [#allocation11], 2048
        $region60: #{tpu_custom_call.1} parent=39 // pred_fallthru
          _
        %248 = sfence
        %p249 = pneg %p39
        %p250 = pneg %p36
        %p251 = pneg %p60
        %p252 = pneg %p57
        %p253 = pneg %p81
        %p254 = pneg %p78
        %p255 = pneg %p102
        %p256 = pneg %p99
        %p257 = pneg %p123
        %p258 = pneg %p120
        %p259 = pneg %p149
        %p260 = pneg %p146
        %s261 = sand.u32 %s136, 1
        %s262 = scalar_lea.sflag [#allocation4], %s261
        %s263 = sand.u32 %s136, 1
        %s264 = smul.addr %s263, 384
        %s265 = scalar_lea.vmem [#allocation12], %s264
        %s266 = smul.u32 %s23, 128
        %s267 = sld [smem:[#allocation2 + %s266]]
        %s268 = sadd.s32 %s266, 1
        %s269 = sld [smem:[#allocation2 + %s268]]
        %s270 = sadd.s32 %s266, 2
        %s271 = sld [smem:[#allocation2 + %s270]]
        %s272 = sadd.s32 %s266, 3
        %s273 = sld [smem:[#allocation2 + %s272]]
        %s274 = sadd.s32 %s266, 4
        %s275 = sld [smem:[#allocation2 + %s274]]
        %s276 = sadd.s32 %s266, 5
        %s277 = sld [smem:[#allocation2 + %s276]]
        %s278 = sadd.s32 %s266, 6
        %s279 = sld [smem:[#allocation2 + %s278]]
        %s280 = sadd.s32 %s266, 7
        %s281 = sld [smem:[#allocation2 + %s280]]
        %s282 = sadd.s32 %s266, 8
        %s283 = sld [smem:[#allocation2 + %s282]]
        %s284 = sadd.s32 %s266, 9
        %s285 = sld [smem:[#allocation2 + %s284]]
        %s286 = sadd.s32 %s266, 10
        %s287 = sld [smem:[#allocation2 + %s286]]
        %s288 = sadd.s32 %s266, 11
        %s289 = sld [smem:[#allocation2 + %s288]]
        %s290 = sadd.s32 %s266, 12
        %s291 = sld [smem:[#allocation2 + %s290]]
        %s292 = sadd.s32 %s266, 13
        %s293 = sld [smem:[#allocation2 + %s292]]
        %s294 = sadd.s32 %s266, 14
        %s295 = sld [smem:[#allocation2 + %s294]]
        %s296 = sadd.s32 %s266, 15
        %s297 = sld [smem:[#allocation2 + %s296]]
        %s298 = sadd.s32 %s266, 16
        %s299 = sld [smem:[#allocation2 + %s298]]
        %s300 = sadd.s32 %s266, 17
        %s301 = sld [smem:[#allocation2 + %s300]]
        %s302 = sadd.s32 %s266, 18
        %s303 = sld [smem:[#allocation2 + %s302]]
        %s304 = sadd.s32 %s266, 19
        %s305 = sld [smem:[#allocation2 + %s304]]
        %s306 = sadd.s32 %s266, 20
        %s307 = sld [smem:[#allocation2 + %s306]]
        %s308 = sadd.s32 %s266, 21
        %s309 = sld [smem:[#allocation2 + %s308]]
        %s310 = sadd.s32 %s266, 22
        %s311 = sld [smem:[#allocation2 + %s310]]
        %s312 = sadd.s32 %s266, 23
        %s313 = sld [smem:[#allocation2 + %s312]]
        %s314 = sadd.s32 %s266, 24
        %s315 = sld [smem:[#allocation2 + %s314]]
        %s316 = sadd.s32 %s266, 25
        %s317 = sld [smem:[#allocation2 + %s316]]
        %s318 = sadd.s32 %s266, 26
        %s319 = sld [smem:[#allocation2 + %s318]]
        %s320 = sadd.s32 %s266, 27
        %s321 = sld [smem:[#allocation2 + %s320]]
        %s322 = sadd.s32 %s266, 28
        %s323 = sld [smem:[#allocation2 + %s322]]
        %s324 = sadd.s32 %s266, 29
        %s325 = sld [smem:[#allocation2 + %s324]]
        %s326 = sadd.s32 %s266, 30
        %s327 = sld [smem:[#allocation2 + %s326]]
        %s328 = sadd.s32 %s266, 31
        %s329 = sld [smem:[#allocation2 + %s328]]
        %s330 = sld [smem:[#allocation6]]
        %s331 = sld [smem:[#allocation6 + $0x1]]
        %s332 = sld [smem:[#allocation6 + $0x2]]
        %s333 = sld [smem:[#allocation6 + $0x3]]
        %s334 = sld [smem:[#allocation6 + $0x4]]
        %s335 = sld [smem:[#allocation6 + $0x5]]
        %s336 = sld [smem:[#allocation6 + $0x6]]
        %s337 = sld [smem:[#allocation6 + $0x7]]
        %s338 = sld [smem:[#allocation6 + $0x8]]
        %s339 = sld [smem:[#allocation6 + $0x9]]
        %s340 = sld [smem:[#allocation6 + $0xa]]
        %s341 = sld [smem:[#allocation6 + $0xb]]
        %s342 = sld [smem:[#allocation6 + $0xc]]
        %s343 = sld [smem:[#allocation6 + $0xd]]
        %s344 = sld [smem:[#allocation6 + $0xe]]
        %s345 = sld [smem:[#allocation6 + $0xf]]
        %s346 = sld [smem:[#allocation6 + $0x10]]
        %s347 = sld [smem:[#allocation6 + $0x11]]
        %s348 = sld [smem:[#allocation6 + $0x12]]
        %s349 = sld [smem:[#allocation6 + $0x13]]
        %s350 = sld [smem:[#allocation6 + $0x14]]
        %s351 = sld [smem:[#allocation6 + $0x15]]
        %s352 = sld [smem:[#allocation6 + $0x16]]
        %s353 = sld [smem:[#allocation6 + $0x17]]
        %s354 = sld [smem:[#allocation6 + $0x18]]
        %s355 = sld [smem:[#allocation6 + $0x19]]
        %s356 = sld [smem:[#allocation6 + $0x1a]]
        %s357 = sld [smem:[#allocation8]]
        %s358 = sld [smem:[#allocation8 + $0x1]]
        %s359 = sld [smem:[#allocation8 + $0x2]]
        %v360 = vld [vmem:[#allocation10] sm:$0xff]
        %v361 = vld [vmem:[#allocation10 + $0x8] sm:$0xff]
        %v362 = vld [vmem:[#allocation10 + $0x10] sm:$0xff]
        %v363 = vld [vmem:[#allocation10 + $0x18] sm:$0xff]
        %v364 = vld [vmem:[#allocation10 + $0x20] sm:$0xff]
        %v365 = vld [vmem:[#allocation10 + $0x28] sm:$0xff]
        %v366 = vld [vmem:[#allocation10 + $0x30] sm:$0xff]
        %v367 = vld [vmem:[#allocation10 + $0x38] sm:$0xff]
        %v368 = vld [vmem:[#allocation10 + $0x40] sm:$0xff]
        %v369 = vld [vmem:[#allocation10 + $0x48] sm:$0xff]
        %v370 = vld [vmem:[#allocation10 + $0x50] sm:$0xff]
        %v371 = vld [vmem:[#allocation10 + $0x58] sm:$0xff]
        %v372 = vld [vmem:[#allocation10 + $0x60] sm:$0xff]
        %v373 = vld [vmem:[#allocation10 + $0x68] sm:$0xff]
        %v374 = vld [vmem:[#allocation10 + $0x70] sm:$0xff]
        %v375 = vld [vmem:[#allocation10 + $0x78] sm:$0xff]
        %v376 = vld [vmem:[#allocation9] sm:$0xff]
        %v377 = vld [vmem:[#allocation9 + $0x8] sm:$0xff]
        %v378 = vld [vmem:[#allocation9 + $0x10] sm:$0xff]
        %v379 = vld [vmem:[#allocation9 + $0x18] sm:$0xff]
        %v380 = vld [vmem:[#allocation9 + $0x20] sm:$0xff]
        %v381 = vld [vmem:[#allocation9 + $0x28] sm:$0xff]
        %v382 = vld [vmem:[#allocation9 + $0x30] sm:$0xff]
        %v383 = vld [vmem:[#allocation9 + $0x38] sm:$0xff]
        %v384 = vld [vmem:[#allocation9 + $0x40] sm:$0xff]
        %v385 = vld [vmem:[#allocation9 + $0x48] sm:$0xff]
        %v386 = vld [vmem:[#allocation9 + $0x50] sm:$0xff]
        %v387 = vld [vmem:[#allocation9 + $0x58] sm:$0xff]
        %v388 = vld [vmem:[#allocation9 + $0x60] sm:$0xff]
        %v389 = vld [vmem:[#allocation9 + $0x68] sm:$0xff]
        %v390 = vld [vmem:[#allocation9 + $0x70] sm:$0xff]
        %v391 = vld [vmem:[#allocation9 + $0x78] sm:$0xff]
        %v392 = vstv %s267
        %v393 = vmul.f32 %v392, %v376
        %v394 = vmul.f32 %v392, %v377
        %v395 = vmul.f32 %v392, %v378
        %v396 = vmul.f32 %v392, %v379
        %v397 = vmul.f32 %v392, %v380
        %v398 = vmul.f32 %v392, %v381
        %v399 = vmul.f32 %v392, %v382
        %v400 = vmul.f32 %v392, %v383
        %v401 = vmul.f32 %v392, %v384
        %v402 = vmul.f32 %v392, %v385
        %v403 = vmul.f32 %v392, %v386
        %v404 = vmul.f32 %v392, %v387
        %v405 = vmul.f32 %v392, %v388
        %v406 = vmul.f32 %v392, %v389
        %v407 = vmul.f32 %v392, %v390
        %v408 = vmul.f32 %v392, %v391
        %v409 = vadd.f32 %v360, %v393
        %v410 = vadd.f32 %v361, %v394
        %v411 = vadd.f32 %v362, %v395
        %v412 = vadd.f32 %v363, %v396
        %v413 = vadd.f32 %v364, %v397
        %v414 = vadd.f32 %v365, %v398
        %v415 = vadd.f32 %v366, %v399
        %v416 = vadd.f32 %v367, %v400
        %v417 = vadd.f32 %v368, %v401
        %v418 = vadd.f32 %v369, %v402
        %v419 = vadd.f32 %v370, %v403
        %v420 = vadd.f32 %v371, %v404
        %v421 = vadd.f32 %v372, %v405
        %v422 = vadd.f32 %v373, %v406
        %v423 = vadd.f32 %v374, %v407
        %v424 = vadd.f32 %v375, %v408
        %s425 = scalar_lea.vmem [#allocation9], 128
        %v426 = vld [vmem:[%s425] sm:$0xff]
        %v427 = vld [vmem:[%s425 + $0x8] sm:$0xff]
        %v428 = vld [vmem:[%s425 + $0x10] sm:$0xff]
        %v429 = vld [vmem:[%s425 + $0x18] sm:$0xff]
        %v430 = vld [vmem:[%s425 + $0x20] sm:$0xff]
        %v431 = vld [vmem:[%s425 + $0x28] sm:$0xff]
        %v432 = vld [vmem:[%s425 + $0x30] sm:$0xff]
        %v433 = vld [vmem:[%s425 + $0x38] sm:$0xff]
        %v434 = vld [vmem:[%s425 + $0x40] sm:$0xff]
        %v435 = vld [vmem:[%s425 + $0x48] sm:$0xff]
        %v436 = vld [vmem:[%s425 + $0x50] sm:$0xff]
        %v437 = vld [vmem:[%s425 + $0x58] sm:$0xff]
        %v438 = vld [vmem:[%s425 + $0x60] sm:$0xff]
        %v439 = vld [vmem:[%s425 + $0x68] sm:$0xff]
        %v440 = vld [vmem:[%s425 + $0x70] sm:$0xff]
        %v441 = vld [vmem:[%s425 + $0x78] sm:$0xff]
        %v442 = vstv %s269
        %v443 = vmul.f32 %v442, %v426
        %v444 = vmul.f32 %v442, %v427
        %v445 = vmul.f32 %v442, %v428
        %v446 = vmul.f32 %v442, %v429
        %v447 = vmul.f32 %v442, %v430
        %v448 = vmul.f32 %v442, %v431
        %v449 = vmul.f32 %v442, %v432
        %v450 = vmul.f32 %v442, %v433
        %v451 = vmul.f32 %v442, %v434
        %v452 = vmul.f32 %v442, %v435
        %v453 = vmul.f32 %v442, %v436
        %v454 = vmul.f32 %v442, %v437
        %v455 = vmul.f32 %v442, %v438
        %v456 = vmul.f32 %v442, %v439
        %v457 = vmul.f32 %v442, %v440
        %v458 = vmul.f32 %v442, %v441
        %v459 = vadd.f32 %v409, %v443
        %v460 = vadd.f32 %v410, %v444
        %v461 = vadd.f32 %v411, %v445
        %v462 = vadd.f32 %v412, %v446
        %v463 = vadd.f32 %v413, %v447
        %v464 = vadd.f32 %v414, %v448
        %v465 = vadd.f32 %v415, %v449
        %v466 = vadd.f32 %v416, %v450
        %v467 = vadd.f32 %v417, %v451
        %v468 = vadd.f32 %v418, %v452
        %v469 = vadd.f32 %v419, %v453
        %v470 = vadd.f32 %v420, %v454
        %v471 = vadd.f32 %v421, %v455
        %v472 = vadd.f32 %v422, %v456
        %v473 = vadd.f32 %v423, %v457
        %v474 = vadd.f32 %v424, %v458
        %s475 = scalar_lea.vmem [#allocation9], 256
        %v476 = vld [vmem:[%s475] sm:$0xff]
        %v477 = vld [vmem:[%s475 + $0x8] sm:$0xff]
        %v478 = vld [vmem:[%s475 + $0x10] sm:$0xff]
        %v479 = vld [vmem:[%s475 + $0x18] sm:$0xff]
        %v480 = vld [vmem:[%s475 + $0x20] sm:$0xff]
        %v481 = vld [vmem:[%s475 + $0x28] sm:$0xff]
        %v482 = vld [vmem:[%s475 + $0x30] sm:$0xff]
        %v483 = vld [vmem:[%s475 + $0x38] sm:$0xff]
        %v484 = vld [vmem:[%s475 + $0x40] sm:$0xff]
        %v485 = vld [vmem:[%s475 + $0x48] sm:$0xff]
        %v486 = vld [vmem:[%s475 + $0x50] sm:$0xff]
        %v487 = vld [vmem:[%s475 + $0x58] sm:$0xff]
        %v488 = vld [vmem:[%s475 + $0x60] sm:$0xff]
        %v489 = vld [vmem:[%s475 + $0x68] sm:$0xff]
        %v490 = vld [vmem:[%s475 + $0x70] sm:$0xff]
        %v491 = vld [vmem:[%s475 + $0x78] sm:$0xff]
        %v492 = vstv %s271
        %v493 = vmul.f32 %v492, %v476
        %v494 = vmul.f32 %v492, %v477
        %v495 = vmul.f32 %v492, %v478
        %v496 = vmul.f32 %v492, %v479
        %v497 = vmul.f32 %v492, %v480
        %v498 = vmul.f32 %v492, %v481
        %v499 = vmul.f32 %v492, %v482
        %v500 = vmul.f32 %v492, %v483
        %v501 = vmul.f32 %v492, %v484
        %v502 = vmul.f32 %v492, %v485
        %v503 = vmul.f32 %v492, %v486
        %v504 = vmul.f32 %v492, %v487
        %v505 = vmul.f32 %v492, %v488
        %v506 = vmul.f32 %v492, %v489
        %v507 = vmul.f32 %v492, %v490
        %v508 = vmul.f32 %v492, %v491
        %v509 = vadd.f32 %v459, %v493
        %v510 = vadd.f32 %v460, %v494
        %v511 = vadd.f32 %v461, %v495
        %v512 = vadd.f32 %v462, %v496
        %v513 = vadd.f32 %v463, %v497
        %v514 = vadd.f32 %v464, %v498
        %v515 = vadd.f32 %v465, %v499
        %v516 = vadd.f32 %v466, %v500
        %v517 = vadd.f32 %v467, %v501
        %v518 = vadd.f32 %v468, %v502
        %v519 = vadd.f32 %v469, %v503
        %v520 = vadd.f32 %v470, %v504
        %v521 = vadd.f32 %v471, %v505
        %v522 = vadd.f32 %v472, %v506
        %v523 = vadd.f32 %v473, %v507
        %v524 = vadd.f32 %v474, %v508
        %s525 = scalar_lea.vmem [#allocation9], 384
        %v526 = vld [vmem:[%s525] sm:$0xff]
        %v527 = vld [vmem:[%s525 + $0x8] sm:$0xff]
        %v528 = vld [vmem:[%s525 + $0x10] sm:$0xff]
        %v529 = vld [vmem:[%s525 + $0x18] sm:$0xff]
        %v530 = vld [vmem:[%s525 + $0x20] sm:$0xff]
        %v531 = vld [vmem:[%s525 + $0x28] sm:$0xff]
        %v532 = vld [vmem:[%s525 + $0x30] sm:$0xff]
        %v533 = vld [vmem:[%s525 + $0x38] sm:$0xff]
        %v534 = vld [vmem:[%s525 + $0x40] sm:$0xff]
        %v535 = vld [vmem:[%s525 + $0x48] sm:$0xff]
        %v536 = vld [vmem:[%s525 + $0x50] sm:$0xff]
        %v537 = vld [vmem:[%s525 + $0x58] sm:$0xff]
        %v538 = vld [vmem:[%s525 + $0x60] sm:$0xff]
        %v539 = vld [vmem:[%s525 + $0x68] sm:$0xff]
        %v540 = vld [vmem:[%s525 + $0x70] sm:$0xff]
        %v541 = vld [vmem:[%s525 + $0x78] sm:$0xff]
        %v542 = vstv %s273
        %v543 = vmul.f32 %v542, %v526
        %v544 = vmul.f32 %v542, %v527
        %v545 = vmul.f32 %v542, %v528
        %v546 = vmul.f32 %v542, %v529
        %v547 = vmul.f32 %v542, %v530
        %v548 = vmul.f32 %v542, %v531
        %v549 = vmul.f32 %v542, %v532
        %v550 = vmul.f32 %v542, %v533
        %v551 = vmul.f32 %v542, %v534
        %v552 = vmul.f32 %v542, %v535
        %v553 = vmul.f32 %v542, %v536
        %v554 = vmul.f32 %v542, %v537
        %v555 = vmul.f32 %v542, %v538
        %v556 = vmul.f32 %v542, %v539
        %v557 = vmul.f32 %v542, %v540
        %v558 = vmul.f32 %v542, %v541
        %v559 = vadd.f32 %v509, %v543
        %v560 = vadd.f32 %v510, %v544
        %v561 = vadd.f32 %v511, %v545
        %v562 = vadd.f32 %v512, %v546
        %v563 = vadd.f32 %v513, %v547
        %v564 = vadd.f32 %v514, %v548
        %v565 = vadd.f32 %v515, %v549
        %v566 = vadd.f32 %v516, %v550
        %v567 = vadd.f32 %v517, %v551
        %v568 = vadd.f32 %v518, %v552
        %v569 = vadd.f32 %v519, %v553
        %v570 = vadd.f32 %v520, %v554
        %v571 = vadd.f32 %v521, %v555
        %v572 = vadd.f32 %v522, %v556
        %v573 = vadd.f32 %v523, %v557
        %v574 = vadd.f32 %v524, %v558
        %s575 = scalar_lea.vmem [#allocation9], 512
        %v576 = vld [vmem:[%s575] sm:$0xff]
        %v577 = vld [vmem:[%s575 + $0x8] sm:$0xff]
        %v578 = vld [vmem:[%s575 + $0x10] sm:$0xff]
        %v579 = vld [vmem:[%s575 + $0x18] sm:$0xff]
        %v580 = vld [vmem:[%s575 + $0x20] sm:$0xff]
        %v581 = vld [vmem:[%s575 + $0x28] sm:$0xff]
        %v582 = vld [vmem:[%s575 + $0x30] sm:$0xff]
        %v583 = vld [vmem:[%s575 + $0x38] sm:$0xff]
        %v584 = vld [vmem:[%s575 + $0x40] sm:$0xff]
        %v585 = vld [vmem:[%s575 + $0x48] sm:$0xff]
        %v586 = vld [vmem:[%s575 + $0x50] sm:$0xff]
        %v587 = vld [vmem:[%s575 + $0x58] sm:$0xff]
        %v588 = vld [vmem:[%s575 + $0x60] sm:$0xff]
        %v589 = vld [vmem:[%s575 + $0x68] sm:$0xff]
        %v590 = vld [vmem:[%s575 + $0x70] sm:$0xff]
        %v591 = vld [vmem:[%s575 + $0x78] sm:$0xff]
        %v592 = vstv %s275
        %v593 = vmul.f32 %v592, %v576
        %v594 = vmul.f32 %v592, %v577
        %v595 = vmul.f32 %v592, %v578
        %v596 = vmul.f32 %v592, %v579
        %v597 = vmul.f32 %v592, %v580
        %v598 = vmul.f32 %v592, %v581
        %v599 = vmul.f32 %v592, %v582
        %v600 = vmul.f32 %v592, %v583
        %v601 = vmul.f32 %v592, %v584
        %v602 = vmul.f32 %v592, %v585
        %v603 = vmul.f32 %v592, %v586
        %v604 = vmul.f32 %v592, %v587
        %v605 = vmul.f32 %v592, %v588
        %v606 = vmul.f32 %v592, %v589
        %v607 = vmul.f32 %v592, %v590
        %v608 = vmul.f32 %v592, %v591
        %v609 = vadd.f32 %v559, %v593
        %v610 = vadd.f32 %v560, %v594
        %v611 = vadd.f32 %v561, %v595
        %v612 = vadd.f32 %v562, %v596
        %v613 = vadd.f32 %v563, %v597
        %v614 = vadd.f32 %v564, %v598
        %v615 = vadd.f32 %v565, %v599
        %v616 = vadd.f32 %v566, %v600
        %v617 = vadd.f32 %v567, %v601
        %v618 = vadd.f32 %v568, %v602
        %v619 = vadd.f32 %v569, %v603
        %v620 = vadd.f32 %v570, %v604
        %v621 = vadd.f32 %v571, %v605
        %v622 = vadd.f32 %v572, %v606
        %v623 = vadd.f32 %v573, %v607
        %v624 = vadd.f32 %v574, %v608
        %s625 = scalar_lea.vmem [#allocation9], 640
        %v626 = vld [vmem:[%s625] sm:$0xff]
        %v627 = vld [vmem:[%s625 + $0x8] sm:$0xff]
        %v628 = vld [vmem:[%s625 + $0x10] sm:$0xff]
        %v629 = vld [vmem:[%s625 + $0x18] sm:$0xff]
        %v630 = vld [vmem:[%s625 + $0x20] sm:$0xff]
        %v631 = vld [vmem:[%s625 + $0x28] sm:$0xff]
        %v632 = vld [vmem:[%s625 + $0x30] sm:$0xff]
        %v633 = vld [vmem:[%s625 + $0x38] sm:$0xff]
        %v634 = vld [vmem:[%s625 + $0x40] sm:$0xff]
        %v635 = vld [vmem:[%s625 + $0x48] sm:$0xff]
        %v636 = vld [vmem:[%s625 + $0x50] sm:$0xff]
        %v637 = vld [vmem:[%s625 + $0x58] sm:$0xff]
        %v638 = vld [vmem:[%s625 + $0x60] sm:$0xff]
        %v639 = vld [vmem:[%s625 + $0x68] sm:$0xff]
        %v640 = vld [vmem:[%s625 + $0x70] sm:$0xff]
        %v641 = vld [vmem:[%s625 + $0x78] sm:$0xff]
        %v642 = vstv %s277
        %v643 = vmul.f32 %v642, %v626
        %v644 = vmul.f32 %v642, %v627
        %v645 = vmul.f32 %v642, %v628
        %v646 = vmul.f32 %v642, %v629
        %v647 = vmul.f32 %v642, %v630
        %v648 = vmul.f32 %v642, %v631
        %v649 = vmul.f32 %v642, %v632
        %v650 = vmul.f32 %v642, %v633
        %v651 = vmul.f32 %v642, %v634
        %v652 = vmul.f32 %v642, %v635
        %v653 = vmul.f32 %v642, %v636
        %v654 = vmul.f32 %v642, %v637
        %v655 = vmul.f32 %v642, %v638
        %v656 = vmul.f32 %v642, %v639
        %v657 = vmul.f32 %v642, %v640
        %v658 = vmul.f32 %v642, %v641
        %v659 = vadd.f32 %v609, %v643
        %v660 = vadd.f32 %v610, %v644
        %v661 = vadd.f32 %v611, %v645
        %v662 = vadd.f32 %v612, %v646
        %v663 = vadd.f32 %v613, %v647
        %v664 = vadd.f32 %v614, %v648
        %v665 = vadd.f32 %v615, %v649
        %v666 = vadd.f32 %v616, %v650
        %v667 = vadd.f32 %v617, %v651
        %v668 = vadd.f32 %v618, %v652
        %v669 = vadd.f32 %v619, %v653
        %v670 = vadd.f32 %v620, %v654
        %v671 = vadd.f32 %v621, %v655
        %v672 = vadd.f32 %v622, %v656
        %v673 = vadd.f32 %v623, %v657
        %v674 = vadd.f32 %v624, %v658
        %s675 = scalar_lea.vmem [#allocation9], 768
        %v676 = vld [vmem:[%s675] sm:$0xff]
        %v677 = vld [vmem:[%s675 + $0x8] sm:$0xff]
        %v678 = vld [vmem:[%s675 + $0x10] sm:$0xff]
        %v679 = vld [vmem:[%s675 + $0x18] sm:$0xff]
        %v680 = vld [vmem:[%s675 + $0x20] sm:$0xff]
        %v681 = vld [vmem:[%s675 + $0x28] sm:$0xff]
        %v682 = vld [vmem:[%s675 + $0x30] sm:$0xff]
        %v683 = vld [vmem:[%s675 + $0x38] sm:$0xff]
        %v684 = vld [vmem:[%s675 + $0x40] sm:$0xff]
        %v685 = vld [vmem:[%s675 + $0x48] sm:$0xff]
        %v686 = vld [vmem:[%s675 + $0x50] sm:$0xff]
        %v687 = vld [vmem:[%s675 + $0x58] sm:$0xff]
        %v688 = vld [vmem:[%s675 + $0x60] sm:$0xff]
        %v689 = vld [vmem:[%s675 + $0x68] sm:$0xff]
        %v690 = vld [vmem:[%s675 + $0x70] sm:$0xff]
        %v691 = vld [vmem:[%s675 + $0x78] sm:$0xff]
        %v692 = vstv %s279
        %v693 = vmul.f32 %v692, %v676
        %v694 = vmul.f32 %v692, %v677
        %v695 = vmul.f32 %v692, %v678
        %v696 = vmul.f32 %v692, %v679
        %v697 = vmul.f32 %v692, %v680
        %v698 = vmul.f32 %v692, %v681
        %v699 = vmul.f32 %v692, %v682
        %v700 = vmul.f32 %v692, %v683
        %v701 = vmul.f32 %v692, %v684
        %v702 = vmul.f32 %v692, %v685
        %v703 = vmul.f32 %v692, %v686
        %v704 = vmul.f32 %v692, %v687
        %v705 = vmul.f32 %v692, %v688
        %v706 = vmul.f32 %v692, %v689
        %v707 = vmul.f32 %v692, %v690
        %v708 = vmul.f32 %v692, %v691
        %v709 = vadd.f32 %v659, %v693
        %v710 = vadd.f32 %v660, %v694
        %v711 = vadd.f32 %v661, %v695
        %v712 = vadd.f32 %v662, %v696
        %v713 = vadd.f32 %v663, %v697
        %v714 = vadd.f32 %v664, %v698
        %v715 = vadd.f32 %v665, %v699
        %v716 = vadd.f32 %v666, %v700
        %v717 = vadd.f32 %v667, %v701
        %v718 = vadd.f32 %v668, %v702
        %v719 = vadd.f32 %v669, %v703
        %v720 = vadd.f32 %v670, %v704
        %v721 = vadd.f32 %v671, %v705
        %v722 = vadd.f32 %v672, %v706
        %v723 = vadd.f32 %v673, %v707
        %v724 = vadd.f32 %v674, %v708
        %s725 = scalar_lea.vmem [#allocation9], 896
        %v726 = vld [vmem:[%s725] sm:$0xff]
        %v727 = vld [vmem:[%s725 + $0x8] sm:$0xff]
        %v728 = vld [vmem:[%s725 + $0x10] sm:$0xff]
        %v729 = vld [vmem:[%s725 + $0x18] sm:$0xff]
        %v730 = vld [vmem:[%s725 + $0x20] sm:$0xff]
        %v731 = vld [vmem:[%s725 + $0x28] sm:$0xff]
        %v732 = vld [vmem:[%s725 + $0x30] sm:$0xff]
        %v733 = vld [vmem:[%s725 + $0x38] sm:$0xff]
        %v734 = vld [vmem:[%s725 + $0x40] sm:$0xff]
        %v735 = vld [vmem:[%s725 + $0x48] sm:$0xff]
        %v736 = vld [vmem:[%s725 + $0x50] sm:$0xff]
        %v737 = vld [vmem:[%s725 + $0x58] sm:$0xff]
        %v738 = vld [vmem:[%s725 + $0x60] sm:$0xff]
        %v739 = vld [vmem:[%s725 + $0x68] sm:$0xff]
        %v740 = vld [vmem:[%s725 + $0x70] sm:$0xff]
        %v741 = vld [vmem:[%s725 + $0x78] sm:$0xff]
        %v742 = vstv %s281
        %v743 = vmul.f32 %v742, %v726
        %v744 = vmul.f32 %v742, %v727
        %v745 = vmul.f32 %v742, %v728
        %v746 = vmul.f32 %v742, %v729
        %v747 = vmul.f32 %v742, %v730
        %v748 = vmul.f32 %v742, %v731
        %v749 = vmul.f32 %v742, %v732
        %v750 = vmul.f32 %v742, %v733
        %v751 = vmul.f32 %v742, %v734
        %v752 = vmul.f32 %v742, %v735
        %v753 = vmul.f32 %v742, %v736
        %v754 = vmul.f32 %v742, %v737
        %v755 = vmul.f32 %v742, %v738
        %v756 = vmul.f32 %v742, %v739
        %v757 = vmul.f32 %v742, %v740
        %v758 = vmul.f32 %v742, %v741
        %v759 = vadd.f32 %v709, %v743
        %v760 = vadd.f32 %v710, %v744
        %v761 = vadd.f32 %v711, %v745
        %v762 = vadd.f32 %v712, %v746
        %v763 = vadd.f32 %v713, %v747
        %v764 = vadd.f32 %v714, %v748
        %v765 = vadd.f32 %v715, %v749
        %v766 = vadd.f32 %v716, %v750
        %v767 = vadd.f32 %v717, %v751
        %v768 = vadd.f32 %v718, %v752
        %v769 = vadd.f32 %v719, %v753
        %v770 = vadd.f32 %v720, %v754
        %v771 = vadd.f32 %v721, %v755
        %v772 = vadd.f32 %v722, %v756
        %v773 = vadd.f32 %v723, %v757
        %v774 = vadd.f32 %v724, %v758
        %s775 = scalar_lea.vmem [#allocation9], 1024
        %v776 = vld [vmem:[%s775] sm:$0xff]
        %v777 = vld [vmem:[%s775 + $0x8] sm:$0xff]
        %v778 = vld [vmem:[%s775 + $0x10] sm:$0xff]
        %v779 = vld [vmem:[%s775 + $0x18] sm:$0xff]
        %v780 = vld [vmem:[%s775 + $0x20] sm:$0xff]
        %v781 = vld [vmem:[%s775 + $0x28] sm:$0xff]
        %v782 = vld [vmem:[%s775 + $0x30] sm:$0xff]
        %v783 = vld [vmem:[%s775 + $0x38] sm:$0xff]
        %v784 = vld [vmem:[%s775 + $0x40] sm:$0xff]
        %v785 = vld [vmem:[%s775 + $0x48] sm:$0xff]
        %v786 = vld [vmem:[%s775 + $0x50] sm:$0xff]
        %v787 = vld [vmem:[%s775 + $0x58] sm:$0xff]
        %v788 = vld [vmem:[%s775 + $0x60] sm:$0xff]
        %v789 = vld [vmem:[%s775 + $0x68] sm:$0xff]
        %v790 = vld [vmem:[%s775 + $0x70] sm:$0xff]
        %v791 = vld [vmem:[%s775 + $0x78] sm:$0xff]
        %v792 = vstv %s283
        %v793 = vmul.f32 %v792, %v776
        %v794 = vmul.f32 %v792, %v777
        %v795 = vmul.f32 %v792, %v778
        %v796 = vmul.f32 %v792, %v779
        %v797 = vmul.f32 %v792, %v780
        %v798 = vmul.f32 %v792, %v781
        %v799 = vmul.f32 %v792, %v782
        %v800 = vmul.f32 %v792, %v783
        %v801 = vmul.f32 %v792, %v784
        %v802 = vmul.f32 %v792, %v785
        %v803 = vmul.f32 %v792, %v786
        %v804 = vmul.f32 %v792, %v787
        %v805 = vmul.f32 %v792, %v788
        %v806 = vmul.f32 %v792, %v789
        %v807 = vmul.f32 %v792, %v790
        %v808 = vmul.f32 %v792, %v791
        %v809 = vadd.f32 %v759, %v793
        %v810 = vadd.f32 %v760, %v794
        %v811 = vadd.f32 %v761, %v795
        %v812 = vadd.f32 %v762, %v796
        %v813 = vadd.f32 %v763, %v797
        %v814 = vadd.f32 %v764, %v798
        %v815 = vadd.f32 %v765, %v799
        %v816 = vadd.f32 %v766, %v800
        %v817 = vadd.f32 %v767, %v801
        %v818 = vadd.f32 %v768, %v802
        %v819 = vadd.f32 %v769, %v803
        %v820 = vadd.f32 %v770, %v804
        %v821 = vadd.f32 %v771, %v805
        %v822 = vadd.f32 %v772, %v806
        %v823 = vadd.f32 %v773, %v807
        %v824 = vadd.f32 %v774, %v808
        %s825 = scalar_lea.vmem [#allocation9], 1152
        %v826 = vld [vmem:[%s825] sm:$0xff]
        %v827 = vld [vmem:[%s825 + $0x8] sm:$0xff]
        %v828 = vld [vmem:[%s825 + $0x10] sm:$0xff]
        %v829 = vld [vmem:[%s825 + $0x18] sm:$0xff]
        %v830 = vld [vmem:[%s825 + $0x20] sm:$0xff]
        %v831 = vld [vmem:[%s825 + $0x28] sm:$0xff]
        %v832 = vld [vmem:[%s825 + $0x30] sm:$0xff]
        %v833 = vld [vmem:[%s825 + $0x38] sm:$0xff]
        %v834 = vld [vmem:[%s825 + $0x40] sm:$0xff]
        %v835 = vld [vmem:[%s825 + $0x48] sm:$0xff]
        %v836 = vld [vmem:[%s825 + $0x50] sm:$0xff]
        %v837 = vld [vmem:[%s825 + $0x58] sm:$0xff]
        %v838 = vld [vmem:[%s825 + $0x60] sm:$0xff]
        %v839 = vld [vmem:[%s825 + $0x68] sm:$0xff]
        %v840 = vld [vmem:[%s825 + $0x70] sm:$0xff]
        %v841 = vld [vmem:[%s825 + $0x78] sm:$0xff]
        %v842 = vstv %s285
        %v843 = vmul.f32 %v842, %v826
        %v844 = vmul.f32 %v842, %v827
        %v845 = vmul.f32 %v842, %v828
        %v846 = vmul.f32 %v842, %v829
        %v847 = vmul.f32 %v842, %v830
        %v848 = vmul.f32 %v842, %v831
        %v849 = vmul.f32 %v842, %v832
        %v850 = vmul.f32 %v842, %v833
        %v851 = vmul.f32 %v842, %v834
        %v852 = vmul.f32 %v842, %v835
        %v853 = vmul.f32 %v842, %v836
        %v854 = vmul.f32 %v842, %v837
        %v855 = vmul.f32 %v842, %v838
        %v856 = vmul.f32 %v842, %v839
        %v857 = vmul.f32 %v842, %v840
        %v858 = vmul.f32 %v842, %v841
        %v859 = vadd.f32 %v809, %v843
        %v860 = vadd.f32 %v810, %v844
        %v861 = vadd.f32 %v811, %v845
        %v862 = vadd.f32 %v812, %v846
        %v863 = vadd.f32 %v813, %v847
        %v864 = vadd.f32 %v814, %v848
        %v865 = vadd.f32 %v815, %v849
        %v866 = vadd.f32 %v816, %v850
        %v867 = vadd.f32 %v817, %v851
        %v868 = vadd.f32 %v818, %v852
        %v869 = vadd.f32 %v819, %v853
        %v870 = vadd.f32 %v820, %v854
        %v871 = vadd.f32 %v821, %v855
        %v872 = vadd.f32 %v822, %v856
        %v873 = vadd.f32 %v823, %v857
        %v874 = vadd.f32 %v824, %v858
        %s875 = scalar_lea.vmem [#allocation9], 1280
        %v876 = vld [vmem:[%s875] sm:$0xff]
        %v877 = vld [vmem:[%s875 + $0x8] sm:$0xff]
        %v878 = vld [vmem:[%s875 + $0x10] sm:$0xff]
        %v879 = vld [vmem:[%s875 + $0x18] sm:$0xff]
        %v880 = vld [vmem:[%s875 + $0x20] sm:$0xff]
        %v881 = vld [vmem:[%s875 + $0x28] sm:$0xff]
        %v882 = vld [vmem:[%s875 + $0x30] sm:$0xff]
        %v883 = vld [vmem:[%s875 + $0x38] sm:$0xff]
        %v884 = vld [vmem:[%s875 + $0x40] sm:$0xff]
        %v885 = vld [vmem:[%s875 + $0x48] sm:$0xff]
        %v886 = vld [vmem:[%s875 + $0x50] sm:$0xff]
        %v887 = vld [vmem:[%s875 + $0x58] sm:$0xff]
        %v888 = vld [vmem:[%s875 + $0x60] sm:$0xff]
        %v889 = vld [vmem:[%s875 + $0x68] sm:$0xff]
        %v890 = vld [vmem:[%s875 + $0x70] sm:$0xff]
        %v891 = vld [vmem:[%s875 + $0x78] sm:$0xff]
        %v892 = vstv %s287
        %v893 = vmul.f32 %v892, %v876
        %v894 = vmul.f32 %v892, %v877
        %v895 = vmul.f32 %v892, %v878
        %v896 = vmul.f32 %v892, %v879
        %v897 = vmul.f32 %v892, %v880
        %v898 = vmul.f32 %v892, %v881
        %v899 = vmul.f32 %v892, %v882
        %v900 = vmul.f32 %v892, %v883
        %v901 = vmul.f32 %v892, %v884
        %v902 = vmul.f32 %v892, %v885
        %v903 = vmul.f32 %v892, %v886
        %v904 = vmul.f32 %v892, %v887
        %v905 = vmul.f32 %v892, %v888
        %v906 = vmul.f32 %v892, %v889
        %v907 = vmul.f32 %v892, %v890
        %v908 = vmul.f32 %v892, %v891
        %v909 = vadd.f32 %v859, %v893
        %v910 = vadd.f32 %v860, %v894
        %v911 = vadd.f32 %v861, %v895
        %v912 = vadd.f32 %v862, %v896
        %v913 = vadd.f32 %v863, %v897
        %v914 = vadd.f32 %v864, %v898
        %v915 = vadd.f32 %v865, %v899
        %v916 = vadd.f32 %v866, %v900
        %v917 = vadd.f32 %v867, %v901
        %v918 = vadd.f32 %v868, %v902
        %v919 = vadd.f32 %v869, %v903
        %v920 = vadd.f32 %v870, %v904
        %v921 = vadd.f32 %v871, %v905
        %v922 = vadd.f32 %v872, %v906
        %v923 = vadd.f32 %v873, %v907
        %v924 = vadd.f32 %v874, %v908
        %s925 = scalar_lea.vmem [#allocation9], 1408
        %v926 = vld [vmem:[%s925] sm:$0xff]
        %v927 = vld [vmem:[%s925 + $0x8] sm:$0xff]
        %v928 = vld [vmem:[%s925 + $0x10] sm:$0xff]
        %v929 = vld [vmem:[%s925 + $0x18] sm:$0xff]
        %v930 = vld [vmem:[%s925 + $0x20] sm:$0xff]
        %v931 = vld [vmem:[%s925 + $0x28] sm:$0xff]
        %v932 = vld [vmem:[%s925 + $0x30] sm:$0xff]
        %v933 = vld [vmem:[%s925 + $0x38] sm:$0xff]
        %v934 = vld [vmem:[%s925 + $0x40] sm:$0xff]
        %v935 = vld [vmem:[%s925 + $0x48] sm:$0xff]
        %v936 = vld [vmem:[%s925 + $0x50] sm:$0xff]
        %v937 = vld [vmem:[%s925 + $0x58] sm:$0xff]
        %v938 = vld [vmem:[%s925 + $0x60] sm:$0xff]
        %v939 = vld [vmem:[%s925 + $0x68] sm:$0xff]
        %v940 = vld [vmem:[%s925 + $0x70] sm:$0xff]
        %v941 = vld [vmem:[%s925 + $0x78] sm:$0xff]
        %v942 = vstv %s289
        %v943 = vmul.f32 %v942, %v926
        %v944 = vmul.f32 %v942, %v927
        %v945 = vmul.f32 %v942, %v928
        %v946 = vmul.f32 %v942, %v929
        %v947 = vmul.f32 %v942, %v930
        %v948 = vmul.f32 %v942, %v931
        %v949 = vmul.f32 %v942, %v932
        %v950 = vmul.f32 %v942, %v933
        %v951 = vmul.f32 %v942, %v934
        %v952 = vmul.f32 %v942, %v935
        %v953 = vmul.f32 %v942, %v936
        %v954 = vmul.f32 %v942, %v937
        %v955 = vmul.f32 %v942, %v938
        %v956 = vmul.f32 %v942, %v939
        %v957 = vmul.f32 %v942, %v940
        %v958 = vmul.f32 %v942, %v941
        %v959 = vadd.f32 %v909, %v943
        %v960 = vadd.f32 %v910, %v944
        %v961 = vadd.f32 %v911, %v945
        %v962 = vadd.f32 %v912, %v946
        %v963 = vadd.f32 %v913, %v947
        %v964 = vadd.f32 %v914, %v948
        %v965 = vadd.f32 %v915, %v949
        %v966 = vadd.f32 %v916, %v950
        %v967 = vadd.f32 %v917, %v951
        %v968 = vadd.f32 %v918, %v952
        %v969 = vadd.f32 %v919, %v953
        %v970 = vadd.f32 %v920, %v954
        %v971 = vadd.f32 %v921, %v955
        %v972 = vadd.f32 %v922, %v956
        %v973 = vadd.f32 %v923, %v957
        %v974 = vadd.f32 %v924, %v958
        %s975 = scalar_lea.vmem [#allocation9], 1536
        %v976 = vld [vmem:[%s975] sm:$0xff]
        %v977 = vld [vmem:[%s975 + $0x8] sm:$0xff]
        %v978 = vld [vmem:[%s975 + $0x10] sm:$0xff]
        %v979 = vld [vmem:[%s975 + $0x18] sm:$0xff]
        %v980 = vld [vmem:[%s975 + $0x20] sm:$0xff]
        %v981 = vld [vmem:[%s975 + $0x28] sm:$0xff]
        %v982 = vld [vmem:[%s975 + $0x30] sm:$0xff]
        %v983 = vld [vmem:[%s975 + $0x38] sm:$0xff]
        %v984 = vld [vmem:[%s975 + $0x40] sm:$0xff]
        %v985 = vld [vmem:[%s975 + $0x48] sm:$0xff]
        %v986 = vld [vmem:[%s975 + $0x50] sm:$0xff]
        %v987 = vld [vmem:[%s975 + $0x58] sm:$0xff]
        %v988 = vld [vmem:[%s975 + $0x60] sm:$0xff]
        %v989 = vld [vmem:[%s975 + $0x68] sm:$0xff]
        %v990 = vld [vmem:[%s975 + $0x70] sm:$0xff]
        %v991 = vld [vmem:[%s975 + $0x78] sm:$0xff]
        %v992 = vstv %s291
        %v993 = vmul.f32 %v992, %v976
        %v994 = vmul.f32 %v992, %v977
        %v995 = vmul.f32 %v992, %v978
        %v996 = vmul.f32 %v992, %v979
        %v997 = vmul.f32 %v992, %v980
        %v998 = vmul.f32 %v992, %v981
        %v999 = vmul.f32 %v992, %v982
        %v1000 = vmul.f32 %v992, %v983
        %v1001 = vmul.f32 %v992, %v984
        %v1002 = vmul.f32 %v992, %v985
        %v1003 = vmul.f32 %v992, %v986
        %v1004 = vmul.f32 %v992, %v987
        %v1005 = vmul.f32 %v992, %v988
        %v1006 = vmul.f32 %v992, %v989
        %v1007 = vmul.f32 %v992, %v990
        %v1008 = vmul.f32 %v992, %v991
        %v1009 = vadd.f32 %v959, %v993
        %v1010 = vadd.f32 %v960, %v994
        %v1011 = vadd.f32 %v961, %v995
        %v1012 = vadd.f32 %v962, %v996
        %v1013 = vadd.f32 %v963, %v997
        %v1014 = vadd.f32 %v964, %v998
        %v1015 = vadd.f32 %v965, %v999
        %v1016 = vadd.f32 %v966, %v1000
        %v1017 = vadd.f32 %v967, %v1001
        %v1018 = vadd.f32 %v968, %v1002
        %v1019 = vadd.f32 %v969, %v1003
        %v1020 = vadd.f32 %v970, %v1004
        %v1021 = vadd.f32 %v971, %v1005
        %v1022 = vadd.f32 %v972, %v1006
        %v1023 = vadd.f32 %v973, %v1007
        %v1024 = vadd.f32 %v974, %v1008
        %s1025 = scalar_lea.vmem [#allocation9], 1664
        %v1026 = vld [vmem:[%s1025] sm:$0xff]
        %v1027 = vld [vmem:[%s1025 + $0x8] sm:$0xff]
        %v1028 = vld [vmem:[%s1025 + $0x10] sm:$0xff]
        %v1029 = vld [vmem:[%s1025 + $0x18] sm:$0xff]
        %v1030 = vld [vmem:[%s1025 + $0x20] sm:$0xff]
        %v1031 = vld [vmem:[%s1025 + $0x28] sm:$0xff]
        %v1032 = vld [vmem:[%s1025 + $0x30] sm:$0xff]
        %v1033 = vld [vmem:[%s1025 + $0x38] sm:$0xff]
        %v1034 = vld [vmem:[%s1025 + $0x40] sm:$0xff]
        %v1035 = vld [vmem:[%s1025 + $0x48] sm:$0xff]
        %v1036 = vld [vmem:[%s1025 + $0x50] sm:$0xff]
        %v1037 = vld [vmem:[%s1025 + $0x58] sm:$0xff]
        %v1038 = vld [vmem:[%s1025 + $0x60] sm:$0xff]
        %v1039 = vld [vmem:[%s1025 + $0x68] sm:$0xff]
        %v1040 = vld [vmem:[%s1025 + $0x70] sm:$0xff]
        %v1041 = vld [vmem:[%s1025 + $0x78] sm:$0xff]
        %v1042 = vstv %s293
        %v1043 = vmul.f32 %v1042, %v1026
        %v1044 = vmul.f32 %v1042, %v1027
        %v1045 = vmul.f32 %v1042, %v1028
        %v1046 = vmul.f32 %v1042, %v1029
        %v1047 = vmul.f32 %v1042, %v1030
        %v1048 = vmul.f32 %v1042, %v1031
        %v1049 = vmul.f32 %v1042, %v1032
        %v1050 = vmul.f32 %v1042, %v1033
        %v1051 = vmul.f32 %v1042, %v1034
        %v1052 = vmul.f32 %v1042, %v1035
        %v1053 = vmul.f32 %v1042, %v1036
        %v1054 = vmul.f32 %v1042, %v1037
        %v1055 = vmul.f32 %v1042, %v1038
        %v1056 = vmul.f32 %v1042, %v1039
        %v1057 = vmul.f32 %v1042, %v1040
        %v1058 = vmul.f32 %v1042, %v1041
        %v1059 = vadd.f32 %v1009, %v1043
        %v1060 = vadd.f32 %v1010, %v1044
        %v1061 = vadd.f32 %v1011, %v1045
        %v1062 = vadd.f32 %v1012, %v1046
        %v1063 = vadd.f32 %v1013, %v1047
        %v1064 = vadd.f32 %v1014, %v1048
        %v1065 = vadd.f32 %v1015, %v1049
        %v1066 = vadd.f32 %v1016, %v1050
        %v1067 = vadd.f32 %v1017, %v1051
        %v1068 = vadd.f32 %v1018, %v1052
        %v1069 = vadd.f32 %v1019, %v1053
        %v1070 = vadd.f32 %v1020, %v1054
        %v1071 = vadd.f32 %v1021, %v1055
        %v1072 = vadd.f32 %v1022, %v1056
        %v1073 = vadd.f32 %v1023, %v1057
        %v1074 = vadd.f32 %v1024, %v1058
        %s1075 = scalar_lea.vmem [#allocation9], 1792
        %v1076 = vld [vmem:[%s1075] sm:$0xff]
        %v1077 = vld [vmem:[%s1075 + $0x8] sm:$0xff]
        %v1078 = vld [vmem:[%s1075 + $0x10] sm:$0xff]
        %v1079 = vld [vmem:[%s1075 + $0x18] sm:$0xff]
        %v1080 = vld [vmem:[%s1075 + $0x20] sm:$0xff]
        %v1081 = vld [vmem:[%s1075 + $0x28] sm:$0xff]
        %v1082 = vld [vmem:[%s1075 + $0x30] sm:$0xff]
        %v1083 = vld [vmem:[%s1075 + $0x38] sm:$0xff]
        %v1084 = vld [vmem:[%s1075 + $0x40] sm:$0xff]
        %v1085 = vld [vmem:[%s1075 + $0x48] sm:$0xff]
        %v1086 = vld [vmem:[%s1075 + $0x50] sm:$0xff]
        %v1087 = vld [vmem:[%s1075 + $0x58] sm:$0xff]
        %v1088 = vld [vmem:[%s1075 + $0x60] sm:$0xff]
        %v1089 = vld [vmem:[%s1075 + $0x68] sm:$0xff]
        %v1090 = vld [vmem:[%s1075 + $0x70] sm:$0xff]
        %v1091 = vld [vmem:[%s1075 + $0x78] sm:$0xff]
        %v1092 = vstv %s295
        %v1093 = vmul.f32 %v1092, %v1076
        %v1094 = vmul.f32 %v1092, %v1077
        %v1095 = vmul.f32 %v1092, %v1078
        %v1096 = vmul.f32 %v1092, %v1079
        %v1097 = vmul.f32 %v1092, %v1080
        %v1098 = vmul.f32 %v1092, %v1081
        %v1099 = vmul.f32 %v1092, %v1082
        %v1100 = vmul.f32 %v1092, %v1083
        %v1101 = vmul.f32 %v1092, %v1084
        %v1102 = vmul.f32 %v1092, %v1085
        %v1103 = vmul.f32 %v1092, %v1086
        %v1104 = vmul.f32 %v1092, %v1087
        %v1105 = vmul.f32 %v1092, %v1088
        %v1106 = vmul.f32 %v1092, %v1089
        %v1107 = vmul.f32 %v1092, %v1090
        %v1108 = vmul.f32 %v1092, %v1091
        %v1109 = vadd.f32 %v1059, %v1093
        %v1110 = vadd.f32 %v1060, %v1094
        %v1111 = vadd.f32 %v1061, %v1095
        %v1112 = vadd.f32 %v1062, %v1096
        %v1113 = vadd.f32 %v1063, %v1097
        %v1114 = vadd.f32 %v1064, %v1098
        %v1115 = vadd.f32 %v1065, %v1099
        %v1116 = vadd.f32 %v1066, %v1100
        %v1117 = vadd.f32 %v1067, %v1101
        %v1118 = vadd.f32 %v1068, %v1102
        %v1119 = vadd.f32 %v1069, %v1103
        %v1120 = vadd.f32 %v1070, %v1104
        %v1121 = vadd.f32 %v1071, %v1105
        %v1122 = vadd.f32 %v1072, %v1106
        %v1123 = vadd.f32 %v1073, %v1107
        %v1124 = vadd.f32 %v1074, %v1108
        %s1125 = scalar_lea.vmem [#allocation9], 1920
        %v1126 = vld [vmem:[%s1125] sm:$0xff]
        %v1127 = vld [vmem:[%s1125 + $0x8] sm:$0xff]
        %v1128 = vld [vmem:[%s1125 + $0x10] sm:$0xff]
        %v1129 = vld [vmem:[%s1125 + $0x18] sm:$0xff]
        %v1130 = vld [vmem:[%s1125 + $0x20] sm:$0xff]
        %v1131 = vld [vmem:[%s1125 + $0x28] sm:$0xff]
        %v1132 = vld [vmem:[%s1125 + $0x30] sm:$0xff]
        %v1133 = vld [vmem:[%s1125 + $0x38] sm:$0xff]
        %v1134 = vld [vmem:[%s1125 + $0x40] sm:$0xff]
        %v1135 = vld [vmem:[%s1125 + $0x48] sm:$0xff]
        %v1136 = vld [vmem:[%s1125 + $0x50] sm:$0xff]
        %v1137 = vld [vmem:[%s1125 + $0x58] sm:$0xff]
        %v1138 = vld [vmem:[%s1125 + $0x60] sm:$0xff]
        %v1139 = vld [vmem:[%s1125 + $0x68] sm:$0xff]
        %v1140 = vld [vmem:[%s1125 + $0x70] sm:$0xff]
        %v1141 = vld [vmem:[%s1125 + $0x78] sm:$0xff]
        %v1142 = vstv %s297
        %v1143 = vmul.f32 %v1142, %v1126
        %v1144 = vmul.f32 %v1142, %v1127
        %v1145 = vmul.f32 %v1142, %v1128
        %v1146 = vmul.f32 %v1142, %v1129
        %v1147 = vmul.f32 %v1142, %v1130
        %v1148 = vmul.f32 %v1142, %v1131
        %v1149 = vmul.f32 %v1142, %v1132
        %v1150 = vmul.f32 %v1142, %v1133
        %v1151 = vmul.f32 %v1142, %v1134
        %v1152 = vmul.f32 %v1142, %v1135
        %v1153 = vmul.f32 %v1142, %v1136
        %v1154 = vmul.f32 %v1142, %v1137
        %v1155 = vmul.f32 %v1142, %v1138
        %v1156 = vmul.f32 %v1142, %v1139
        %v1157 = vmul.f32 %v1142, %v1140
        %v1158 = vmul.f32 %v1142, %v1141
        %v1159 = vadd.f32 %v1109, %v1143
        %v1160 = vadd.f32 %v1110, %v1144
        %v1161 = vadd.f32 %v1111, %v1145
        %v1162 = vadd.f32 %v1112, %v1146
        %v1163 = vadd.f32 %v1113, %v1147
        %v1164 = vadd.f32 %v1114, %v1148
        %v1165 = vadd.f32 %v1115, %v1149
        %v1166 = vadd.f32 %v1116, %v1150
        %v1167 = vadd.f32 %v1117, %v1151
        %v1168 = vadd.f32 %v1118, %v1152
        %v1169 = vadd.f32 %v1119, %v1153
        %v1170 = vadd.f32 %v1120, %v1154
        %v1171 = vadd.f32 %v1121, %v1155
        %v1172 = vadd.f32 %v1122, %v1156
        %v1173 = vadd.f32 %v1123, %v1157
        %v1174 = vadd.f32 %v1124, %v1158
        %s1175 = scalar_lea.vmem [#allocation9], 2048
        %v1176 = vld [vmem:[%s1175] sm:$0xff]
        %v1177 = vld [vmem:[%s1175 + $0x8] sm:$0xff]
        %v1178 = vld [vmem:[%s1175 + $0x10] sm:$0xff]
        %v1179 = vld [vmem:[%s1175 + $0x18] sm:$0xff]
        %v1180 = vld [vmem:[%s1175 + $0x20] sm:$0xff]
        %v1181 = vld [vmem:[%s1175 + $0x28] sm:$0xff]
        %v1182 = vld [vmem:[%s1175 + $0x30] sm:$0xff]
        %v1183 = vld [vmem:[%s1175 + $0x38] sm:$0xff]
        %v1184 = vld [vmem:[%s1175 + $0x40] sm:$0xff]
        %v1185 = vld [vmem:[%s1175 + $0x48] sm:$0xff]
        %v1186 = vld [vmem:[%s1175 + $0x50] sm:$0xff]
        %v1187 = vld [vmem:[%s1175 + $0x58] sm:$0xff]
        %v1188 = vld [vmem:[%s1175 + $0x60] sm:$0xff]
        %v1189 = vld [vmem:[%s1175 + $0x68] sm:$0xff]
        %v1190 = vld [vmem:[%s1175 + $0x70] sm:$0xff]
        %v1191 = vld [vmem:[%s1175 + $0x78] sm:$0xff]
        %v1192 = vstv %s299
        %v1193 = vmul.f32 %v1192, %v1176
        %v1194 = vmul.f32 %v1192, %v1177
        %v1195 = vmul.f32 %v1192, %v1178
        %v1196 = vmul.f32 %v1192, %v1179
        %v1197 = vmul.f32 %v1192, %v1180
        %v1198 = vmul.f32 %v1192, %v1181
        %v1199 = vmul.f32 %v1192, %v1182
        %v1200 = vmul.f32 %v1192, %v1183
        %v1201 = vmul.f32 %v1192, %v1184
        %v1202 = vmul.f32 %v1192, %v1185
        %v1203 = vmul.f32 %v1192, %v1186
        %v1204 = vmul.f32 %v1192, %v1187
        %v1205 = vmul.f32 %v1192, %v1188
        %v1206 = vmul.f32 %v1192, %v1189
        %v1207 = vmul.f32 %v1192, %v1190
        %v1208 = vmul.f32 %v1192, %v1191
        %v1209 = vadd.f32 %v1159, %v1193
        %v1210 = vadd.f32 %v1160, %v1194
        %v1211 = vadd.f32 %v1161, %v1195
        %v1212 = vadd.f32 %v1162, %v1196
        %v1213 = vadd.f32 %v1163, %v1197
        %v1214 = vadd.f32 %v1164, %v1198
        %v1215 = vadd.f32 %v1165, %v1199
        %v1216 = vadd.f32 %v1166, %v1200
        %v1217 = vadd.f32 %v1167, %v1201
        %v1218 = vadd.f32 %v1168, %v1202
        %v1219 = vadd.f32 %v1169, %v1203
        %v1220 = vadd.f32 %v1170, %v1204
        %v1221 = vadd.f32 %v1171, %v1205
        %v1222 = vadd.f32 %v1172, %v1206
        %v1223 = vadd.f32 %v1173, %v1207
        %v1224 = vadd.f32 %v1174, %v1208
        %s1225 = scalar_lea.vmem [#allocation9], 2176
        %v1226 = vld [vmem:[%s1225] sm:$0xff]
        %v1227 = vld [vmem:[%s1225 + $0x8] sm:$0xff]
        %v1228 = vld [vmem:[%s1225 + $0x10] sm:$0xff]
        %v1229 = vld [vmem:[%s1225 + $0x18] sm:$0xff]
        %v1230 = vld [vmem:[%s1225 + $0x20] sm:$0xff]
        %v1231 = vld [vmem:[%s1225 + $0x28] sm:$0xff]
        %v1232 = vld [vmem:[%s1225 + $0x30] sm:$0xff]
        %v1233 = vld [vmem:[%s1225 + $0x38] sm:$0xff]
        %v1234 = vld [vmem:[%s1225 + $0x40] sm:$0xff]
        %v1235 = vld [vmem:[%s1225 + $0x48] sm:$0xff]
        %v1236 = vld [vmem:[%s1225 + $0x50] sm:$0xff]
        %v1237 = vld [vmem:[%s1225 + $0x58] sm:$0xff]
        %v1238 = vld [vmem:[%s1225 + $0x60] sm:$0xff]
        %v1239 = vld [vmem:[%s1225 + $0x68] sm:$0xff]
        %v1240 = vld [vmem:[%s1225 + $0x70] sm:$0xff]
        %v1241 = vld [vmem:[%s1225 + $0x78] sm:$0xff]
        %v1242 = vstv %s301
        %v1243 = vmul.f32 %v1242, %v1226
        %v1244 = vmul.f32 %v1242, %v1227
        %v1245 = vmul.f32 %v1242, %v1228
        %v1246 = vmul.f32 %v1242, %v1229
        %v1247 = vmul.f32 %v1242, %v1230
        %v1248 = vmul.f32 %v1242, %v1231
        %v1249 = vmul.f32 %v1242, %v1232
        %v1250 = vmul.f32 %v1242, %v1233
        %v1251 = vmul.f32 %v1242, %v1234
        %v1252 = vmul.f32 %v1242, %v1235
        %v1253 = vmul.f32 %v1242, %v1236
        %v1254 = vmul.f32 %v1242, %v1237
        %v1255 = vmul.f32 %v1242, %v1238
        %v1256 = vmul.f32 %v1242, %v1239
        %v1257 = vmul.f32 %v1242, %v1240
        %v1258 = vmul.f32 %v1242, %v1241
        %v1259 = vadd.f32 %v1209, %v1243
        %v1260 = vadd.f32 %v1210, %v1244
        %v1261 = vadd.f32 %v1211, %v1245
        %v1262 = vadd.f32 %v1212, %v1246
        %v1263 = vadd.f32 %v1213, %v1247
        %v1264 = vadd.f32 %v1214, %v1248
        %v1265 = vadd.f32 %v1215, %v1249
        %v1266 = vadd.f32 %v1216, %v1250
        %v1267 = vadd.f32 %v1217, %v1251
        %v1268 = vadd.f32 %v1218, %v1252
        %v1269 = vadd.f32 %v1219, %v1253
        %v1270 = vadd.f32 %v1220, %v1254
        %v1271 = vadd.f32 %v1221, %v1255
        %v1272 = vadd.f32 %v1222, %v1256
        %v1273 = vadd.f32 %v1223, %v1257
        %v1274 = vadd.f32 %v1224, %v1258
        %s1275 = scalar_lea.vmem [#allocation9], 2304
        %v1276 = vld [vmem:[%s1275] sm:$0xff]
        %v1277 = vld [vmem:[%s1275 + $0x8] sm:$0xff]
        %v1278 = vld [vmem:[%s1275 + $0x10] sm:$0xff]
        %v1279 = vld [vmem:[%s1275 + $0x18] sm:$0xff]
        %v1280 = vld [vmem:[%s1275 + $0x20] sm:$0xff]
        %v1281 = vld [vmem:[%s1275 + $0x28] sm:$0xff]
        %v1282 = vld [vmem:[%s1275 + $0x30] sm:$0xff]
        %v1283 = vld [vmem:[%s1275 + $0x38] sm:$0xff]
        %v1284 = vld [vmem:[%s1275 + $0x40] sm:$0xff]
        %v1285 = vld [vmem:[%s1275 + $0x48] sm:$0xff]
        %v1286 = vld [vmem:[%s1275 + $0x50] sm:$0xff]
        %v1287 = vld [vmem:[%s1275 + $0x58] sm:$0xff]
        %v1288 = vld [vmem:[%s1275 + $0x60] sm:$0xff]
        %v1289 = vld [vmem:[%s1275 + $0x68] sm:$0xff]
        %v1290 = vld [vmem:[%s1275 + $0x70] sm:$0xff]
        %v1291 = vld [vmem:[%s1275 + $0x78] sm:$0xff]
        %v1292 = vstv %s303
        %v1293 = vmul.f32 %v1292, %v1276
        %v1294 = vmul.f32 %v1292, %v1277
        %v1295 = vmul.f32 %v1292, %v1278
        %v1296 = vmul.f32 %v1292, %v1279
        %v1297 = vmul.f32 %v1292, %v1280
        %v1298 = vmul.f32 %v1292, %v1281
        %v1299 = vmul.f32 %v1292, %v1282
        %v1300 = vmul.f32 %v1292, %v1283
        %v1301 = vmul.f32 %v1292, %v1284
        %v1302 = vmul.f32 %v1292, %v1285
        %v1303 = vmul.f32 %v1292, %v1286
        %v1304 = vmul.f32 %v1292, %v1287
        %v1305 = vmul.f32 %v1292, %v1288
        %v1306 = vmul.f32 %v1292, %v1289
        %v1307 = vmul.f32 %v1292, %v1290
        %v1308 = vmul.f32 %v1292, %v1291
        %v1309 = vadd.f32 %v1259, %v1293
        %v1310 = vadd.f32 %v1260, %v1294
        %v1311 = vadd.f32 %v1261, %v1295
        %v1312 = vadd.f32 %v1262, %v1296
        %v1313 = vadd.f32 %v1263, %v1297
        %v1314 = vadd.f32 %v1264, %v1298
        %v1315 = vadd.f32 %v1265, %v1299
        %v1316 = vadd.f32 %v1266, %v1300
        %v1317 = vadd.f32 %v1267, %v1301
        %v1318 = vadd.f32 %v1268, %v1302
        %v1319 = vadd.f32 %v1269, %v1303
        %v1320 = vadd.f32 %v1270, %v1304
        %v1321 = vadd.f32 %v1271, %v1305
        %v1322 = vadd.f32 %v1272, %v1306
        %v1323 = vadd.f32 %v1273, %v1307
        %v1324 = vadd.f32 %v1274, %v1308
        %s1325 = scalar_lea.vmem [#allocation9], 2432
        %v1326 = vld [vmem:[%s1325] sm:$0xff]
        %v1327 = vld [vmem:[%s1325 + $0x8] sm:$0xff]
        %v1328 = vld [vmem:[%s1325 + $0x10] sm:$0xff]
        %v1329 = vld [vmem:[%s1325 + $0x18] sm:$0xff]
        %v1330 = vld [vmem:[%s1325 + $0x20] sm:$0xff]
        %v1331 = vld [vmem:[%s1325 + $0x28] sm:$0xff]
        %v1332 = vld [vmem:[%s1325 + $0x30] sm:$0xff]
        %v1333 = vld [vmem:[%s1325 + $0x38] sm:$0xff]
        %v1334 = vld [vmem:[%s1325 + $0x40] sm:$0xff]
        %v1335 = vld [vmem:[%s1325 + $0x48] sm:$0xff]
        %v1336 = vld [vmem:[%s1325 + $0x50] sm:$0xff]
        %v1337 = vld [vmem:[%s1325 + $0x58] sm:$0xff]
        %v1338 = vld [vmem:[%s1325 + $0x60] sm:$0xff]
        %v1339 = vld [vmem:[%s1325 + $0x68] sm:$0xff]
        %v1340 = vld [vmem:[%s1325 + $0x70] sm:$0xff]
        %v1341 = vld [vmem:[%s1325 + $0x78] sm:$0xff]
        %v1342 = vstv %s305
        %v1343 = vmul.f32 %v1342, %v1326
        %v1344 = vmul.f32 %v1342, %v1327
        %v1345 = vmul.f32 %v1342, %v1328
        %v1346 = vmul.f32 %v1342, %v1329
        %v1347 = vmul.f32 %v1342, %v1330
        %v1348 = vmul.f32 %v1342, %v1331
        %v1349 = vmul.f32 %v1342, %v1332
        %v1350 = vmul.f32 %v1342, %v1333
        %v1351 = vmul.f32 %v1342, %v1334
        %v1352 = vmul.f32 %v1342, %v1335
        %v1353 = vmul.f32 %v1342, %v1336
        %v1354 = vmul.f32 %v1342, %v1337
        %v1355 = vmul.f32 %v1342, %v1338
        %v1356 = vmul.f32 %v1342, %v1339
        %v1357 = vmul.f32 %v1342, %v1340
        %v1358 = vmul.f32 %v1342, %v1341
        %v1359 = vadd.f32 %v1309, %v1343
        %v1360 = vadd.f32 %v1310, %v1344
        %v1361 = vadd.f32 %v1311, %v1345
        %v1362 = vadd.f32 %v1312, %v1346
        %v1363 = vadd.f32 %v1313, %v1347
        %v1364 = vadd.f32 %v1314, %v1348
        %v1365 = vadd.f32 %v1315, %v1349
        %v1366 = vadd.f32 %v1316, %v1350
        %v1367 = vadd.f32 %v1317, %v1351
        %v1368 = vadd.f32 %v1318, %v1352
        %v1369 = vadd.f32 %v1319, %v1353
        %v1370 = vadd.f32 %v1320, %v1354
        %v1371 = vadd.f32 %v1321, %v1355
        %v1372 = vadd.f32 %v1322, %v1356
        %v1373 = vadd.f32 %v1323, %v1357
        %v1374 = vadd.f32 %v1324, %v1358
        %s1375 = scalar_lea.vmem [#allocation9], 2560
        %v1376 = vld [vmem:[%s1375] sm:$0xff]
        %v1377 = vld [vmem:[%s1375 + $0x8] sm:$0xff]
        %v1378 = vld [vmem:[%s1375 + $0x10] sm:$0xff]
        %v1379 = vld [vmem:[%s1375 + $0x18] sm:$0xff]
        %v1380 = vld [vmem:[%s1375 + $0x20] sm:$0xff]
        %v1381 = vld [vmem:[%s1375 + $0x28] sm:$0xff]
        %v1382 = vld [vmem:[%s1375 + $0x30] sm:$0xff]
        %v1383 = vld [vmem:[%s1375 + $0x38] sm:$0xff]
        %v1384 = vld [vmem:[%s1375 + $0x40] sm:$0xff]
        %v1385 = vld [vmem:[%s1375 + $0x48] sm:$0xff]
        %v1386 = vld [vmem:[%s1375 + $0x50] sm:$0xff]
        %v1387 = vld [vmem:[%s1375 + $0x58] sm:$0xff]
        %v1388 = vld [vmem:[%s1375 + $0x60] sm:$0xff]
        %v1389 = vld [vmem:[%s1375 + $0x68] sm:$0xff]
        %v1390 = vld [vmem:[%s1375 + $0x70] sm:$0xff]
        %v1391 = vld [vmem:[%s1375 + $0x78] sm:$0xff]
        %v1392 = vstv %s307
        %v1393 = vmul.f32 %v1392, %v1376
        %v1394 = vmul.f32 %v1392, %v1377
        %v1395 = vmul.f32 %v1392, %v1378
        %v1396 = vmul.f32 %v1392, %v1379
        %v1397 = vmul.f32 %v1392, %v1380
        %v1398 = vmul.f32 %v1392, %v1381
        %v1399 = vmul.f32 %v1392, %v1382
        %v1400 = vmul.f32 %v1392, %v1383
        %v1401 = vmul.f32 %v1392, %v1384
        %v1402 = vmul.f32 %v1392, %v1385
        %v1403 = vmul.f32 %v1392, %v1386
        %v1404 = vmul.f32 %v1392, %v1387
        %v1405 = vmul.f32 %v1392, %v1388
        %v1406 = vmul.f32 %v1392, %v1389
        %v1407 = vmul.f32 %v1392, %v1390
        %v1408 = vmul.f32 %v1392, %v1391
        %v1409 = vadd.f32 %v1359, %v1393
        %v1410 = vadd.f32 %v1360, %v1394
        %v1411 = vadd.f32 %v1361, %v1395
        %v1412 = vadd.f32 %v1362, %v1396
        %v1413 = vadd.f32 %v1363, %v1397
        %v1414 = vadd.f32 %v1364, %v1398
        %v1415 = vadd.f32 %v1365, %v1399
        %v1416 = vadd.f32 %v1366, %v1400
        %v1417 = vadd.f32 %v1367, %v1401
        %v1418 = vadd.f32 %v1368, %v1402
        %v1419 = vadd.f32 %v1369, %v1403
        %v1420 = vadd.f32 %v1370, %v1404
        %v1421 = vadd.f32 %v1371, %v1405
        %v1422 = vadd.f32 %v1372, %v1406
        %v1423 = vadd.f32 %v1373, %v1407
        %v1424 = vadd.f32 %v1374, %v1408
        %s1425 = scalar_lea.vmem [#allocation9], 2688
        %v1426 = vld [vmem:[%s1425] sm:$0xff]
        %v1427 = vld [vmem:[%s1425 + $0x8] sm:$0xff]
        %v1428 = vld [vmem:[%s1425 + $0x10] sm:$0xff]
        %v1429 = vld [vmem:[%s1425 + $0x18] sm:$0xff]
        %v1430 = vld [vmem:[%s1425 + $0x20] sm:$0xff]
        %v1431 = vld [vmem:[%s1425 + $0x28] sm:$0xff]
        %v1432 = vld [vmem:[%s1425 + $0x30] sm:$0xff]
        %v1433 = vld [vmem:[%s1425 + $0x38] sm:$0xff]
        %v1434 = vld [vmem:[%s1425 + $0x40] sm:$0xff]
        %v1435 = vld [vmem:[%s1425 + $0x48] sm:$0xff]
        %v1436 = vld [vmem:[%s1425 + $0x50] sm:$0xff]
        %v1437 = vld [vmem:[%s1425 + $0x58] sm:$0xff]
        %v1438 = vld [vmem:[%s1425 + $0x60] sm:$0xff]
        %v1439 = vld [vmem:[%s1425 + $0x68] sm:$0xff]
        %v1440 = vld [vmem:[%s1425 + $0x70] sm:$0xff]
        %v1441 = vld [vmem:[%s1425 + $0x78] sm:$0xff]
        %v1442 = vstv %s309
        %v1443 = vmul.f32 %v1442, %v1426
        %v1444 = vmul.f32 %v1442, %v1427
        %v1445 = vmul.f32 %v1442, %v1428
        %v1446 = vmul.f32 %v1442, %v1429
        %v1447 = vmul.f32 %v1442, %v1430
        %v1448 = vmul.f32 %v1442, %v1431
        %v1449 = vmul.f32 %v1442, %v1432
        %v1450 = vmul.f32 %v1442, %v1433
        %v1451 = vmul.f32 %v1442, %v1434
        %v1452 = vmul.f32 %v1442, %v1435
        %v1453 = vmul.f32 %v1442, %v1436
        %v1454 = vmul.f32 %v1442, %v1437
        %v1455 = vmul.f32 %v1442, %v1438
        %v1456 = vmul.f32 %v1442, %v1439
        %v1457 = vmul.f32 %v1442, %v1440
        %v1458 = vmul.f32 %v1442, %v1441
        %v1459 = vadd.f32 %v1409, %v1443
        %v1460 = vadd.f32 %v1410, %v1444
        %v1461 = vadd.f32 %v1411, %v1445
        %v1462 = vadd.f32 %v1412, %v1446
        %v1463 = vadd.f32 %v1413, %v1447
        %v1464 = vadd.f32 %v1414, %v1448
        %v1465 = vadd.f32 %v1415, %v1449
        %v1466 = vadd.f32 %v1416, %v1450
        %v1467 = vadd.f32 %v1417, %v1451
        %v1468 = vadd.f32 %v1418, %v1452
        %v1469 = vadd.f32 %v1419, %v1453
        %v1470 = vadd.f32 %v1420, %v1454
        %v1471 = vadd.f32 %v1421, %v1455
        %v1472 = vadd.f32 %v1422, %v1456
        %v1473 = vadd.f32 %v1423, %v1457
        %v1474 = vadd.f32 %v1424, %v1458
        %s1475 = scalar_lea.vmem [#allocation9], 2816
        %v1476 = vld [vmem:[%s1475] sm:$0xff]
        %v1477 = vld [vmem:[%s1475 + $0x8] sm:$0xff]
        %v1478 = vld [vmem:[%s1475 + $0x10] sm:$0xff]
        %v1479 = vld [vmem:[%s1475 + $0x18] sm:$0xff]
        %v1480 = vld [vmem:[%s1475 + $0x20] sm:$0xff]
        %v1481 = vld [vmem:[%s1475 + $0x28] sm:$0xff]
        %v1482 = vld [vmem:[%s1475 + $0x30] sm:$0xff]
        %v1483 = vld [vmem:[%s1475 + $0x38] sm:$0xff]
        %v1484 = vld [vmem:[%s1475 + $0x40] sm:$0xff]
        %v1485 = vld [vmem:[%s1475 + $0x48] sm:$0xff]
        %v1486 = vld [vmem:[%s1475 + $0x50] sm:$0xff]
        %v1487 = vld [vmem:[%s1475 + $0x58] sm:$0xff]
        %v1488 = vld [vmem:[%s1475 + $0x60] sm:$0xff]
        %v1489 = vld [vmem:[%s1475 + $0x68] sm:$0xff]
        %v1490 = vld [vmem:[%s1475 + $0x70] sm:$0xff]
        %v1491 = vld [vmem:[%s1475 + $0x78] sm:$0xff]
        %v1492 = vstv %s311
        %v1493 = vmul.f32 %v1492, %v1476
        %v1494 = vmul.f32 %v1492, %v1477
        %v1495 = vmul.f32 %v1492, %v1478
        %v1496 = vmul.f32 %v1492, %v1479
        %v1497 = vmul.f32 %v1492, %v1480
        %v1498 = vmul.f32 %v1492, %v1481
        %v1499 = vmul.f32 %v1492, %v1482
        %v1500 = vmul.f32 %v1492, %v1483
        %v1501 = vmul.f32 %v1492, %v1484
        %v1502 = vmul.f32 %v1492, %v1485
        %v1503 = vmul.f32 %v1492, %v1486
        %v1504 = vmul.f32 %v1492, %v1487
        %v1505 = vmul.f32 %v1492, %v1488
        %v1506 = vmul.f32 %v1492, %v1489
        %v1507 = vmul.f32 %v1492, %v1490
        %v1508 = vmul.f32 %v1492, %v1491
        %v1509 = vadd.f32 %v1459, %v1493
        %v1510 = vadd.f32 %v1460, %v1494
        %v1511 = vadd.f32 %v1461, %v1495
        %v1512 = vadd.f32 %v1462, %v1496
        %v1513 = vadd.f32 %v1463, %v1497
        %v1514 = vadd.f32 %v1464, %v1498
        %v1515 = vadd.f32 %v1465, %v1499
        %v1516 = vadd.f32 %v1466, %v1500
        %v1517 = vadd.f32 %v1467, %v1501
        %v1518 = vadd.f32 %v1468, %v1502
        %v1519 = vadd.f32 %v1469, %v1503
        %v1520 = vadd.f32 %v1470, %v1504
        %v1521 = vadd.f32 %v1471, %v1505
        %v1522 = vadd.f32 %v1472, %v1506
        %v1523 = vadd.f32 %v1473, %v1507
        %v1524 = vadd.f32 %v1474, %v1508
        %s1525 = scalar_lea.vmem [#allocation9], 2944
        %v1526 = vld [vmem:[%s1525] sm:$0xff]
        %v1527 = vld [vmem:[%s1525 + $0x8] sm:$0xff]
        %v1528 = vld [vmem:[%s1525 + $0x10] sm:$0xff]
        %v1529 = vld [vmem:[%s1525 + $0x18] sm:$0xff]
        %v1530 = vld [vmem:[%s1525 + $0x20] sm:$0xff]
        %v1531 = vld [vmem:[%s1525 + $0x28] sm:$0xff]
        %v1532 = vld [vmem:[%s1525 + $0x30] sm:$0xff]
        %v1533 = vld [vmem:[%s1525 + $0x38] sm:$0xff]
        %v1534 = vld [vmem:[%s1525 + $0x40] sm:$0xff]
        %v1535 = vld [vmem:[%s1525 + $0x48] sm:$0xff]
        %v1536 = vld [vmem:[%s1525 + $0x50] sm:$0xff]
        %v1537 = vld [vmem:[%s1525 + $0x58] sm:$0xff]
        %v1538 = vld [vmem:[%s1525 + $0x60] sm:$0xff]
        %v1539 = vld [vmem:[%s1525 + $0x68] sm:$0xff]
        %v1540 = vld [vmem:[%s1525 + $0x70] sm:$0xff]
        %v1541 = vld [vmem:[%s1525 + $0x78] sm:$0xff]
        %v1542 = vstv %s313
        %v1543 = vmul.f32 %v1542, %v1526
        %v1544 = vmul.f32 %v1542, %v1527
        %v1545 = vmul.f32 %v1542, %v1528
        %v1546 = vmul.f32 %v1542, %v1529
        %v1547 = vmul.f32 %v1542, %v1530
        %v1548 = vmul.f32 %v1542, %v1531
        %v1549 = vmul.f32 %v1542, %v1532
        %v1550 = vmul.f32 %v1542, %v1533
        %v1551 = vmul.f32 %v1542, %v1534
        %v1552 = vmul.f32 %v1542, %v1535
        %v1553 = vmul.f32 %v1542, %v1536
        %v1554 = vmul.f32 %v1542, %v1537
        %v1555 = vmul.f32 %v1542, %v1538
        %v1556 = vmul.f32 %v1542, %v1539
        %v1557 = vmul.f32 %v1542, %v1540
        %v1558 = vmul.f32 %v1542, %v1541
        %v1559 = vadd.f32 %v1509, %v1543
        %v1560 = vadd.f32 %v1510, %v1544
        %v1561 = vadd.f32 %v1511, %v1545
        %v1562 = vadd.f32 %v1512, %v1546
        %v1563 = vadd.f32 %v1513, %v1547
        %v1564 = vadd.f32 %v1514, %v1548
        %v1565 = vadd.f32 %v1515, %v1549
        %v1566 = vadd.f32 %v1516, %v1550
        %v1567 = vadd.f32 %v1517, %v1551
        %v1568 = vadd.f32 %v1518, %v1552
        %v1569 = vadd.f32 %v1519, %v1553
        %v1570 = vadd.f32 %v1520, %v1554
        %v1571 = vadd.f32 %v1521, %v1555
        %v1572 = vadd.f32 %v1522, %v1556
        %v1573 = vadd.f32 %v1523, %v1557
        %v1574 = vadd.f32 %v1524, %v1558
        %s1575 = scalar_lea.vmem [#allocation9], 3072
        %v1576 = vld [vmem:[%s1575] sm:$0xff]
        %v1577 = vld [vmem:[%s1575 + $0x8] sm:$0xff]
        %v1578 = vld [vmem:[%s1575 + $0x10] sm:$0xff]
        %v1579 = vld [vmem:[%s1575 + $0x18] sm:$0xff]
        %v1580 = vld [vmem:[%s1575 + $0x20] sm:$0xff]
        %v1581 = vld [vmem:[%s1575 + $0x28] sm:$0xff]
        %v1582 = vld [vmem:[%s1575 + $0x30] sm:$0xff]
        %v1583 = vld [vmem:[%s1575 + $0x38] sm:$0xff]
        %v1584 = vld [vmem:[%s1575 + $0x40] sm:$0xff]
        %v1585 = vld [vmem:[%s1575 + $0x48] sm:$0xff]
        %v1586 = vld [vmem:[%s1575 + $0x50] sm:$0xff]
        %v1587 = vld [vmem:[%s1575 + $0x58] sm:$0xff]
        %v1588 = vld [vmem:[%s1575 + $0x60] sm:$0xff]
        %v1589 = vld [vmem:[%s1575 + $0x68] sm:$0xff]
        %v1590 = vld [vmem:[%s1575 + $0x70] sm:$0xff]
        %v1591 = vld [vmem:[%s1575 + $0x78] sm:$0xff]
        %v1592 = vstv %s315
        %v1593 = vmul.f32 %v1592, %v1576
        %v1594 = vmul.f32 %v1592, %v1577
        %v1595 = vmul.f32 %v1592, %v1578
        %v1596 = vmul.f32 %v1592, %v1579
        %v1597 = vmul.f32 %v1592, %v1580
        %v1598 = vmul.f32 %v1592, %v1581
        %v1599 = vmul.f32 %v1592, %v1582
        %v1600 = vmul.f32 %v1592, %v1583
        %v1601 = vmul.f32 %v1592, %v1584
        %v1602 = vmul.f32 %v1592, %v1585
        %v1603 = vmul.f32 %v1592, %v1586
        %v1604 = vmul.f32 %v1592, %v1587
        %v1605 = vmul.f32 %v1592, %v1588
        %v1606 = vmul.f32 %v1592, %v1589
        %v1607 = vmul.f32 %v1592, %v1590
        %v1608 = vmul.f32 %v1592, %v1591
        %v1609 = vadd.f32 %v1559, %v1593
        %v1610 = vadd.f32 %v1560, %v1594
        %v1611 = vadd.f32 %v1561, %v1595
        %v1612 = vadd.f32 %v1562, %v1596
        %v1613 = vadd.f32 %v1563, %v1597
        %v1614 = vadd.f32 %v1564, %v1598
        %v1615 = vadd.f32 %v1565, %v1599
        %v1616 = vadd.f32 %v1566, %v1600
        %v1617 = vadd.f32 %v1567, %v1601
        %v1618 = vadd.f32 %v1568, %v1602
        %v1619 = vadd.f32 %v1569, %v1603
        %v1620 = vadd.f32 %v1570, %v1604
        %v1621 = vadd.f32 %v1571, %v1605
        %v1622 = vadd.f32 %v1572, %v1606
        %v1623 = vadd.f32 %v1573, %v1607
        %v1624 = vadd.f32 %v1574, %v1608
        %s1625 = scalar_lea.vmem [#allocation9], 3200
        %v1626 = vld [vmem:[%s1625] sm:$0xff]
        %v1627 = vld [vmem:[%s1625 + $0x8] sm:$0xff]
        %v1628 = vld [vmem:[%s1625 + $0x10] sm:$0xff]
        %v1629 = vld [vmem:[%s1625 + $0x18] sm:$0xff]
        %v1630 = vld [vmem:[%s1625 + $0x20] sm:$0xff]
        %v1631 = vld [vmem:[%s1625 + $0x28] sm:$0xff]
        %v1632 = vld [vmem:[%s1625 + $0x30] sm:$0xff]
        %v1633 = vld [vmem:[%s1625 + $0x38] sm:$0xff]
        %v1634 = vld [vmem:[%s1625 + $0x40] sm:$0xff]
        %v1635 = vld [vmem:[%s1625 + $0x48] sm:$0xff]
        %v1636 = vld [vmem:[%s1625 + $0x50] sm:$0xff]
        %v1637 = vld [vmem:[%s1625 + $0x58] sm:$0xff]
        %v1638 = vld [vmem:[%s1625 + $0x60] sm:$0xff]
        %v1639 = vld [vmem:[%s1625 + $0x68] sm:$0xff]
        %v1640 = vld [vmem:[%s1625 + $0x70] sm:$0xff]
        %v1641 = vld [vmem:[%s1625 + $0x78] sm:$0xff]
        %v1642 = vstv %s317
        %v1643 = vmul.f32 %v1642, %v1626
        %v1644 = vmul.f32 %v1642, %v1627
        %v1645 = vmul.f32 %v1642, %v1628
        %v1646 = vmul.f32 %v1642, %v1629
        %v1647 = vmul.f32 %v1642, %v1630
        %v1648 = vmul.f32 %v1642, %v1631
        %v1649 = vmul.f32 %v1642, %v1632
        %v1650 = vmul.f32 %v1642, %v1633
        %v1651 = vmul.f32 %v1642, %v1634
        %v1652 = vmul.f32 %v1642, %v1635
        %v1653 = vmul.f32 %v1642, %v1636
        %v1654 = vmul.f32 %v1642, %v1637
        %v1655 = vmul.f32 %v1642, %v1638
        %v1656 = vmul.f32 %v1642, %v1639
        %v1657 = vmul.f32 %v1642, %v1640
        %v1658 = vmul.f32 %v1642, %v1641
        %v1659 = vadd.f32 %v1609, %v1643
        %v1660 = vadd.f32 %v1610, %v1644
        %v1661 = vadd.f32 %v1611, %v1645
        %v1662 = vadd.f32 %v1612, %v1646
        %v1663 = vadd.f32 %v1613, %v1647
        %v1664 = vadd.f32 %v1614, %v1648
        %v1665 = vadd.f32 %v1615, %v1649
        %v1666 = vadd.f32 %v1616, %v1650
        %v1667 = vadd.f32 %v1617, %v1651
        %v1668 = vadd.f32 %v1618, %v1652
        %v1669 = vadd.f32 %v1619, %v1653
        %v1670 = vadd.f32 %v1620, %v1654
        %v1671 = vadd.f32 %v1621, %v1655
        %v1672 = vadd.f32 %v1622, %v1656
        %v1673 = vadd.f32 %v1623, %v1657
        %v1674 = vadd.f32 %v1624, %v1658
        %s1675 = scalar_lea.vmem [#allocation9], 3328
        %v1676 = vld [vmem:[%s1675] sm:$0xff]
        %v1677 = vld [vmem:[%s1675 + $0x8] sm:$0xff]
        %v1678 = vld [vmem:[%s1675 + $0x10] sm:$0xff]
        %v1679 = vld [vmem:[%s1675 + $0x18] sm:$0xff]
        %v1680 = vld [vmem:[%s1675 + $0x20] sm:$0xff]
        %v1681 = vld [vmem:[%s1675 + $0x28] sm:$0xff]
        %v1682 = vld [vmem:[%s1675 + $0x30] sm:$0xff]
        %v1683 = vld [vmem:[%s1675 + $0x38] sm:$0xff]
        %v1684 = vld [vmem:[%s1675 + $0x40] sm:$0xff]
        %v1685 = vld [vmem:[%s1675 + $0x48] sm:$0xff]
        %v1686 = vld [vmem:[%s1675 + $0x50] sm:$0xff]
        %v1687 = vld [vmem:[%s1675 + $0x58] sm:$0xff]
        %v1688 = vld [vmem:[%s1675 + $0x60] sm:$0xff]
        %v1689 = vld [vmem:[%s1675 + $0x68] sm:$0xff]
        %v1690 = vld [vmem:[%s1675 + $0x70] sm:$0xff]
        %v1691 = vld [vmem:[%s1675 + $0x78] sm:$0xff]
        %v1692 = vstv %s319
        %v1693 = vmul.f32 %v1692, %v1676
        %v1694 = vmul.f32 %v1692, %v1677
        %v1695 = vmul.f32 %v1692, %v1678
        %v1696 = vmul.f32 %v1692, %v1679
        %v1697 = vmul.f32 %v1692, %v1680
        %v1698 = vmul.f32 %v1692, %v1681
        %v1699 = vmul.f32 %v1692, %v1682
        %v1700 = vmul.f32 %v1692, %v1683
        %v1701 = vmul.f32 %v1692, %v1684
        %v1702 = vmul.f32 %v1692, %v1685
        %v1703 = vmul.f32 %v1692, %v1686
        %v1704 = vmul.f32 %v1692, %v1687
        %v1705 = vmul.f32 %v1692, %v1688
        %v1706 = vmul.f32 %v1692, %v1689
        %v1707 = vmul.f32 %v1692, %v1690
        %v1708 = vmul.f32 %v1692, %v1691
        %v1709 = vadd.f32 %v1659, %v1693
        %v1710 = vadd.f32 %v1660, %v1694
        %v1711 = vadd.f32 %v1661, %v1695
        %v1712 = vadd.f32 %v1662, %v1696
        %v1713 = vadd.f32 %v1663, %v1697
        %v1714 = vadd.f32 %v1664, %v1698
        %v1715 = vadd.f32 %v1665, %v1699
        %v1716 = vadd.f32 %v1666, %v1700
        %v1717 = vadd.f32 %v1667, %v1701
        %v1718 = vadd.f32 %v1668, %v1702
        %v1719 = vadd.f32 %v1669, %v1703
        %v1720 = vadd.f32 %v1670, %v1704
        %v1721 = vadd.f32 %v1671, %v1705
        %v1722 = vadd.f32 %v1672, %v1706
        %v1723 = vadd.f32 %v1673, %v1707
        %v1724 = vadd.f32 %v1674, %v1708
        %s1725 = scalar_lea.vmem [#allocation9], 3456
        %v1726 = vld [vmem:[%s1725] sm:$0xff]
        %v1727 = vld [vmem:[%s1725 + $0x8] sm:$0xff]
        %v1728 = vld [vmem:[%s1725 + $0x10] sm:$0xff]
        %v1729 = vld [vmem:[%s1725 + $0x18] sm:$0xff]
        %v1730 = vld [vmem:[%s1725 + $0x20] sm:$0xff]
        %v1731 = vld [vmem:[%s1725 + $0x28] sm:$0xff]
        %v1732 = vld [vmem:[%s1725 + $0x30] sm:$0xff]
        %v1733 = vld [vmem:[%s1725 + $0x38] sm:$0xff]
        %v1734 = vld [vmem:[%s1725 + $0x40] sm:$0xff]
        %v1735 = vld [vmem:[%s1725 + $0x48] sm:$0xff]
        %v1736 = vld [vmem:[%s1725 + $0x50] sm:$0xff]
        %v1737 = vld [vmem:[%s1725 + $0x58] sm:$0xff]
        %v1738 = vld [vmem:[%s1725 + $0x60] sm:$0xff]
        %v1739 = vld [vmem:[%s1725 + $0x68] sm:$0xff]
        %v1740 = vld [vmem:[%s1725 + $0x70] sm:$0xff]
        %v1741 = vld [vmem:[%s1725 + $0x78] sm:$0xff]
        %v1742 = vstv %s321
        %v1743 = vmul.f32 %v1742, %v1726
        %v1744 = vmul.f32 %v1742, %v1727
        %v1745 = vmul.f32 %v1742, %v1728
        %v1746 = vmul.f32 %v1742, %v1729
        %v1747 = vmul.f32 %v1742, %v1730
        %v1748 = vmul.f32 %v1742, %v1731
        %v1749 = vmul.f32 %v1742, %v1732
        %v1750 = vmul.f32 %v1742, %v1733
        %v1751 = vmul.f32 %v1742, %v1734
        %v1752 = vmul.f32 %v1742, %v1735
        %v1753 = vmul.f32 %v1742, %v1736
        %v1754 = vmul.f32 %v1742, %v1737
        %v1755 = vmul.f32 %v1742, %v1738
        %v1756 = vmul.f32 %v1742, %v1739
        %v1757 = vmul.f32 %v1742, %v1740
        %v1758 = vmul.f32 %v1742, %v1741
        %v1759 = vadd.f32 %v1709, %v1743
        %v1760 = vadd.f32 %v1710, %v1744
        %v1761 = vadd.f32 %v1711, %v1745
        %v1762 = vadd.f32 %v1712, %v1746
        %v1763 = vadd.f32 %v1713, %v1747
        %v1764 = vadd.f32 %v1714, %v1748
        %v1765 = vadd.f32 %v1715, %v1749
        %v1766 = vadd.f32 %v1716, %v1750
        %v1767 = vadd.f32 %v1717, %v1751
        %v1768 = vadd.f32 %v1718, %v1752
        %v1769 = vadd.f32 %v1719, %v1753
        %v1770 = vadd.f32 %v1720, %v1754
        %v1771 = vadd.f32 %v1721, %v1755
        %v1772 = vadd.f32 %v1722, %v1756
        %v1773 = vadd.f32 %v1723, %v1757
        %v1774 = vadd.f32 %v1724, %v1758
        %s1775 = scalar_lea.vmem [#allocation9], 3584
        %v1776 = vld [vmem:[%s1775] sm:$0xff]
        %v1777 = vld [vmem:[%s1775 + $0x8] sm:$0xff]
        %v1778 = vld [vmem:[%s1775 + $0x10] sm:$0xff]
        %v1779 = vld [vmem:[%s1775 + $0x18] sm:$0xff]
        %v1780 = vld [vmem:[%s1775 + $0x20] sm:$0xff]
        %v1781 = vld [vmem:[%s1775 + $0x28] sm:$0xff]
        %v1782 = vld [vmem:[%s1775 + $0x30] sm:$0xff]
        %v1783 = vld [vmem:[%s1775 + $0x38] sm:$0xff]
        %v1784 = vld [vmem:[%s1775 + $0x40] sm:$0xff]
        %v1785 = vld [vmem:[%s1775 + $0x48] sm:$0xff]
        %v1786 = vld [vmem:[%s1775 + $0x50] sm:$0xff]
        %v1787 = vld [vmem:[%s1775 + $0x58] sm:$0xff]
        %v1788 = vld [vmem:[%s1775 + $0x60] sm:$0xff]
        %v1789 = vld [vmem:[%s1775 + $0x68] sm:$0xff]
        %v1790 = vld [vmem:[%s1775 + $0x70] sm:$0xff]
        %v1791 = vld [vmem:[%s1775 + $0x78] sm:$0xff]
        %v1792 = vstv %s323
        %v1793 = vmul.f32 %v1792, %v1776
        %v1794 = vmul.f32 %v1792, %v1777
        %v1795 = vmul.f32 %v1792, %v1778
        %v1796 = vmul.f32 %v1792, %v1779
        %v1797 = vmul.f32 %v1792, %v1780
        %v1798 = vmul.f32 %v1792, %v1781
        %v1799 = vmul.f32 %v1792, %v1782
        %v1800 = vmul.f32 %v1792, %v1783
        %v1801 = vmul.f32 %v1792, %v1784
        %v1802 = vmul.f32 %v1792, %v1785
        %v1803 = vmul.f32 %v1792, %v1786
        %v1804 = vmul.f32 %v1792, %v1787
        %v1805 = vmul.f32 %v1792, %v1788
        %v1806 = vmul.f32 %v1792, %v1789
        %v1807 = vmul.f32 %v1792, %v1790
        %v1808 = vmul.f32 %v1792, %v1791
        %v1809 = vadd.f32 %v1759, %v1793
        %v1810 = vadd.f32 %v1760, %v1794
        %v1811 = vadd.f32 %v1761, %v1795
        %v1812 = vadd.f32 %v1762, %v1796
        %v1813 = vadd.f32 %v1763, %v1797
        %v1814 = vadd.f32 %v1764, %v1798
        %v1815 = vadd.f32 %v1765, %v1799
        %v1816 = vadd.f32 %v1766, %v1800
        %v1817 = vadd.f32 %v1767, %v1801
        %v1818 = vadd.f32 %v1768, %v1802
        %v1819 = vadd.f32 %v1769, %v1803
        %v1820 = vadd.f32 %v1770, %v1804
        %v1821 = vadd.f32 %v1771, %v1805
        %v1822 = vadd.f32 %v1772, %v1806
        %v1823 = vadd.f32 %v1773, %v1807
        %v1824 = vadd.f32 %v1774, %v1808
        %s1825 = scalar_lea.vmem [#allocation9], 3712
        %v1826 = vld [vmem:[%s1825] sm:$0xff]
        %v1827 = vld [vmem:[%s1825 + $0x8] sm:$0xff]
        %v1828 = vld [vmem:[%s1825 + $0x10] sm:$0xff]
        %v1829 = vld [vmem:[%s1825 + $0x18] sm:$0xff]
        %v1830 = vld [vmem:[%s1825 + $0x20] sm:$0xff]
        %v1831 = vld [vmem:[%s1825 + $0x28] sm:$0xff]
        %v1832 = vld [vmem:[%s1825 + $0x30] sm:$0xff]
        %v1833 = vld [vmem:[%s1825 + $0x38] sm:$0xff]
        %v1834 = vld [vmem:[%s1825 + $0x40] sm:$0xff]
        %v1835 = vld [vmem:[%s1825 + $0x48] sm:$0xff]
        %v1836 = vld [vmem:[%s1825 + $0x50] sm:$0xff]
        %v1837 = vld [vmem:[%s1825 + $0x58] sm:$0xff]
        %v1838 = vld [vmem:[%s1825 + $0x60] sm:$0xff]
        %v1839 = vld [vmem:[%s1825 + $0x68] sm:$0xff]
        %v1840 = vld [vmem:[%s1825 + $0x70] sm:$0xff]
        %v1841 = vld [vmem:[%s1825 + $0x78] sm:$0xff]
        %v1842 = vstv %s325
        %v1843 = vmul.f32 %v1842, %v1826
        %v1844 = vmul.f32 %v1842, %v1827
        %v1845 = vmul.f32 %v1842, %v1828
        %v1846 = vmul.f32 %v1842, %v1829
        %v1847 = vmul.f32 %v1842, %v1830
        %v1848 = vmul.f32 %v1842, %v1831
        %v1849 = vmul.f32 %v1842, %v1832
        %v1850 = vmul.f32 %v1842, %v1833
        %v1851 = vmul.f32 %v1842, %v1834
        %v1852 = vmul.f32 %v1842, %v1835
        %v1853 = vmul.f32 %v1842, %v1836
        %v1854 = vmul.f32 %v1842, %v1837
        %v1855 = vmul.f32 %v1842, %v1838
        %v1856 = vmul.f32 %v1842, %v1839
        %v1857 = vmul.f32 %v1842, %v1840
        %v1858 = vmul.f32 %v1842, %v1841
        %v1859 = vadd.f32 %v1809, %v1843
        %v1860 = vadd.f32 %v1810, %v1844
        %v1861 = vadd.f32 %v1811, %v1845
        %v1862 = vadd.f32 %v1812, %v1846
        %v1863 = vadd.f32 %v1813, %v1847
        %v1864 = vadd.f32 %v1814, %v1848
        %v1865 = vadd.f32 %v1815, %v1849
        %v1866 = vadd.f32 %v1816, %v1850
        %v1867 = vadd.f32 %v1817, %v1851
        %v1868 = vadd.f32 %v1818, %v1852
        %v1869 = vadd.f32 %v1819, %v1853
        %v1870 = vadd.f32 %v1820, %v1854
        %v1871 = vadd.f32 %v1821, %v1855
        %v1872 = vadd.f32 %v1822, %v1856
        %v1873 = vadd.f32 %v1823, %v1857
        %v1874 = vadd.f32 %v1824, %v1858
        %s1875 = scalar_lea.vmem [#allocation9], 3840
        %v1876 = vld [vmem:[%s1875] sm:$0xff]
        %v1877 = vld [vmem:[%s1875 + $0x8] sm:$0xff]
        %v1878 = vld [vmem:[%s1875 + $0x10] sm:$0xff]
        %v1879 = vld [vmem:[%s1875 + $0x18] sm:$0xff]
        %v1880 = vld [vmem:[%s1875 + $0x20] sm:$0xff]
        %v1881 = vld [vmem:[%s1875 + $0x28] sm:$0xff]
        %v1882 = vld [vmem:[%s1875 + $0x30] sm:$0xff]
        %v1883 = vld [vmem:[%s1875 + $0x38] sm:$0xff]
        %v1884 = vld [vmem:[%s1875 + $0x40] sm:$0xff]
        %v1885 = vld [vmem:[%s1875 + $0x48] sm:$0xff]
        %v1886 = vld [vmem:[%s1875 + $0x50] sm:$0xff]
        %v1887 = vld [vmem:[%s1875 + $0x58] sm:$0xff]
        %v1888 = vld [vmem:[%s1875 + $0x60] sm:$0xff]
        %v1889 = vld [vmem:[%s1875 + $0x68] sm:$0xff]
        %v1890 = vld [vmem:[%s1875 + $0x70] sm:$0xff]
        %v1891 = vld [vmem:[%s1875 + $0x78] sm:$0xff]
        %v1892 = vstv %s327
        %v1893 = vmul.f32 %v1892, %v1876
        %v1894 = vmul.f32 %v1892, %v1877
        %v1895 = vmul.f32 %v1892, %v1878
        %v1896 = vmul.f32 %v1892, %v1879
        %v1897 = vmul.f32 %v1892, %v1880
        %v1898 = vmul.f32 %v1892, %v1881
        %v1899 = vmul.f32 %v1892, %v1882
        %v1900 = vmul.f32 %v1892, %v1883
        %v1901 = vmul.f32 %v1892, %v1884
        %v1902 = vmul.f32 %v1892, %v1885
        %v1903 = vmul.f32 %v1892, %v1886
        %v1904 = vmul.f32 %v1892, %v1887
        %v1905 = vmul.f32 %v1892, %v1888
        %v1906 = vmul.f32 %v1892, %v1889
        %v1907 = vmul.f32 %v1892, %v1890
        %v1908 = vmul.f32 %v1892, %v1891
        %v1909 = vadd.f32 %v1859, %v1893
        %v1910 = vadd.f32 %v1860, %v1894
        %v1911 = vadd.f32 %v1861, %v1895
        %v1912 = vadd.f32 %v1862, %v1896
        %v1913 = vadd.f32 %v1863, %v1897
        %v1914 = vadd.f32 %v1864, %v1898
        %v1915 = vadd.f32 %v1865, %v1899
        %v1916 = vadd.f32 %v1866, %v1900
        %v1917 = vadd.f32 %v1867, %v1901
        %v1918 = vadd.f32 %v1868, %v1902
        %v1919 = vadd.f32 %v1869, %v1903
        %v1920 = vadd.f32 %v1870, %v1904
        %v1921 = vadd.f32 %v1871, %v1905
        %v1922 = vadd.f32 %v1872, %v1906
        %v1923 = vadd.f32 %v1873, %v1907
        %v1924 = vadd.f32 %v1874, %v1908
        %s1925 = scalar_lea.vmem [#allocation9], 3968
        %v1926 = vld [vmem:[%s1925] sm:$0xff]
        %v1927 = vld [vmem:[%s1925 + $0x8] sm:$0xff]
        %v1928 = vld [vmem:[%s1925 + $0x10] sm:$0xff]
        %v1929 = vld [vmem:[%s1925 + $0x18] sm:$0xff]
        %v1930 = vld [vmem:[%s1925 + $0x20] sm:$0xff]
        %v1931 = vld [vmem:[%s1925 + $0x28] sm:$0xff]
        %v1932 = vld [vmem:[%s1925 + $0x30] sm:$0xff]
        %v1933 = vld [vmem:[%s1925 + $0x38] sm:$0xff]
        %v1934 = vld [vmem:[%s1925 + $0x40] sm:$0xff]
        %v1935 = vld [vmem:[%s1925 + $0x48] sm:$0xff]
        %v1936 = vld [vmem:[%s1925 + $0x50] sm:$0xff]
        %v1937 = vld [vmem:[%s1925 + $0x58] sm:$0xff]
        %v1938 = vld [vmem:[%s1925 + $0x60] sm:$0xff]
        %v1939 = vld [vmem:[%s1925 + $0x68] sm:$0xff]
        %v1940 = vld [vmem:[%s1925 + $0x70] sm:$0xff]
        %v1941 = vld [vmem:[%s1925 + $0x78] sm:$0xff]
        %v1942 = vstv %s329
        %v1943 = vmul.f32 %v1942, %v1926
        %v1944 = vmul.f32 %v1942, %v1927
        %v1945 = vmul.f32 %v1942, %v1928
        %v1946 = vmul.f32 %v1942, %v1929
        %v1947 = vmul.f32 %v1942, %v1930
        %v1948 = vmul.f32 %v1942, %v1931
        %v1949 = vmul.f32 %v1942, %v1932
        %v1950 = vmul.f32 %v1942, %v1933
        %v1951 = vmul.f32 %v1942, %v1934
        %v1952 = vmul.f32 %v1942, %v1935
        %v1953 = vmul.f32 %v1942, %v1936
        %v1954 = vmul.f32 %v1942, %v1937
        %v1955 = vmul.f32 %v1942, %v1938
        %v1956 = vmul.f32 %v1942, %v1939
        %v1957 = vmul.f32 %v1942, %v1940
        %v1958 = vmul.f32 %v1942, %v1941
        %v1959 = vadd.f32 %v1909, %v1943
        %v1960 = vadd.f32 %v1910, %v1944
        %v1961 = vadd.f32 %v1911, %v1945
        %v1962 = vadd.f32 %v1912, %v1946
        %v1963 = vadd.f32 %v1913, %v1947
        %v1964 = vadd.f32 %v1914, %v1948
        %v1965 = vadd.f32 %v1915, %v1949
        %v1966 = vadd.f32 %v1916, %v1950
        %v1967 = vadd.f32 %v1917, %v1951
        %v1968 = vadd.f32 %v1918, %v1952
        %v1969 = vadd.f32 %v1919, %v1953
        %v1970 = vadd.f32 %v1920, %v1954
        %v1971 = vadd.f32 %v1921, %v1955
        %v1972 = vadd.f32 %v1922, %v1956
        %v1973 = vadd.f32 %v1923, %v1957
        %v1974 = vadd.f32 %v1924, %v1958
        %v1975 = vlaneseq
        %v1976 = vshrl.u32 %v1975, 7
        %v1977 = vadd.s32 %v1976, 8
        %v1978 = vadd.s32 %v1976, 16
        %v1979 = vadd.s32 %v1976, 24
        %v1980 = vadd.s32 %v1976, 32
        %v1981 = vadd.s32 %v1976, 40
        %v1982 = vadd.s32 %v1976, 48
        %v1983 = vadd.s32 %v1976, 56
        %v1984 = vadd.s32 %v1976, 64
        %v1985 = vadd.s32 %v1976, 72
        %v1986 = vadd.s32 %v1976, 80
        %v1987 = vadd.s32 %v1976, 88
        %v1988 = vadd.s32 %v1976, 96
        %v1989 = vadd.s32 %v1976, 104
        %v1990 = vadd.s32 %v1976, 112
        %v1991 = vadd.s32 %v1976, 120
        %v1992 = vlaneseq
        %v1993 = vand.u32 %v1992, 127
        %1994 = vrot.lane.b32.xlu0 %v1959, 1
        %v1995 = vpop.permute.xlu0 %1994
        %1996 = vrot.lane.b32.xlu0 %v1960, 1
        %v1997 = vpop.permute.xlu0 %1996
        %1998 = vrot.lane.b32.xlu0 %v1961, 1
        %v1999 = vpop.permute.xlu0 %1998
        %2000 = vrot.lane.b32.xlu0 %v1962, 1
        %v2001 = vpop.permute.xlu0 %2000
        %2002 = vrot.lane.b32.xlu0 %v1963, 1
        %v2003 = vpop.permute.xlu0 %2002
        %2004 = vrot.lane.b32.xlu0 %v1964, 1
        %v2005 = vpop.permute.xlu0 %2004
        %2006 = vrot.lane.b32.xlu0 %v1965, 1
        %v2007 = vpop.permute.xlu0 %2006
        %2008 = vrot.lane.b32.xlu0 %v1966, 1
        %v2009 = vpop.permute.xlu0 %2008
        %2010 = vrot.lane.b32.xlu0 %v1967, 1
        %v2011 = vpop.permute.xlu0 %2010
        %2012 = vrot.lane.b32.xlu0 %v1968, 1
        %v2013 = vpop.permute.xlu0 %2012
        %2014 = vrot.lane.b32.xlu0 %v1969, 1
        %v2015 = vpop.permute.xlu0 %2014
        %2016 = vrot.lane.b32.xlu0 %v1970, 1
        %v2017 = vpop.permute.xlu0 %2016
        %2018 = vrot.lane.b32.xlu0 %v1971, 1
        %v2019 = vpop.permute.xlu0 %2018
        %2020 = vrot.lane.b32.xlu0 %v1972, 1
        %v2021 = vpop.permute.xlu0 %2020
        %2022 = vrot.lane.b32.xlu0 %v1973, 1
        %v2023 = vpop.permute.xlu0 %2022
        %2024 = vrot.lane.b32.xlu0 %v1974, 1
        %v2025 = vpop.permute.xlu0 %2024
        %vm2026 = vcmp.lt.s32.totalorder %v1993, 1
        %v2027 = vsel %vm2026, 0.0, %v1995
        %v2028 = vsel %vm2026, 0.0, %v1997
        %v2029 = vsel %vm2026, 0.0, %v1999
        %v2030 = vsel %vm2026, 0.0, %v2001
        %v2031 = vsel %vm2026, 0.0, %v2003
        %v2032 = vsel %vm2026, 0.0, %v2005
        %v2033 = vsel %vm2026, 0.0, %v2007
        %v2034 = vsel %vm2026, 0.0, %v2009
        %v2035 = vsel %vm2026, 0.0, %v2011
        %v2036 = vsel %vm2026, 0.0, %v2013
        %v2037 = vsel %vm2026, 0.0, %v2015
        %v2038 = vsel %vm2026, 0.0, %v2017
        %v2039 = vsel %vm2026, 0.0, %v2019
        %v2040 = vsel %vm2026, 0.0, %v2021
        %v2041 = vsel %vm2026, 0.0, %v2023
        %v2042 = vsel %vm2026, 0.0, %v2025
        %v2043 = vrot.slane %v2027, 7
        %v2044 = vrot.slane %v2028, 7
        %v2045 = vrot.slane %v2029, 7
        %v2046 = vrot.slane %v2030, 7
        %v2047 = vrot.slane %v2031, 7
        %v2048 = vrot.slane %v2032, 7
        %v2049 = vrot.slane %v2033, 7
        %v2050 = vrot.slane %v2034, 7
        %v2051 = vrot.slane %v2035, 7
        %v2052 = vrot.slane %v2036, 7
        %v2053 = vrot.slane %v2037, 7
        %v2054 = vrot.slane %v2038, 7
        %v2055 = vrot.slane %v2039, 7
        %v2056 = vrot.slane %v2040, 7
        %v2057 = vrot.slane %v2041, 7
        %v2058 = vrot.slane %v2042, 7
        %vm2059 = vcmp.lt.s32.totalorder %v1976, 1
        %v2060 = vsel %vm2059, %v2057, %v2058
        %v2061 = vsel %vm2059, %v2056, %v2057
        %v2062 = vsel %vm2059, %v2055, %v2056
        %v2063 = vsel %vm2059, %v2054, %v2055
        %v2064 = vsel %vm2059, %v2053, %v2054
        %v2065 = vsel %vm2059, %v2052, %v2053
        %v2066 = vsel %vm2059, %v2051, %v2052
        %v2067 = vsel %vm2059, %v2050, %v2051
        %v2068 = vsel %vm2059, %v2049, %v2050
        %v2069 = vsel %vm2059, %v2048, %v2049
        %v2070 = vsel %vm2059, %v2047, %v2048
        %v2071 = vsel %vm2059, %v2046, %v2047
        %v2072 = vsel %vm2059, %v2045, %v2046
        %v2073 = vsel %vm2059, %v2044, %v2045
        %v2074 = vsel %vm2059, %v2043, %v2044
        %v2075 = vsel %vm2059, %v2058, %v2043
        %vm2076 = vcmp.lt.s32.totalorder %v1977, 1
        %vm2077 = vcmp.lt.s32.totalorder %v1978, 1
        %vm2078 = vcmp.lt.s32.totalorder %v1979, 1
        %vm2079 = vcmp.lt.s32.totalorder %v1980, 1
        %vm2080 = vcmp.lt.s32.totalorder %v1981, 1
        %vm2081 = vcmp.lt.s32.totalorder %v1982, 1
        %vm2082 = vcmp.lt.s32.totalorder %v1983, 1
        %vm2083 = vcmp.lt.s32.totalorder %v1984, 1
        %vm2084 = vcmp.lt.s32.totalorder %v1985, 1
        %vm2085 = vcmp.lt.s32.totalorder %v1986, 1
        %vm2086 = vcmp.lt.s32.totalorder %v1987, 1
        %vm2087 = vcmp.lt.s32.totalorder %v1988, 1
        %vm2088 = vcmp.lt.s32.totalorder %v1989, 1
        %vm2089 = vcmp.lt.s32.totalorder %v1990, 1
        %vm2090 = vcmp.lt.s32.totalorder %v1991, 1
        %v2091 = vsel %vm2059, 0.0, %v2075
        %v2092 = vsel %vm2076, 0.0, %v2074
        %v2093 = vsel %vm2077, 0.0, %v2073
        %v2094 = vsel %vm2078, 0.0, %v2072
        %v2095 = vsel %vm2079, 0.0, %v2071
        %v2096 = vsel %vm2080, 0.0, %v2070
        %v2097 = vsel %vm2081, 0.0, %v2069
        %v2098 = vsel %vm2082, 0.0, %v2068
        %v2099 = vsel %vm2083, 0.0, %v2067
        %v2100 = vsel %vm2084, 0.0, %v2066
        %v2101 = vsel %vm2085, 0.0, %v2065
        %v2102 = vsel %vm2086, 0.0, %v2064
        %v2103 = vsel %vm2087, 0.0, %v2063
        %v2104 = vsel %vm2088, 0.0, %v2062
        %v2105 = vsel %vm2089, 0.0, %v2061
        %v2106 = vsel %vm2090, 0.0, %v2060
        %v2107 = vstv %s330
        %v2108 = vmul.f32 %v2107, %v2091
        %v2109 = vmul.f32 %v2107, %v2092
        %v2110 = vmul.f32 %v2107, %v2093
        %v2111 = vmul.f32 %v2107, %v2094
        %v2112 = vmul.f32 %v2107, %v2095
        %v2113 = vmul.f32 %v2107, %v2096
        %v2114 = vmul.f32 %v2107, %v2097
        %v2115 = vmul.f32 %v2107, %v2098
        %v2116 = vmul.f32 %v2107, %v2099
        %v2117 = vmul.f32 %v2107, %v2100
        %v2118 = vmul.f32 %v2107, %v2101
        %v2119 = vmul.f32 %v2107, %v2102
        %v2120 = vmul.f32 %v2107, %v2103
        %v2121 = vmul.f32 %v2107, %v2104
        %v2122 = vmul.f32 %v2107, %v2105
        %v2123 = vmul.f32 %v2107, %v2106
        %v2124 = vadd.f32 %v2108, 0.0
        %v2125 = vadd.f32 %v2109, 0.0
        %v2126 = vadd.f32 %v2110, 0.0
        %v2127 = vadd.f32 %v2111, 0.0
        %v2128 = vadd.f32 %v2112, 0.0
        %v2129 = vadd.f32 %v2113, 0.0
        %v2130 = vadd.f32 %v2114, 0.0
        %v2131 = vadd.f32 %v2115, 0.0
        %v2132 = vadd.f32 %v2116, 0.0
        %v2133 = vadd.f32 %v2117, 0.0
        %v2134 = vadd.f32 %v2118, 0.0
        %v2135 = vadd.f32 %v2119, 0.0
        %v2136 = vadd.f32 %v2120, 0.0
        %v2137 = vadd.f32 %v2121, 0.0
        %v2138 = vadd.f32 %v2122, 0.0
        %v2139 = vadd.f32 %v2123, 0.0
        %v2140 = vstv %s339
        %v2141 = vmul.f32 %v2140, %v2091
        %v2142 = vmul.f32 %v2140, %v2092
        %v2143 = vmul.f32 %v2140, %v2093
        %v2144 = vmul.f32 %v2140, %v2094
        %v2145 = vmul.f32 %v2140, %v2095
        %v2146 = vmul.f32 %v2140, %v2096
        %v2147 = vmul.f32 %v2140, %v2097
        %v2148 = vmul.f32 %v2140, %v2098
        %v2149 = vmul.f32 %v2140, %v2099
        %v2150 = vmul.f32 %v2140, %v2100
        %v2151 = vmul.f32 %v2140, %v2101
        %v2152 = vmul.f32 %v2140, %v2102
        %v2153 = vmul.f32 %v2140, %v2103
        %v2154 = vmul.f32 %v2140, %v2104
        %v2155 = vmul.f32 %v2140, %v2105
        %v2156 = vmul.f32 %v2140, %v2106
        %v2157 = vadd.f32 %v2141, 0.0
        %v2158 = vadd.f32 %v2142, 0.0
        %v2159 = vadd.f32 %v2143, 0.0
        %v2160 = vadd.f32 %v2144, 0.0
        %v2161 = vadd.f32 %v2145, 0.0
        %v2162 = vadd.f32 %v2146, 0.0
        %v2163 = vadd.f32 %v2147, 0.0
        %v2164 = vadd.f32 %v2148, 0.0
        %v2165 = vadd.f32 %v2149, 0.0
        %v2166 = vadd.f32 %v2150, 0.0
        %v2167 = vadd.f32 %v2151, 0.0
        %v2168 = vadd.f32 %v2152, 0.0
        %v2169 = vadd.f32 %v2153, 0.0
        %v2170 = vadd.f32 %v2154, 0.0
        %v2171 = vadd.f32 %v2155, 0.0
        %v2172 = vadd.f32 %v2156, 0.0
        %v2173 = vstv %s348
        %v2174 = vmul.f32 %v2173, %v2091
        %v2175 = vmul.f32 %v2173, %v2092
        %v2176 = vmul.f32 %v2173, %v2093
        %v2177 = vmul.f32 %v2173, %v2094
        %v2178 = vmul.f32 %v2173, %v2095
        %v2179 = vmul.f32 %v2173, %v2096
        %v2180 = vmul.f32 %v2173, %v2097
        %v2181 = vmul.f32 %v2173, %v2098
        %v2182 = vmul.f32 %v2173, %v2099
        %v2183 = vmul.f32 %v2173, %v2100
        %v2184 = vmul.f32 %v2173, %v2101
        %v2185 = vmul.f32 %v2173, %v2102
        %v2186 = vmul.f32 %v2173, %v2103
        %v2187 = vmul.f32 %v2173, %v2104
        %v2188 = vmul.f32 %v2173, %v2105
        %v2189 = vmul.f32 %v2173, %v2106
        %v2190 = vadd.f32 %v2174, 0.0
        %v2191 = vadd.f32 %v2175, 0.0
        %v2192 = vadd.f32 %v2176, 0.0
        %v2193 = vadd.f32 %v2177, 0.0
        %v2194 = vadd.f32 %v2178, 0.0
        %v2195 = vadd.f32 %v2179, 0.0
        %v2196 = vadd.f32 %v2180, 0.0
        %v2197 = vadd.f32 %v2181, 0.0
        %v2198 = vadd.f32 %v2182, 0.0
        %v2199 = vadd.f32 %v2183, 0.0
        %v2200 = vadd.f32 %v2184, 0.0
        %v2201 = vadd.f32 %v2185, 0.0
        %v2202 = vadd.f32 %v2186, 0.0
        %v2203 = vadd.f32 %v2187, 0.0
        %v2204 = vadd.f32 %v2188, 0.0
        %v2205 = vadd.f32 %v2189, 0.0
        %v2206 = vstv %s333
        %v2207 = vmul.f32 %v2206, %v2027
        %v2208 = vmul.f32 %v2206, %v2028
        %v2209 = vmul.f32 %v2206, %v2029
        %v2210 = vmul.f32 %v2206, %v2030
        %v2211 = vmul.f32 %v2206, %v2031
        %v2212 = vmul.f32 %v2206, %v2032
        %v2213 = vmul.f32 %v2206, %v2033
        %v2214 = vmul.f32 %v2206, %v2034
        %v2215 = vmul.f32 %v2206, %v2035
        %v2216 = vmul.f32 %v2206, %v2036
        %v2217 = vmul.f32 %v2206, %v2037
        %v2218 = vmul.f32 %v2206, %v2038
        %v2219 = vmul.f32 %v2206, %v2039
        %v2220 = vmul.f32 %v2206, %v2040
        %v2221 = vmul.f32 %v2206, %v2041
        %v2222 = vmul.f32 %v2206, %v2042
        %v2223 = vadd.f32 %v2124, %v2207
        %v2224 = vadd.f32 %v2125, %v2208
        %v2225 = vadd.f32 %v2126, %v2209
        %v2226 = vadd.f32 %v2127, %v2210
        %v2227 = vadd.f32 %v2128, %v2211
        %v2228 = vadd.f32 %v2129, %v2212
        %v2229 = vadd.f32 %v2130, %v2213
        %v2230 = vadd.f32 %v2131, %v2214
        %v2231 = vadd.f32 %v2132, %v2215
        %v2232 = vadd.f32 %v2133, %v2216
        %v2233 = vadd.f32 %v2134, %v2217
        %v2234 = vadd.f32 %v2135, %v2218
        %v2235 = vadd.f32 %v2136, %v2219
        %v2236 = vadd.f32 %v2137, %v2220
        %v2237 = vadd.f32 %v2138, %v2221
        %v2238 = vadd.f32 %v2139, %v2222
        %v2239 = vstv %s342
        %v2240 = vmul.f32 %v2239, %v2027
        %v2241 = vmul.f32 %v2239, %v2028
        %v2242 = vmul.f32 %v2239, %v2029
        %v2243 = vmul.f32 %v2239, %v2030
        %v2244 = vmul.f32 %v2239, %v2031
        %v2245 = vmul.f32 %v2239, %v2032
        %v2246 = vmul.f32 %v2239, %v2033
        %v2247 = vmul.f32 %v2239, %v2034
        %v2248 = vmul.f32 %v2239, %v2035
        %v2249 = vmul.f32 %v2239, %v2036
        %v2250 = vmul.f32 %v2239, %v2037
        %v2251 = vmul.f32 %v2239, %v2038
        %v2252 = vmul.f32 %v2239, %v2039
        %v2253 = vmul.f32 %v2239, %v2040
        %v2254 = vmul.f32 %v2239, %v2041
        %v2255 = vmul.f32 %v2239, %v2042
        %v2256 = vadd.f32 %v2157, %v2240
        %v2257 = vadd.f32 %v2158, %v2241
        %v2258 = vadd.f32 %v2159, %v2242
        %v2259 = vadd.f32 %v2160, %v2243
        %v2260 = vadd.f32 %v2161, %v2244
        %v2261 = vadd.f32 %v2162, %v2245
        %v2262 = vadd.f32 %v2163, %v2246
        %v2263 = vadd.f32 %v2164, %v2247
        %v2264 = vadd.f32 %v2165, %v2248
        %v2265 = vadd.f32 %v2166, %v2249
        %v2266 = vadd.f32 %v2167, %v2250
        %v2267 = vadd.f32 %v2168, %v2251
        %v2268 = vadd.f32 %v2169, %v2252
        %v2269 = vadd.f32 %v2170, %v2253
        %v2270 = vadd.f32 %v2171, %v2254
        %v2271 = vadd.f32 %v2172, %v2255
        %v2272 = vstv %s351
        %v2273 = vmul.f32 %v2272, %v2027
        %v2274 = vmul.f32 %v2272, %v2028
        %v2275 = vmul.f32 %v2272, %v2029
        %v2276 = vmul.f32 %v2272, %v2030
        %v2277 = vmul.f32 %v2272, %v2031
        %v2278 = vmul.f32 %v2272, %v2032
        %v2279 = vmul.f32 %v2272, %v2033
        %v2280 = vmul.f32 %v2272, %v2034
        %v2281 = vmul.f32 %v2272, %v2035
        %v2282 = vmul.f32 %v2272, %v2036
        %v2283 = vmul.f32 %v2272, %v2037
        %v2284 = vmul.f32 %v2272, %v2038
        %v2285 = vmul.f32 %v2272, %v2039
        %v2286 = vmul.f32 %v2272, %v2040
        %v2287 = vmul.f32 %v2272, %v2041
        %v2288 = vmul.f32 %v2272, %v2042
        %v2289 = vadd.f32 %v2190, %v2273
        %v2290 = vadd.f32 %v2191, %v2274
        %v2291 = vadd.f32 %v2192, %v2275
        %v2292 = vadd.f32 %v2193, %v2276
        %v2293 = vadd.f32 %v2194, %v2277
        %v2294 = vadd.f32 %v2195, %v2278
        %v2295 = vadd.f32 %v2196, %v2279
        %v2296 = vadd.f32 %v2197, %v2280
        %v2297 = vadd.f32 %v2198, %v2281
        %v2298 = vadd.f32 %v2199, %v2282
        %v2299 = vadd.f32 %v2200, %v2283
        %v2300 = vadd.f32 %v2201, %v2284
        %v2301 = vadd.f32 %v2202, %v2285
        %v2302 = vadd.f32 %v2203, %v2286
        %v2303 = vadd.f32 %v2204, %v2287
        %v2304 = vadd.f32 %v2205, %v2288
        %v2305 = vrot.slane %v2027, 1
        %v2306 = vrot.slane %v2028, 1
        %v2307 = vrot.slane %v2029, 1
        %v2308 = vrot.slane %v2030, 1
        %v2309 = vrot.slane %v2031, 1
        %v2310 = vrot.slane %v2032, 1
        %v2311 = vrot.slane %v2033, 1
        %v2312 = vrot.slane %v2034, 1
        %v2313 = vrot.slane %v2035, 1
        %v2314 = vrot.slane %v2036, 1
        %v2315 = vrot.slane %v2037, 1
        %v2316 = vrot.slane %v2038, 1
        %v2317 = vrot.slane %v2039, 1
        %v2318 = vrot.slane %v2040, 1
        %v2319 = vrot.slane %v2041, 1
        %v2320 = vrot.slane %v2042, 1
        %vm2321 = vcmp.lt.s32.totalorder %v1976, 7
        %v2322 = vsel %vm2321, %v2319, %v2320
        %v2323 = vsel %vm2321, %v2318, %v2319
        %v2324 = vsel %vm2321, %v2317, %v2318
        %v2325 = vsel %vm2321, %v2316, %v2317
        %v2326 = vsel %vm2321, %v2315, %v2316
        %v2327 = vsel %vm2321, %v2314, %v2315
        %v2328 = vsel %vm2321, %v2313, %v2314
        %v2329 = vsel %vm2321, %v2312, %v2313
        %v2330 = vsel %vm2321, %v2311, %v2312
        %v2331 = vsel %vm2321, %v2310, %v2311
        %v2332 = vsel %vm2321, %v2309, %v2310
        %v2333 = vsel %vm2321, %v2308, %v2309
        %v2334 = vsel %vm2321, %v2307, %v2308
        %v2335 = vsel %vm2321, %v2306, %v2307
        %v2336 = vsel %vm2321, %v2305, %v2306
        %v2337 = vsel %vm2321, %v2320, %v2305
        %vm2338 = vcmp.ge.s32.totalorder %v1976, 127
        %vm2339 = vcmp.ge.s32.totalorder %v1977, 127
        %vm2340 = vcmp.ge.s32.totalorder %v1978, 127
        %vm2341 = vcmp.ge.s32.totalorder %v1979, 127
        %vm2342 = vcmp.ge.s32.totalorder %v1980, 127
        %vm2343 = vcmp.ge.s32.totalorder %v1981, 127
        %vm2344 = vcmp.ge.s32.totalorder %v1982, 127
        %vm2345 = vcmp.ge.s32.totalorder %v1983, 127
        %vm2346 = vcmp.ge.s32.totalorder %v1984, 127
        %vm2347 = vcmp.ge.s32.totalorder %v1985, 127
        %vm2348 = vcmp.ge.s32.totalorder %v1986, 127
        %vm2349 = vcmp.ge.s32.totalorder %v1987, 127
        %vm2350 = vcmp.ge.s32.totalorder %v1988, 127
        %vm2351 = vcmp.ge.s32.totalorder %v1989, 127
        %vm2352 = vcmp.ge.s32.totalorder %v1990, 127
        %vm2353 = vcmp.ge.s32.totalorder %v1991, 127
        %v2354 = vsel %vm2338, 0.0, %v2336
        %v2355 = vsel %vm2339, 0.0, %v2335
        %v2356 = vsel %vm2340, 0.0, %v2334
        %v2357 = vsel %vm2341, 0.0, %v2333
        %v2358 = vsel %vm2342, 0.0, %v2332
        %v2359 = vsel %vm2343, 0.0, %v2331
        %v2360 = vsel %vm2344, 0.0, %v2330
        %v2361 = vsel %vm2345, 0.0, %v2329
        %v2362 = vsel %vm2346, 0.0, %v2328
        %v2363 = vsel %vm2347, 0.0, %v2327
        %v2364 = vsel %vm2348, 0.0, %v2326
        %v2365 = vsel %vm2349, 0.0, %v2325
        %v2366 = vsel %vm2350, 0.0, %v2324
        %v2367 = vsel %vm2351, 0.0, %v2323
        %v2368 = vsel %vm2352, 0.0, %v2322
        %v2369 = vsel %vm2353, 0.0, %v2337
        %v2370 = vstv %s336
        %v2371 = vmul.f32 %v2370, %v2354
        %v2372 = vmul.f32 %v2370, %v2355
        %v2373 = vmul.f32 %v2370, %v2356
        %v2374 = vmul.f32 %v2370, %v2357
        %v2375 = vmul.f32 %v2370, %v2358
        %v2376 = vmul.f32 %v2370, %v2359
        %v2377 = vmul.f32 %v2370, %v2360
        %v2378 = vmul.f32 %v2370, %v2361
        %v2379 = vmul.f32 %v2370, %v2362
        %v2380 = vmul.f32 %v2370, %v2363
        %v2381 = vmul.f32 %v2370, %v2364
        %v2382 = vmul.f32 %v2370, %v2365
        %v2383 = vmul.f32 %v2370, %v2366
        %v2384 = vmul.f32 %v2370, %v2367
        %v2385 = vmul.f32 %v2370, %v2368
        %v2386 = vmul.f32 %v2370, %v2369
        %v2387 = vadd.f32 %v2223, %v2371
        %v2388 = vadd.f32 %v2224, %v2372
        %v2389 = vadd.f32 %v2225, %v2373
        %v2390 = vadd.f32 %v2226, %v2374
        %v2391 = vadd.f32 %v2227, %v2375
        %v2392 = vadd.f32 %v2228, %v2376
        %v2393 = vadd.f32 %v2229, %v2377
        %v2394 = vadd.f32 %v2230, %v2378
        %v2395 = vadd.f32 %v2231, %v2379
        %v2396 = vadd.f32 %v2232, %v2380
        %v2397 = vadd.f32 %v2233, %v2381
        %v2398 = vadd.f32 %v2234, %v2382
        %v2399 = vadd.f32 %v2235, %v2383
        %v2400 = vadd.f32 %v2236, %v2384
        %v2401 = vadd.f32 %v2237, %v2385
        %v2402 = vadd.f32 %v2238, %v2386
        %v2403 = vstv %s345
        %v2404 = vmul.f32 %v2403, %v2354
        %v2405 = vmul.f32 %v2403, %v2355
        %v2406 = vmul.f32 %v2403, %v2356
        %v2407 = vmul.f32 %v2403, %v2357
        %v2408 = vmul.f32 %v2403, %v2358
        %v2409 = vmul.f32 %v2403, %v2359
        %v2410 = vmul.f32 %v2403, %v2360
        %v2411 = vmul.f32 %v2403, %v2361
        %v2412 = vmul.f32 %v2403, %v2362
        %v2413 = vmul.f32 %v2403, %v2363
        %v2414 = vmul.f32 %v2403, %v2364
        %v2415 = vmul.f32 %v2403, %v2365
        %v2416 = vmul.f32 %v2403, %v2366
        %v2417 = vmul.f32 %v2403, %v2367
        %v2418 = vmul.f32 %v2403, %v2368
        %v2419 = vmul.f32 %v2403, %v2369
        %v2420 = vadd.f32 %v2256, %v2404
        %v2421 = vadd.f32 %v2257, %v2405
        %v2422 = vadd.f32 %v2258, %v2406
        %v2423 = vadd.f32 %v2259, %v2407
        %v2424 = vadd.f32 %v2260, %v2408
        %v2425 = vadd.f32 %v2261, %v2409
        %v2426 = vadd.f32 %v2262, %v2410
        %v2427 = vadd.f32 %v2263, %v2411
        %v2428 = vadd.f32 %v2264, %v2412
        %v2429 = vadd.f32 %v2265, %v2413
        %v2430 = vadd.f32 %v2266, %v2414
        %v2431 = vadd.f32 %v2267, %v2415
        %v2432 = vadd.f32 %v2268, %v2416
        %v2433 = vadd.f32 %v2269, %v2417
        %v2434 = vadd.f32 %v2270, %v2418
        %v2435 = vadd.f32 %v2271, %v2419
        %v2436 = vstv %s354
        %v2437 = vmul.f32 %v2436, %v2354
        %v2438 = vmul.f32 %v2436, %v2355
        %v2439 = vmul.f32 %v2436, %v2356
        %v2440 = vmul.f32 %v2436, %v2357
        %v2441 = vmul.f32 %v2436, %v2358
        %v2442 = vmul.f32 %v2436, %v2359
        %v2443 = vmul.f32 %v2436, %v2360
        %v2444 = vmul.f32 %v2436, %v2361
        %v2445 = vmul.f32 %v2436, %v2362
        %v2446 = vmul.f32 %v2436, %v2363
        %v2447 = vmul.f32 %v2436, %v2364
        %v2448 = vmul.f32 %v2436, %v2365
        %v2449 = vmul.f32 %v2436, %v2366
        %v2450 = vmul.f32 %v2436, %v2367
        %v2451 = vmul.f32 %v2436, %v2368
        %v2452 = vmul.f32 %v2436, %v2369
        %v2453 = vadd.f32 %v2289, %v2437
        %v2454 = vadd.f32 %v2290, %v2438
        %v2455 = vadd.f32 %v2291, %v2439
        %v2456 = vadd.f32 %v2292, %v2440
        %v2457 = vadd.f32 %v2293, %v2441
        %v2458 = vadd.f32 %v2294, %v2442
        %v2459 = vadd.f32 %v2295, %v2443
        %v2460 = vadd.f32 %v2296, %v2444
        %v2461 = vadd.f32 %v2297, %v2445
        %v2462 = vadd.f32 %v2298, %v2446
        %v2463 = vadd.f32 %v2299, %v2447
        %v2464 = vadd.f32 %v2300, %v2448
        %v2465 = vadd.f32 %v2301, %v2449
        %v2466 = vadd.f32 %v2302, %v2450
        %v2467 = vadd.f32 %v2303, %v2451
        %v2468 = vadd.f32 %v2304, %v2452
        %v2469 = vrot.slane %v1959, 7
        %v2470 = vrot.slane %v1960, 7
        %v2471 = vrot.slane %v1961, 7
        %v2472 = vrot.slane %v1962, 7
        %v2473 = vrot.slane %v1963, 7
        %v2474 = vrot.slane %v1964, 7
        %v2475 = vrot.slane %v1965, 7
        %v2476 = vrot.slane %v1966, 7
        %v2477 = vrot.slane %v1967, 7
        %v2478 = vrot.slane %v1968, 7
        %v2479 = vrot.slane %v1969, 7
        %v2480 = vrot.slane %v1970, 7
        %v2481 = vrot.slane %v1971, 7
        %v2482 = vrot.slane %v1972, 7
        %v2483 = vrot.slane %v1973, 7
        %v2484 = vrot.slane %v1974, 7
        %v2485 = vsel %vm2059, %v2483, %v2484
        %v2486 = vsel %vm2059, %v2482, %v2483
        %v2487 = vsel %vm2059, %v2481, %v2482
        %v2488 = vsel %vm2059, %v2480, %v2481
        %v2489 = vsel %vm2059, %v2479, %v2480
        %v2490 = vsel %vm2059, %v2478, %v2479
        %v2491 = vsel %vm2059, %v2477, %v2478
        %v2492 = vsel %vm2059, %v2476, %v2477
        %v2493 = vsel %vm2059, %v2475, %v2476
        %v2494 = vsel %vm2059, %v2474, %v2475
        %v2495 = vsel %vm2059, %v2473, %v2474
        %v2496 = vsel %vm2059, %v2472, %v2473
        %v2497 = vsel %vm2059, %v2471, %v2472
        %v2498 = vsel %vm2059, %v2470, %v2471
        %v2499 = vsel %vm2059, %v2469, %v2470
        %v2500 = vsel %vm2059, %v2484, %v2469
        %v2501 = vsel %vm2059, 0.0, %v2500
        %v2502 = vsel %vm2076, 0.0, %v2499
        %v2503 = vsel %vm2077, 0.0, %v2498
        %v2504 = vsel %vm2078, 0.0, %v2497
        %v2505 = vsel %vm2079, 0.0, %v2496
        %v2506 = vsel %vm2080, 0.0, %v2495
        %v2507 = vsel %vm2081, 0.0, %v2494
        %v2508 = vsel %vm2082, 0.0, %v2493
        %v2509 = vsel %vm2083, 0.0, %v2492
        %v2510 = vsel %vm2084, 0.0, %v2491
        %v2511 = vsel %vm2085, 0.0, %v2490
        %v2512 = vsel %vm2086, 0.0, %v2489
        %v2513 = vsel %vm2087, 0.0, %v2488
        %v2514 = vsel %vm2088, 0.0, %v2487
        %v2515 = vsel %vm2089, 0.0, %v2486
        %v2516 = vsel %vm2090, 0.0, %v2485
        %v2517 = vstv %s331
        %v2518 = vmul.f32 %v2517, %v2501
        %v2519 = vmul.f32 %v2517, %v2502
        %v2520 = vmul.f32 %v2517, %v2503
        %v2521 = vmul.f32 %v2517, %v2504
        %v2522 = vmul.f32 %v2517, %v2505
        %v2523 = vmul.f32 %v2517, %v2506
        %v2524 = vmul.f32 %v2517, %v2507
        %v2525 = vmul.f32 %v2517, %v2508
        %v2526 = vmul.f32 %v2517, %v2509
        %v2527 = vmul.f32 %v2517, %v2510
        %v2528 = vmul.f32 %v2517, %v2511
        %v2529 = vmul.f32 %v2517, %v2512
        %v2530 = vmul.f32 %v2517, %v2513
        %v2531 = vmul.f32 %v2517, %v2514
        %v2532 = vmul.f32 %v2517, %v2515
        %v2533 = vmul.f32 %v2517, %v2516
        %v2534 = vadd.f32 %v2387, %v2518
        %v2535 = vadd.f32 %v2388, %v2519
        %v2536 = vadd.f32 %v2389, %v2520
        %v2537 = vadd.f32 %v2390, %v2521
        %v2538 = vadd.f32 %v2391, %v2522
        %v2539 = vadd.f32 %v2392, %v2523
        %v2540 = vadd.f32 %v2393, %v2524
        %v2541 = vadd.f32 %v2394, %v2525
        %v2542 = vadd.f32 %v2395, %v2526
        %v2543 = vadd.f32 %v2396, %v2527
        %v2544 = vadd.f32 %v2397, %v2528
        %v2545 = vadd.f32 %v2398, %v2529
        %v2546 = vadd.f32 %v2399, %v2530
        %v2547 = vadd.f32 %v2400, %v2531
        %v2548 = vadd.f32 %v2401, %v2532
        %v2549 = vadd.f32 %v2402, %v2533
        %v2550 = vstv %s340
        %v2551 = vmul.f32 %v2550, %v2501
        %v2552 = vmul.f32 %v2550, %v2502
        %v2553 = vmul.f32 %v2550, %v2503
        %v2554 = vmul.f32 %v2550, %v2504
        %v2555 = vmul.f32 %v2550, %v2505
        %v2556 = vmul.f32 %v2550, %v2506
        %v2557 = vmul.f32 %v2550, %v2507
        %v2558 = vmul.f32 %v2550, %v2508
        %v2559 = vmul.f32 %v2550, %v2509
        %v2560 = vmul.f32 %v2550, %v2510
        %v2561 = vmul.f32 %v2550, %v2511
        %v2562 = vmul.f32 %v2550, %v2512
        %v2563 = vmul.f32 %v2550, %v2513
        %v2564 = vmul.f32 %v2550, %v2514
        %v2565 = vmul.f32 %v2550, %v2515
        %v2566 = vmul.f32 %v2550, %v2516
        %v2567 = vadd.f32 %v2420, %v2551
        %v2568 = vadd.f32 %v2421, %v2552
        %v2569 = vadd.f32 %v2422, %v2553
        %v2570 = vadd.f32 %v2423, %v2554
        %v2571 = vadd.f32 %v2424, %v2555
        %v2572 = vadd.f32 %v2425, %v2556
        %v2573 = vadd.f32 %v2426, %v2557
        %v2574 = vadd.f32 %v2427, %v2558
        %v2575 = vadd.f32 %v2428, %v2559
        %v2576 = vadd.f32 %v2429, %v2560
        %v2577 = vadd.f32 %v2430, %v2561
        %v2578 = vadd.f32 %v2431, %v2562
        %v2579 = vadd.f32 %v2432, %v2563
        %v2580 = vadd.f32 %v2433, %v2564
        %v2581 = vadd.f32 %v2434, %v2565
        %v2582 = vadd.f32 %v2435, %v2566
        %v2583 = vstv %s349
        %v2584 = vmul.f32 %v2583, %v2501
        %v2585 = vmul.f32 %v2583, %v2502
        %v2586 = vmul.f32 %v2583, %v2503
        %v2587 = vmul.f32 %v2583, %v2504
        %v2588 = vmul.f32 %v2583, %v2505
        %v2589 = vmul.f32 %v2583, %v2506
        %v2590 = vmul.f32 %v2583, %v2507
        %v2591 = vmul.f32 %v2583, %v2508
        %v2592 = vmul.f32 %v2583, %v2509
        %v2593 = vmul.f32 %v2583, %v2510
        %v2594 = vmul.f32 %v2583, %v2511
        %v2595 = vmul.f32 %v2583, %v2512
        %v2596 = vmul.f32 %v2583, %v2513
        %v2597 = vmul.f32 %v2583, %v2514
        %v2598 = vmul.f32 %v2583, %v2515
        %v2599 = vmul.f32 %v2583, %v2516
        %v2600 = vadd.f32 %v2453, %v2584
        %v2601 = vadd.f32 %v2454, %v2585
        %v2602 = vadd.f32 %v2455, %v2586
        %v2603 = vadd.f32 %v2456, %v2587
        %v2604 = vadd.f32 %v2457, %v2588
        %v2605 = vadd.f32 %v2458, %v2589
        %v2606 = vadd.f32 %v2459, %v2590
        %v2607 = vadd.f32 %v2460, %v2591
        %v2608 = vadd.f32 %v2461, %v2592
        %v2609 = vadd.f32 %v2462, %v2593
        %v2610 = vadd.f32 %v2463, %v2594
        %v2611 = vadd.f32 %v2464, %v2595
        %v2612 = vadd.f32 %v2465, %v2596
        %v2613 = vadd.f32 %v2466, %v2597
        %v2614 = vadd.f32 %v2467, %v2598
        %v2615 = vadd.f32 %v2468, %v2599
        %v2616 = vstv %s334
        %v2617 = vmul.f32 %v2616, %v1959
        %v2618 = vmul.f32 %v2616, %v1960
        %v2619 = vmul.f32 %v2616, %v1961
        %v2620 = vmul.f32 %v2616, %v1962
        %v2621 = vmul.f32 %v2616, %v1963
        %v2622 = vmul.f32 %v2616, %v1964
        %v2623 = vmul.f32 %v2616, %v1965
        %v2624 = vmul.f32 %v2616, %v1966
        %v2625 = vmul.f32 %v2616, %v1967
        %v2626 = vmul.f32 %v2616, %v1968
        %v2627 = vmul.f32 %v2616, %v1969
        %v2628 = vmul.f32 %v2616, %v1970
        %v2629 = vmul.f32 %v2616, %v1971
        %v2630 = vmul.f32 %v2616, %v1972
        %v2631 = vmul.f32 %v2616, %v1973
        %v2632 = vmul.f32 %v2616, %v1974
        %v2633 = vadd.f32 %v2534, %v2617
        %v2634 = vadd.f32 %v2535, %v2618
        %v2635 = vadd.f32 %v2536, %v2619
        %v2636 = vadd.f32 %v2537, %v2620
        %v2637 = vadd.f32 %v2538, %v2621
        %v2638 = vadd.f32 %v2539, %v2622
        %v2639 = vadd.f32 %v2540, %v2623
        %v2640 = vadd.f32 %v2541, %v2624
        %v2641 = vadd.f32 %v2542, %v2625
        %v2642 = vadd.f32 %v2543, %v2626
        %v2643 = vadd.f32 %v2544, %v2627
        %v2644 = vadd.f32 %v2545, %v2628
        %v2645 = vadd.f32 %v2546, %v2629
        %v2646 = vadd.f32 %v2547, %v2630
        %v2647 = vadd.f32 %v2548, %v2631
        %v2648 = vadd.f32 %v2549, %v2632
        %v2649 = vstv %s343
        %v2650 = vmul.f32 %v2649, %v1959
        %v2651 = vmul.f32 %v2649, %v1960
        %v2652 = vmul.f32 %v2649, %v1961
        %v2653 = vmul.f32 %v2649, %v1962
        %v2654 = vmul.f32 %v2649, %v1963
        %v2655 = vmul.f32 %v2649, %v1964
        %v2656 = vmul.f32 %v2649, %v1965
        %v2657 = vmul.f32 %v2649, %v1966
        %v2658 = vmul.f32 %v2649, %v1967
        %v2659 = vmul.f32 %v2649, %v1968
        %v2660 = vmul.f32 %v2649, %v1969
        %v2661 = vmul.f32 %v2649, %v1970
        %v2662 = vmul.f32 %v2649, %v1971
        %v2663 = vmul.f32 %v2649, %v1972
        %v2664 = vmul.f32 %v2649, %v1973
        %v2665 = vmul.f32 %v2649, %v1974
        %v2666 = vadd.f32 %v2567, %v2650
        %v2667 = vadd.f32 %v2568, %v2651
        %v2668 = vadd.f32 %v2569, %v2652
        %v2669 = vadd.f32 %v2570, %v2653
        %v2670 = vadd.f32 %v2571, %v2654
        %v2671 = vadd.f32 %v2572, %v2655
        %v2672 = vadd.f32 %v2573, %v2656
        %v2673 = vadd.f32 %v2574, %v2657
        %v2674 = vadd.f32 %v2575, %v2658
        %v2675 = vadd.f32 %v2576, %v2659
        %v2676 = vadd.f32 %v2577, %v2660
        %v2677 = vadd.f32 %v2578, %v2661
        %v2678 = vadd.f32 %v2579, %v2662
        %v2679 = vadd.f32 %v2580, %v2663
        %v2680 = vadd.f32 %v2581, %v2664
        %v2681 = vadd.f32 %v2582, %v2665
        %v2682 = vstv %s352
        %v2683 = vmul.f32 %v2682, %v1959
        %v2684 = vmul.f32 %v2682, %v1960
        %v2685 = vmul.f32 %v2682, %v1961
        %v2686 = vmul.f32 %v2682, %v1962
        %v2687 = vmul.f32 %v2682, %v1963
        %v2688 = vmul.f32 %v2682, %v1964
        %v2689 = vmul.f32 %v2682, %v1965
        %v2690 = vmul.f32 %v2682, %v1966
        %v2691 = vmul.f32 %v2682, %v1967
        %v2692 = vmul.f32 %v2682, %v1968
        %v2693 = vmul.f32 %v2682, %v1969
        %v2694 = vmul.f32 %v2682, %v1970
        %v2695 = vmul.f32 %v2682, %v1971
        %v2696 = vmul.f32 %v2682, %v1972
        %v2697 = vmul.f32 %v2682, %v1973
        %v2698 = vmul.f32 %v2682, %v1974
        %v2699 = vadd.f32 %v2600, %v2683
        %v2700 = vadd.f32 %v2601, %v2684
        %v2701 = vadd.f32 %v2602, %v2685
        %v2702 = vadd.f32 %v2603, %v2686
        %v2703 = vadd.f32 %v2604, %v2687
        %v2704 = vadd.f32 %v2605, %v2688
        %v2705 = vadd.f32 %v2606, %v2689
        %v2706 = vadd.f32 %v2607, %v2690
        %v2707 = vadd.f32 %v2608, %v2691
        %v2708 = vadd.f32 %v2609, %v2692
        %v2709 = vadd.f32 %v2610, %v2693
        %v2710 = vadd.f32 %v2611, %v2694
        %v2711 = vadd.f32 %v2612, %v2695
        %v2712 = vadd.f32 %v2613, %v2696
        %v2713 = vadd.f32 %v2614, %v2697
        %v2714 = vadd.f32 %v2615, %v2698
        %v2715 = vrot.slane %v1959, 1
        %v2716 = vrot.slane %v1960, 1
        %v2717 = vrot.slane %v1961, 1
        %v2718 = vrot.slane %v1962, 1
        %v2719 = vrot.slane %v1963, 1
        %v2720 = vrot.slane %v1964, 1
        %v2721 = vrot.slane %v1965, 1
        %v2722 = vrot.slane %v1966, 1
        %v2723 = vrot.slane %v1967, 1
        %v2724 = vrot.slane %v1968, 1
        %v2725 = vrot.slane %v1969, 1
        %v2726 = vrot.slane %v1970, 1
        %v2727 = vrot.slane %v1971, 1
        %v2728 = vrot.slane %v1972, 1
        %v2729 = vrot.slane %v1973, 1
        %v2730 = vrot.slane %v1974, 1
        %v2731 = vsel %vm2321, %v2729, %v2730
        %v2732 = vsel %vm2321, %v2728, %v2729
        %v2733 = vsel %vm2321, %v2727, %v2728
        %v2734 = vsel %vm2321, %v2726, %v2727
        %v2735 = vsel %vm2321, %v2725, %v2726
        %v2736 = vsel %vm2321, %v2724, %v2725
        %v2737 = vsel %vm2321, %v2723, %v2724
        %v2738 = vsel %vm2321, %v2722, %v2723
        %v2739 = vsel %vm2321, %v2721, %v2722
        %v2740 = vsel %vm2321, %v2720, %v2721
        %v2741 = vsel %vm2321, %v2719, %v2720
        %v2742 = vsel %vm2321, %v2718, %v2719
        %v2743 = vsel %vm2321, %v2717, %v2718
        %v2744 = vsel %vm2321, %v2716, %v2717
        %v2745 = vsel %vm2321, %v2715, %v2716
        %v2746 = vsel %vm2321, %v2730, %v2715
        %v2747 = vsel %vm2338, 0.0, %v2745
        %v2748 = vsel %vm2339, 0.0, %v2744
        %v2749 = vsel %vm2340, 0.0, %v2743
        %v2750 = vsel %vm2341, 0.0, %v2742
        %v2751 = vsel %vm2342, 0.0, %v2741
        %v2752 = vsel %vm2343, 0.0, %v2740
        %v2753 = vsel %vm2344, 0.0, %v2739
        %v2754 = vsel %vm2345, 0.0, %v2738
        %v2755 = vsel %vm2346, 0.0, %v2737
        %v2756 = vsel %vm2347, 0.0, %v2736
        %v2757 = vsel %vm2348, 0.0, %v2735
        %v2758 = vsel %vm2349, 0.0, %v2734
        %v2759 = vsel %vm2350, 0.0, %v2733
        %v2760 = vsel %vm2351, 0.0, %v2732
        %v2761 = vsel %vm2352, 0.0, %v2731
        %v2762 = vsel %vm2353, 0.0, %v2746
        %v2763 = vstv %s337
        %v2764 = vmul.f32 %v2763, %v2747
        %v2765 = vmul.f32 %v2763, %v2748
        %v2766 = vmul.f32 %v2763, %v2749
        %v2767 = vmul.f32 %v2763, %v2750
        %v2768 = vmul.f32 %v2763, %v2751
        %v2769 = vmul.f32 %v2763, %v2752
        %v2770 = vmul.f32 %v2763, %v2753
        %v2771 = vmul.f32 %v2763, %v2754
        %v2772 = vmul.f32 %v2763, %v2755
        %v2773 = vmul.f32 %v2763, %v2756
        %v2774 = vmul.f32 %v2763, %v2757
        %v2775 = vmul.f32 %v2763, %v2758
        %v2776 = vmul.f32 %v2763, %v2759
        %v2777 = vmul.f32 %v2763, %v2760
        %v2778 = vmul.f32 %v2763, %v2761
        %v2779 = vmul.f32 %v2763, %v2762
        %v2780 = vadd.f32 %v2633, %v2764
        %v2781 = vadd.f32 %v2634, %v2765
        %v2782 = vadd.f32 %v2635, %v2766
        %v2783 = vadd.f32 %v2636, %v2767
        %v2784 = vadd.f32 %v2637, %v2768
        %v2785 = vadd.f32 %v2638, %v2769
        %v2786 = vadd.f32 %v2639, %v2770
        %v2787 = vadd.f32 %v2640, %v2771
        %v2788 = vadd.f32 %v2641, %v2772
        %v2789 = vadd.f32 %v2642, %v2773
        %v2790 = vadd.f32 %v2643, %v2774
        %v2791 = vadd.f32 %v2644, %v2775
        %v2792 = vadd.f32 %v2645, %v2776
        %v2793 = vadd.f32 %v2646, %v2777
        %v2794 = vadd.f32 %v2647, %v2778
        %v2795 = vadd.f32 %v2648, %v2779
        %v2796 = vstv %s346
        %v2797 = vmul.f32 %v2796, %v2747
        %v2798 = vmul.f32 %v2796, %v2748
        %v2799 = vmul.f32 %v2796, %v2749
        %v2800 = vmul.f32 %v2796, %v2750
        %v2801 = vmul.f32 %v2796, %v2751
        %v2802 = vmul.f32 %v2796, %v2752
        %v2803 = vmul.f32 %v2796, %v2753
        %v2804 = vmul.f32 %v2796, %v2754
        %v2805 = vmul.f32 %v2796, %v2755
        %v2806 = vmul.f32 %v2796, %v2756
        %v2807 = vmul.f32 %v2796, %v2757
        %v2808 = vmul.f32 %v2796, %v2758
        %v2809 = vmul.f32 %v2796, %v2759
        %v2810 = vmul.f32 %v2796, %v2760
        %v2811 = vmul.f32 %v2796, %v2761
        %v2812 = vmul.f32 %v2796, %v2762
        %v2813 = vadd.f32 %v2666, %v2797
        %v2814 = vadd.f32 %v2667, %v2798
        %v2815 = vadd.f32 %v2668, %v2799
        %v2816 = vadd.f32 %v2669, %v2800
        %v2817 = vadd.f32 %v2670, %v2801
        %v2818 = vadd.f32 %v2671, %v2802
        %v2819 = vadd.f32 %v2672, %v2803
        %v2820 = vadd.f32 %v2673, %v2804
        %v2821 = vadd.f32 %v2674, %v2805
        %v2822 = vadd.f32 %v2675, %v2806
        %v2823 = vadd.f32 %v2676, %v2807
        %v2824 = vadd.f32 %v2677, %v2808
        %v2825 = vadd.f32 %v2678, %v2809
        %v2826 = vadd.f32 %v2679, %v2810
        %v2827 = vadd.f32 %v2680, %v2811
        %v2828 = vadd.f32 %v2681, %v2812
        %v2829 = vstv %s355
        %v2830 = vmul.f32 %v2829, %v2747
        %v2831 = vmul.f32 %v2829, %v2748
        %v2832 = vmul.f32 %v2829, %v2749
        %v2833 = vmul.f32 %v2829, %v2750
        %v2834 = vmul.f32 %v2829, %v2751
        %v2835 = vmul.f32 %v2829, %v2752
        %v2836 = vmul.f32 %v2829, %v2753
        %v2837 = vmul.f32 %v2829, %v2754
        %v2838 = vmul.f32 %v2829, %v2755
        %v2839 = vmul.f32 %v2829, %v2756
        %v2840 = vmul.f32 %v2829, %v2757
        %v2841 = vmul.f32 %v2829, %v2758
        %v2842 = vmul.f32 %v2829, %v2759
        %v2843 = vmul.f32 %v2829, %v2760
        %v2844 = vmul.f32 %v2829, %v2761
        %v2845 = vmul.f32 %v2829, %v2762
        %v2846 = vadd.f32 %v2699, %v2830
        %v2847 = vadd.f32 %v2700, %v2831
        %v2848 = vadd.f32 %v2701, %v2832
        %v2849 = vadd.f32 %v2702, %v2833
        %v2850 = vadd.f32 %v2703, %v2834
        %v2851 = vadd.f32 %v2704, %v2835
        %v2852 = vadd.f32 %v2705, %v2836
        %v2853 = vadd.f32 %v2706, %v2837
        %v2854 = vadd.f32 %v2707, %v2838
        %v2855 = vadd.f32 %v2708, %v2839
        %v2856 = vadd.f32 %v2709, %v2840
        %v2857 = vadd.f32 %v2710, %v2841
        %v2858 = vadd.f32 %v2711, %v2842
        %v2859 = vadd.f32 %v2712, %v2843
        %v2860 = vadd.f32 %v2713, %v2844
        %v2861 = vadd.f32 %v2714, %v2845
        %2862 = vrot.lane.b32.xlu0 %v1959, 127
        %v2863 = vpop.permute.xlu0 %2862
        %2864 = vrot.lane.b32.xlu0 %v1960, 127
        %v2865 = vpop.permute.xlu0 %2864
        %2866 = vrot.lane.b32.xlu0 %v1961, 127
        %v2867 = vpop.permute.xlu0 %2866
        %2868 = vrot.lane.b32.xlu0 %v1962, 127
        %v2869 = vpop.permute.xlu0 %2868
        %2870 = vrot.lane.b32.xlu0 %v1963, 127
        %v2871 = vpop.permute.xlu0 %2870
        %2872 = vrot.lane.b32.xlu0 %v1964, 127
        %v2873 = vpop.permute.xlu0 %2872
        %2874 = vrot.lane.b32.xlu0 %v1965, 127
        %v2875 = vpop.permute.xlu0 %2874
        %2876 = vrot.lane.b32.xlu0 %v1966, 127
        %v2877 = vpop.permute.xlu0 %2876
        %2878 = vrot.lane.b32.xlu0 %v1967, 127
        %v2879 = vpop.permute.xlu0 %2878
        %2880 = vrot.lane.b32.xlu0 %v1968, 127
        %v2881 = vpop.permute.xlu0 %2880
        %2882 = vrot.lane.b32.xlu0 %v1969, 127
        %v2883 = vpop.permute.xlu0 %2882
        %2884 = vrot.lane.b32.xlu0 %v1970, 127
        %v2885 = vpop.permute.xlu0 %2884
        %2886 = vrot.lane.b32.xlu0 %v1971, 127
        %v2887 = vpop.permute.xlu0 %2886
        %2888 = vrot.lane.b32.xlu0 %v1972, 127
        %v2889 = vpop.permute.xlu0 %2888
        %2890 = vrot.lane.b32.xlu0 %v1973, 127
        %v2891 = vpop.permute.xlu0 %2890
        %2892 = vrot.lane.b32.xlu0 %v1974, 127
        %v2893 = vpop.permute.xlu0 %2892
        %vm2894 = vcmp.ge.s32.totalorder %v1993, 127
        %v2895 = vsel %vm2894, 0.0, %v2863
        %v2896 = vsel %vm2894, 0.0, %v2865
        %v2897 = vsel %vm2894, 0.0, %v2867
        %v2898 = vsel %vm2894, 0.0, %v2869
        %v2899 = vsel %vm2894, 0.0, %v2871
        %v2900 = vsel %vm2894, 0.0, %v2873
        %v2901 = vsel %vm2894, 0.0, %v2875
        %v2902 = vsel %vm2894, 0.0, %v2877
        %v2903 = vsel %vm2894, 0.0, %v2879
        %v2904 = vsel %vm2894, 0.0, %v2881
        %v2905 = vsel %vm2894, 0.0, %v2883
        %v2906 = vsel %vm2894, 0.0, %v2885
        %v2907 = vsel %vm2894, 0.0, %v2887
        %v2908 = vsel %vm2894, 0.0, %v2889
        %v2909 = vsel %vm2894, 0.0, %v2891
        %v2910 = vsel %vm2894, 0.0, %v2893
        %v2911 = vrot.slane %v2895, 7
        %v2912 = vrot.slane %v2896, 7
        %v2913 = vrot.slane %v2897, 7
        %v2914 = vrot.slane %v2898, 7
        %v2915 = vrot.slane %v2899, 7
        %v2916 = vrot.slane %v2900, 7
        %v2917 = vrot.slane %v2901, 7
        %v2918 = vrot.slane %v2902, 7
        %v2919 = vrot.slane %v2903, 7
        %v2920 = vrot.slane %v2904, 7
        %v2921 = vrot.slane %v2905, 7
        %v2922 = vrot.slane %v2906, 7
        %v2923 = vrot.slane %v2907, 7
        %v2924 = vrot.slane %v2908, 7
        %v2925 = vrot.slane %v2909, 7
        %v2926 = vrot.slane %v2910, 7
        %v2927 = vsel %vm2059, %v2925, %v2926
        %v2928 = vsel %vm2059, %v2924, %v2925
        %v2929 = vsel %vm2059, %v2923, %v2924
        %v2930 = vsel %vm2059, %v2922, %v2923
        %v2931 = vsel %vm2059, %v2921, %v2922
        %v2932 = vsel %vm2059, %v2920, %v2921
        %v2933 = vsel %vm2059, %v2919, %v2920
        %v2934 = vsel %vm2059, %v2918, %v2919
        %v2935 = vsel %vm2059, %v2917, %v2918
        %v2936 = vsel %vm2059, %v2916, %v2917
        %v2937 = vsel %vm2059, %v2915, %v2916
        %v2938 = vsel %vm2059, %v2914, %v2915
        %v2939 = vsel %vm2059, %v2913, %v2914
        %v2940 = vsel %vm2059, %v2912, %v2913
        %v2941 = vsel %vm2059, %v2911, %v2912
        %v2942 = vsel %vm2059, %v2926, %v2911
        %v2943 = vsel %vm2059, 0.0, %v2942
        %v2944 = vsel %vm2076, 0.0, %v2941
        %v2945 = vsel %vm2077, 0.0, %v2940
        %v2946 = vsel %vm2078, 0.0, %v2939
        %v2947 = vsel %vm2079, 0.0, %v2938
        %v2948 = vsel %vm2080, 0.0, %v2937
        %v2949 = vsel %vm2081, 0.0, %v2936
        %v2950 = vsel %vm2082, 0.0, %v2935
        %v2951 = vsel %vm2083, 0.0, %v2934
        %v2952 = vsel %vm2084, 0.0, %v2933
        %v2953 = vsel %vm2085, 0.0, %v2932
        %v2954 = vsel %vm2086, 0.0, %v2931
        %v2955 = vsel %vm2087, 0.0, %v2930
        %v2956 = vsel %vm2088, 0.0, %v2929
        %v2957 = vsel %vm2089, 0.0, %v2928
        %v2958 = vsel %vm2090, 0.0, %v2927
        %v2959 = vstv %s332
        %v2960 = vmul.f32 %v2959, %v2943
        %v2961 = vmul.f32 %v2959, %v2944
        %v2962 = vmul.f32 %v2959, %v2945
        %v2963 = vmul.f32 %v2959, %v2946
        %v2964 = vmul.f32 %v2959, %v2947
        %v2965 = vmul.f32 %v2959, %v2948
        %v2966 = vmul.f32 %v2959, %v2949
        %v2967 = vmul.f32 %v2959, %v2950
        %v2968 = vmul.f32 %v2959, %v2951
        %v2969 = vmul.f32 %v2959, %v2952
        %v2970 = vmul.f32 %v2959, %v2953
        %v2971 = vmul.f32 %v2959, %v2954
        %v2972 = vmul.f32 %v2959, %v2955
        %v2973 = vmul.f32 %v2959, %v2956
        %v2974 = vmul.f32 %v2959, %v2957
        %v2975 = vmul.f32 %v2959, %v2958
        %v2976 = vadd.f32 %v2780, %v2960
        %v2977 = vadd.f32 %v2781, %v2961
        %v2978 = vadd.f32 %v2782, %v2962
        %v2979 = vadd.f32 %v2783, %v2963
        %v2980 = vadd.f32 %v2784, %v2964
        %v2981 = vadd.f32 %v2785, %v2965
        %v2982 = vadd.f32 %v2786, %v2966
        %v2983 = vadd.f32 %v2787, %v2967
        %v2984 = vadd.f32 %v2788, %v2968
        %v2985 = vadd.f32 %v2789, %v2969
        %v2986 = vadd.f32 %v2790, %v2970
        %v2987 = vadd.f32 %v2791, %v2971
        %v2988 = vadd.f32 %v2792, %v2972
        %v2989 = vadd.f32 %v2793, %v2973
        %v2990 = vadd.f32 %v2794, %v2974
        %v2991 = vadd.f32 %v2795, %v2975
        %v2992 = vstv %s341
        %v2993 = vmul.f32 %v2992, %v2943
        %v2994 = vmul.f32 %v2992, %v2944
        %v2995 = vmul.f32 %v2992, %v2945
        %v2996 = vmul.f32 %v2992, %v2946
        %v2997 = vmul.f32 %v2992, %v2947
        %v2998 = vmul.f32 %v2992, %v2948
        %v2999 = vmul.f32 %v2992, %v2949
        %v3000 = vmul.f32 %v2992, %v2950
        %v3001 = vmul.f32 %v2992, %v2951
        %v3002 = vmul.f32 %v2992, %v2952
        %v3003 = vmul.f32 %v2992, %v2953
        %v3004 = vmul.f32 %v2992, %v2954
        %v3005 = vmul.f32 %v2992, %v2955
        %v3006 = vmul.f32 %v2992, %v2956
        %v3007 = vmul.f32 %v2992, %v2957
        %v3008 = vmul.f32 %v2992, %v2958
        %v3009 = vadd.f32 %v2813, %v2993
        %v3010 = vadd.f32 %v2814, %v2994
        %v3011 = vadd.f32 %v2815, %v2995
        %v3012 = vadd.f32 %v2816, %v2996
        %v3013 = vadd.f32 %v2817, %v2997
        %v3014 = vadd.f32 %v2818, %v2998
        %v3015 = vadd.f32 %v2819, %v2999
        %v3016 = vadd.f32 %v2820, %v3000
        %v3017 = vadd.f32 %v2821, %v3001
        %v3018 = vadd.f32 %v2822, %v3002
        %v3019 = vadd.f32 %v2823, %v3003
        %v3020 = vadd.f32 %v2824, %v3004
        %v3021 = vadd.f32 %v2825, %v3005
        %v3022 = vadd.f32 %v2826, %v3006
        %v3023 = vadd.f32 %v2827, %v3007
        %v3024 = vadd.f32 %v2828, %v3008
        %v3025 = vstv %s350
        %v3026 = vmul.f32 %v3025, %v2943
        %v3027 = vmul.f32 %v3025, %v2944
        %v3028 = vmul.f32 %v3025, %v2945
        %v3029 = vmul.f32 %v3025, %v2946
        %v3030 = vmul.f32 %v3025, %v2947
        %v3031 = vmul.f32 %v3025, %v2948
        %v3032 = vmul.f32 %v3025, %v2949
        %v3033 = vmul.f32 %v3025, %v2950
        %v3034 = vmul.f32 %v3025, %v2951
        %v3035 = vmul.f32 %v3025, %v2952
        %v3036 = vmul.f32 %v3025, %v2953
        %v3037 = vmul.f32 %v3025, %v2954
        %v3038 = vmul.f32 %v3025, %v2955
        %v3039 = vmul.f32 %v3025, %v2956
        %v3040 = vmul.f32 %v3025, %v2957
        %v3041 = vmul.f32 %v3025, %v2958
        %v3042 = vadd.f32 %v2846, %v3026
        %v3043 = vadd.f32 %v2847, %v3027
        %v3044 = vadd.f32 %v2848, %v3028
        %v3045 = vadd.f32 %v2849, %v3029
        %v3046 = vadd.f32 %v2850, %v3030
        %v3047 = vadd.f32 %v2851, %v3031
        %v3048 = vadd.f32 %v2852, %v3032
        %v3049 = vadd.f32 %v2853, %v3033
        %v3050 = vadd.f32 %v2854, %v3034
        %v3051 = vadd.f32 %v2855, %v3035
        %v3052 = vadd.f32 %v2856, %v3036
        %v3053 = vadd.f32 %v2857, %v3037
        %v3054 = vadd.f32 %v2858, %v3038
        %v3055 = vadd.f32 %v2859, %v3039
        %v3056 = vadd.f32 %v2860, %v3040
        %v3057 = vadd.f32 %v2861, %v3041
        %v3058 = vstv %s335
        %v3059 = vmul.f32 %v3058, %v2895
        %v3060 = vmul.f32 %v3058, %v2896
        %v3061 = vmul.f32 %v3058, %v2897
        %v3062 = vmul.f32 %v3058, %v2898
        %v3063 = vmul.f32 %v3058, %v2899
        %v3064 = vmul.f32 %v3058, %v2900
        %v3065 = vmul.f32 %v3058, %v2901
        %v3066 = vmul.f32 %v3058, %v2902
        %v3067 = vmul.f32 %v3058, %v2903
        %v3068 = vmul.f32 %v3058, %v2904
        %v3069 = vmul.f32 %v3058, %v2905
        %v3070 = vmul.f32 %v3058, %v2906
        %v3071 = vmul.f32 %v3058, %v2907
        %v3072 = vmul.f32 %v3058, %v2908
        %v3073 = vmul.f32 %v3058, %v2909
        %v3074 = vmul.f32 %v3058, %v2910
        %v3075 = vadd.f32 %v2976, %v3059
        %v3076 = vadd.f32 %v2977, %v3060
        %v3077 = vadd.f32 %v2978, %v3061
        %v3078 = vadd.f32 %v2979, %v3062
        %v3079 = vadd.f32 %v2980, %v3063
        %v3080 = vadd.f32 %v2981, %v3064
        %v3081 = vadd.f32 %v2982, %v3065
        %v3082 = vadd.f32 %v2983, %v3066
        %v3083 = vadd.f32 %v2984, %v3067
        %v3084 = vadd.f32 %v2985, %v3068
        %v3085 = vadd.f32 %v2986, %v3069
        %v3086 = vadd.f32 %v2987, %v3070
        %v3087 = vadd.f32 %v2988, %v3071
        %v3088 = vadd.f32 %v2989, %v3072
        %v3089 = vadd.f32 %v2990, %v3073
        %v3090 = vadd.f32 %v2991, %v3074
        %v3091 = vstv %s344
        %v3092 = vmul.f32 %v3091, %v2895
        %v3093 = vmul.f32 %v3091, %v2896
        %v3094 = vmul.f32 %v3091, %v2897
        %v3095 = vmul.f32 %v3091, %v2898
        %v3096 = vmul.f32 %v3091, %v2899
        %v3097 = vmul.f32 %v3091, %v2900
        %v3098 = vmul.f32 %v3091, %v2901
        %v3099 = vmul.f32 %v3091, %v2902
        %v3100 = vmul.f32 %v3091, %v2903
        %v3101 = vmul.f32 %v3091, %v2904
        %v3102 = vmul.f32 %v3091, %v2905
        %v3103 = vmul.f32 %v3091, %v2906
        %v3104 = vmul.f32 %v3091, %v2907
        %v3105 = vmul.f32 %v3091, %v2908
        %v3106 = vmul.f32 %v3091, %v2909
        %v3107 = vmul.f32 %v3091, %v2910
        %v3108 = vadd.f32 %v3009, %v3092
        %v3109 = vadd.f32 %v3010, %v3093
        %v3110 = vadd.f32 %v3011, %v3094
        %v3111 = vadd.f32 %v3012, %v3095
        %v3112 = vadd.f32 %v3013, %v3096
        %v3113 = vadd.f32 %v3014, %v3097
        %v3114 = vadd.f32 %v3015, %v3098
        %v3115 = vadd.f32 %v3016, %v3099
        %v3116 = vadd.f32 %v3017, %v3100
        %v3117 = vadd.f32 %v3018, %v3101
        %v3118 = vadd.f32 %v3019, %v3102
        %v3119 = vadd.f32 %v3020, %v3103
        %v3120 = vadd.f32 %v3021, %v3104
        %v3121 = vadd.f32 %v3022, %v3105
        %v3122 = vadd.f32 %v3023, %v3106
        %v3123 = vadd.f32 %v3024, %v3107
        %v3124 = vstv %s353
        %v3125 = vmul.f32 %v3124, %v2895
        %v3126 = vmul.f32 %v3124, %v2896
        %v3127 = vmul.f32 %v3124, %v2897
        %v3128 = vmul.f32 %v3124, %v2898
        %v3129 = vmul.f32 %v3124, %v2899
        %v3130 = vmul.f32 %v3124, %v2900
        %v3131 = vmul.f32 %v3124, %v2901
        %v3132 = vmul.f32 %v3124, %v2902
        %v3133 = vmul.f32 %v3124, %v2903
        %v3134 = vmul.f32 %v3124, %v2904
        %v3135 = vmul.f32 %v3124, %v2905
        %v3136 = vmul.f32 %v3124, %v2906
        %v3137 = vmul.f32 %v3124, %v2907
        %v3138 = vmul.f32 %v3124, %v2908
        %v3139 = vmul.f32 %v3124, %v2909
        %v3140 = vmul.f32 %v3124, %v2910
        %v3141 = vadd.f32 %v3042, %v3125
        %v3142 = vadd.f32 %v3043, %v3126
        %v3143 = vadd.f32 %v3044, %v3127
        %v3144 = vadd.f32 %v3045, %v3128
        %v3145 = vadd.f32 %v3046, %v3129
        %v3146 = vadd.f32 %v3047, %v3130
        %v3147 = vadd.f32 %v3048, %v3131
        %v3148 = vadd.f32 %v3049, %v3132
        %v3149 = vadd.f32 %v3050, %v3133
        %v3150 = vadd.f32 %v3051, %v3134
        %v3151 = vadd.f32 %v3052, %v3135
        %v3152 = vadd.f32 %v3053, %v3136
        %v3153 = vadd.f32 %v3054, %v3137
        %v3154 = vadd.f32 %v3055, %v3138
        %v3155 = vadd.f32 %v3056, %v3139
        %v3156 = vadd.f32 %v3057, %v3140
        %v3157 = vrot.slane %v2895, 1
        %v3158 = vrot.slane %v2896, 1
        %v3159 = vrot.slane %v2897, 1
        %v3160 = vrot.slane %v2898, 1
        %v3161 = vrot.slane %v2899, 1
        %v3162 = vrot.slane %v2900, 1
        %v3163 = vrot.slane %v2901, 1
        %v3164 = vrot.slane %v2902, 1
        %v3165 = vrot.slane %v2903, 1
        %v3166 = vrot.slane %v2904, 1
        %v3167 = vrot.slane %v2905, 1
        %v3168 = vrot.slane %v2906, 1
        %v3169 = vrot.slane %v2907, 1
        %v3170 = vrot.slane %v2908, 1
        %v3171 = vrot.slane %v2909, 1
        %v3172 = vrot.slane %v2910, 1
        %v3173 = vsel %vm2321, %v3171, %v3172
        %v3174 = vsel %vm2321, %v3170, %v3171
        %v3175 = vsel %vm2321, %v3169, %v3170
        %v3176 = vsel %vm2321, %v3168, %v3169
        %v3177 = vsel %vm2321, %v3167, %v3168
        %v3178 = vsel %vm2321, %v3166, %v3167
        %v3179 = vsel %vm2321, %v3165, %v3166
        %v3180 = vsel %vm2321, %v3164, %v3165
        %v3181 = vsel %vm2321, %v3163, %v3164
        %v3182 = vsel %vm2321, %v3162, %v3163
        %v3183 = vsel %vm2321, %v3161, %v3162
        %v3184 = vsel %vm2321, %v3160, %v3161
        %v3185 = vsel %vm2321, %v3159, %v3160
        %v3186 = vsel %vm2321, %v3158, %v3159
        %v3187 = vsel %vm2321, %v3157, %v3158
        %v3188 = vsel %vm2321, %v3172, %v3157
        %v3189 = vsel %vm2338, 0.0, %v3187
        %v3190 = vsel %vm2339, 0.0, %v3186
        %v3191 = vsel %vm2340, 0.0, %v3185
        %v3192 = vsel %vm2341, 0.0, %v3184
        %v3193 = vsel %vm2342, 0.0, %v3183
        %v3194 = vsel %vm2343, 0.0, %v3182
        %v3195 = vsel %vm2344, 0.0, %v3181
        %v3196 = vsel %vm2345, 0.0, %v3180
        %v3197 = vsel %vm2346, 0.0, %v3179
        %v3198 = vsel %vm2347, 0.0, %v3178
        %v3199 = vsel %vm2348, 0.0, %v3177
        %v3200 = vsel %vm2349, 0.0, %v3176
        %v3201 = vsel %vm2350, 0.0, %v3175
        %v3202 = vsel %vm2351, 0.0, %v3174
        %v3203 = vsel %vm2352, 0.0, %v3173
        %v3204 = vsel %vm2353, 0.0, %v3188
        %v3205 = vstv %s338
        %v3206 = vmul.f32 %v3205, %v3189
        %v3207 = vmul.f32 %v3205, %v3190
        %v3208 = vmul.f32 %v3205, %v3191
        %v3209 = vmul.f32 %v3205, %v3192
        %v3210 = vmul.f32 %v3205, %v3193
        %v3211 = vmul.f32 %v3205, %v3194
        %v3212 = vmul.f32 %v3205, %v3195
        %v3213 = vmul.f32 %v3205, %v3196
        %v3214 = vmul.f32 %v3205, %v3197
        %v3215 = vmul.f32 %v3205, %v3198
        %v3216 = vmul.f32 %v3205, %v3199
        %v3217 = vmul.f32 %v3205, %v3200
        %v3218 = vmul.f32 %v3205, %v3201
        %v3219 = vmul.f32 %v3205, %v3202
        %v3220 = vmul.f32 %v3205, %v3203
        %v3221 = vmul.f32 %v3205, %v3204
        %v3222 = vadd.f32 %v3075, %v3206
        %v3223 = vadd.f32 %v3076, %v3207
        %v3224 = vadd.f32 %v3077, %v3208
        %v3225 = vadd.f32 %v3078, %v3209
        %v3226 = vadd.f32 %v3079, %v3210
        %v3227 = vadd.f32 %v3080, %v3211
        %v3228 = vadd.f32 %v3081, %v3212
        %v3229 = vadd.f32 %v3082, %v3213
        %v3230 = vadd.f32 %v3083, %v3214
        %v3231 = vadd.f32 %v3084, %v3215
        %v3232 = vadd.f32 %v3085, %v3216
        %v3233 = vadd.f32 %v3086, %v3217
        %v3234 = vadd.f32 %v3087, %v3218
        %v3235 = vadd.f32 %v3088, %v3219
        %v3236 = vadd.f32 %v3089, %v3220
        %v3237 = vadd.f32 %v3090, %v3221
        %v3238 = vstv %s347
        %v3239 = vmul.f32 %v3238, %v3189
        %v3240 = vmul.f32 %v3238, %v3190
        %v3241 = vmul.f32 %v3238, %v3191
        %v3242 = vmul.f32 %v3238, %v3192
        %v3243 = vmul.f32 %v3238, %v3193
        %v3244 = vmul.f32 %v3238, %v3194
        %v3245 = vmul.f32 %v3238, %v3195
        %v3246 = vmul.f32 %v3238, %v3196
        %v3247 = vmul.f32 %v3238, %v3197
        %v3248 = vmul.f32 %v3238, %v3198
        %v3249 = vmul.f32 %v3238, %v3199
        %v3250 = vmul.f32 %v3238, %v3200
        %v3251 = vmul.f32 %v3238, %v3201
        %v3252 = vmul.f32 %v3238, %v3202
        %v3253 = vmul.f32 %v3238, %v3203
        %v3254 = vmul.f32 %v3238, %v3204
        %v3255 = vadd.f32 %v3108, %v3239
        %v3256 = vadd.f32 %v3109, %v3240
        %v3257 = vadd.f32 %v3110, %v3241
        %v3258 = vadd.f32 %v3111, %v3242
        %v3259 = vadd.f32 %v3112, %v3243
        %v3260 = vadd.f32 %v3113, %v3244
        %v3261 = vadd.f32 %v3114, %v3245
        %v3262 = vadd.f32 %v3115, %v3246
        %v3263 = vadd.f32 %v3116, %v3247
        %v3264 = vadd.f32 %v3117, %v3248
        %v3265 = vadd.f32 %v3118, %v3249
        %v3266 = vadd.f32 %v3119, %v3250
        %v3267 = vadd.f32 %v3120, %v3251
        %v3268 = vadd.f32 %v3121, %v3252
        %v3269 = vadd.f32 %v3122, %v3253
        %v3270 = vadd.f32 %v3123, %v3254
        %v3271 = vstv %s356
        %v3272 = vmul.f32 %v3271, %v3189
        %v3273 = vmul.f32 %v3271, %v3190
        %v3274 = vmul.f32 %v3271, %v3191
        %v3275 = vmul.f32 %v3271, %v3192
        %v3276 = vmul.f32 %v3271, %v3193
        %v3277 = vmul.f32 %v3271, %v3194
        %v3278 = vmul.f32 %v3271, %v3195
        %v3279 = vmul.f32 %v3271, %v3196
        %v3280 = vmul.f32 %v3271, %v3197
        %v3281 = vmul.f32 %v3271, %v3198
        %v3282 = vmul.f32 %v3271, %v3199
        %v3283 = vmul.f32 %v3271, %v3200
        %v3284 = vmul.f32 %v3271, %v3201
        %v3285 = vmul.f32 %v3271, %v3202
        %v3286 = vmul.f32 %v3271, %v3203
        %v3287 = vmul.f32 %v3271, %v3204
        %v3288 = vadd.f32 %v3141, %v3272
        %v3289 = vadd.f32 %v3142, %v3273
        %v3290 = vadd.f32 %v3143, %v3274
        %v3291 = vadd.f32 %v3144, %v3275
        %v3292 = vadd.f32 %v3145, %v3276
        %v3293 = vadd.f32 %v3146, %v3277
        %v3294 = vadd.f32 %v3147, %v3278
        %v3295 = vadd.f32 %v3148, %v3279
        %v3296 = vadd.f32 %v3149, %v3280
        %v3297 = vadd.f32 %v3150, %v3281
        %v3298 = vadd.f32 %v3151, %v3282
        %v3299 = vadd.f32 %v3152, %v3283
        %v3300 = vadd.f32 %v3153, %v3284
        %v3301 = vadd.f32 %v3154, %v3285
        %v3302 = vadd.f32 %v3155, %v3286
        %v3303 = vadd.f32 %v3156, %v3287
        %v3304 = vstv %s357
        %v3305 = vadd.f32 %v3222, %v3304
        %v3306 = vadd.f32 %v3223, %v3304
        %v3307 = vadd.f32 %v3224, %v3304
        %v3308 = vadd.f32 %v3225, %v3304
        %v3309 = vadd.f32 %v3226, %v3304
        %v3310 = vadd.f32 %v3227, %v3304
        %v3311 = vadd.f32 %v3228, %v3304
        %v3312 = vadd.f32 %v3229, %v3304
        %v3313 = vadd.f32 %v3230, %v3304
        %v3314 = vadd.f32 %v3231, %v3304
        %v3315 = vadd.f32 %v3232, %v3304
        %v3316 = vadd.f32 %v3233, %v3304
        %v3317 = vadd.f32 %v3234, %v3304
        %v3318 = vadd.f32 %v3235, %v3304
        %v3319 = vadd.f32 %v3236, %v3304
        %v3320 = vadd.f32 %v3237, %v3304
        %v3321 = vmax.f32 %v3305, 0.0
        %v3322 = vmax.f32 %v3306, 0.0
        %v3323 = vmax.f32 %v3307, 0.0
        %v3324 = vmax.f32 %v3308, 0.0
        %v3325 = vmax.f32 %v3309, 0.0
        %v3326 = vmax.f32 %v3310, 0.0
        %v3327 = vmax.f32 %v3311, 0.0
        %v3328 = vmax.f32 %v3312, 0.0
        %v3329 = vmax.f32 %v3313, 0.0
        %v3330 = vmax.f32 %v3314, 0.0
        %v3331 = vmax.f32 %v3315, 0.0
        %v3332 = vmax.f32 %v3316, 0.0
        %v3333 = vmax.f32 %v3317, 0.0
        %v3334 = vmax.f32 %v3318, 0.0
        %v3335 = vmax.f32 %v3319, 0.0
        %v3336 = vmax.f32 %v3320, 0.0
        %3337 = vst [vmem:[%s265] sm:$0xff] %v3321
        %3338 = vst [vmem:[%s265 + $0x8] sm:$0xff] %v3322
        %3339 = vst [vmem:[%s265 + $0x10] sm:$0xff] %v3323
        %3340 = vst [vmem:[%s265 + $0x18] sm:$0xff] %v3324
        %3341 = vst [vmem:[%s265 + $0x20] sm:$0xff] %v3325
        %3342 = vst [vmem:[%s265 + $0x28] sm:$0xff] %v3326
        %3343 = vst [vmem:[%s265 + $0x30] sm:$0xff] %v3327
        %3344 = vst [vmem:[%s265 + $0x38] sm:$0xff] %v3328
        %3345 = vst [vmem:[%s265 + $0x40] sm:$0xff] %v3329
        %3346 = vst [vmem:[%s265 + $0x48] sm:$0xff] %v3330
        %3347 = vst [vmem:[%s265 + $0x50] sm:$0xff] %v3331
        %3348 = vst [vmem:[%s265 + $0x58] sm:$0xff] %v3332
        %3349 = vst [vmem:[%s265 + $0x60] sm:$0xff] %v3333
        %3350 = vst [vmem:[%s265 + $0x68] sm:$0xff] %v3334
        %3351 = vst [vmem:[%s265 + $0x70] sm:$0xff] %v3335
        %3352 = vst [vmem:[%s265 + $0x78] sm:$0xff] %v3336
        %v3353 = vstv %s358
        %v3354 = vadd.f32 %v3255, %v3353
        %v3355 = vadd.f32 %v3256, %v3353
        %v3356 = vadd.f32 %v3257, %v3353
        %v3357 = vadd.f32 %v3258, %v3353
        %v3358 = vadd.f32 %v3259, %v3353
        %v3359 = vadd.f32 %v3260, %v3353
        %v3360 = vadd.f32 %v3261, %v3353
        %v3361 = vadd.f32 %v3262, %v3353
        %v3362 = vadd.f32 %v3263, %v3353
        %v3363 = vadd.f32 %v3264, %v3353
        %v3364 = vadd.f32 %v3265, %v3353
        %v3365 = vadd.f32 %v3266, %v3353
        %v3366 = vadd.f32 %v3267, %v3353
        %v3367 = vadd.f32 %v3268, %v3353
        %v3368 = vadd.f32 %v3269, %v3353
        %v3369 = vadd.f32 %v3270, %v3353
        %v3370 = vmax.f32 %v3354, 0.0
        %v3371 = vmax.f32 %v3355, 0.0
        %v3372 = vmax.f32 %v3356, 0.0
        %v3373 = vmax.f32 %v3357, 0.0
        %v3374 = vmax.f32 %v3358, 0.0
        %v3375 = vmax.f32 %v3359, 0.0
        %v3376 = vmax.f32 %v3360, 0.0
        %v3377 = vmax.f32 %v3361, 0.0
        %v3378 = vmax.f32 %v3362, 0.0
        %v3379 = vmax.f32 %v3363, 0.0
        %v3380 = vmax.f32 %v3364, 0.0
        %v3381 = vmax.f32 %v3365, 0.0
        %v3382 = vmax.f32 %v3366, 0.0
        %v3383 = vmax.f32 %v3367, 0.0
        %v3384 = vmax.f32 %v3368, 0.0
        %v3385 = vmax.f32 %v3369, 0.0
        %s3386 = scalar_lea.vmem %s265, 128 [#allocation12]
        %3387 = vst [vmem:[%s3386] sm:$0xff] %v3370
        %3388 = vst [vmem:[%s3386 + $0x8] sm:$0xff] %v3371
        %3389 = vst [vmem:[%s3386 + $0x10] sm:$0xff] %v3372
        %3390 = vst [vmem:[%s3386 + $0x18] sm:$0xff] %v3373
        %3391 = vst [vmem:[%s3386 + $0x20] sm:$0xff] %v3374
        %3392 = vst [vmem:[%s3386 + $0x28] sm:$0xff] %v3375
        %3393 = vst [vmem:[%s3386 + $0x30] sm:$0xff] %v3376
        %3394 = vst [vmem:[%s3386 + $0x38] sm:$0xff] %v3377
        %3395 = vst [vmem:[%s3386 + $0x40] sm:$0xff] %v3378
        %3396 = vst [vmem:[%s3386 + $0x48] sm:$0xff] %v3379
        %3397 = vst [vmem:[%s3386 + $0x50] sm:$0xff] %v3380
        %3398 = vst [vmem:[%s3386 + $0x58] sm:$0xff] %v3381
        %3399 = vst [vmem:[%s3386 + $0x60] sm:$0xff] %v3382
        %3400 = vst [vmem:[%s3386 + $0x68] sm:$0xff] %v3383
        %3401 = vst [vmem:[%s3386 + $0x70] sm:$0xff] %v3384
        %3402 = vst [vmem:[%s3386 + $0x78] sm:$0xff] %v3385
        %v3403 = vstv %s359
        %v3404 = vadd.f32 %v3288, %v3403
        %v3405 = vadd.f32 %v3289, %v3403
        %v3406 = vadd.f32 %v3290, %v3403
        %v3407 = vadd.f32 %v3291, %v3403
        %v3408 = vadd.f32 %v3292, %v3403
        %v3409 = vadd.f32 %v3293, %v3403
        %v3410 = vadd.f32 %v3294, %v3403
        %v3411 = vadd.f32 %v3295, %v3403
        %v3412 = vadd.f32 %v3296, %v3403
        %v3413 = vadd.f32 %v3297, %v3403
        %v3414 = vadd.f32 %v3298, %v3403
        %v3415 = vadd.f32 %v3299, %v3403
        %v3416 = vadd.f32 %v3300, %v3403
        %v3417 = vadd.f32 %v3301, %v3403
        %v3418 = vadd.f32 %v3302, %v3403
        %v3419 = vadd.f32 %v3303, %v3403
        %v3420 = vmax.f32 %v3404, 0.0
        %v3421 = vmax.f32 %v3405, 0.0
        %v3422 = vmax.f32 %v3406, 0.0
        %v3423 = vmax.f32 %v3407, 0.0
        %v3424 = vmax.f32 %v3408, 0.0
        %v3425 = vmax.f32 %v3409, 0.0
        %v3426 = vmax.f32 %v3410, 0.0
        %v3427 = vmax.f32 %v3411, 0.0
        %v3428 = vmax.f32 %v3412, 0.0
        %v3429 = vmax.f32 %v3413, 0.0
        %v3430 = vmax.f32 %v3414, 0.0
        %v3431 = vmax.f32 %v3415, 0.0
        %v3432 = vmax.f32 %v3416, 0.0
        %v3433 = vmax.f32 %v3417, 0.0
        %v3434 = vmax.f32 %v3418, 0.0
        %v3435 = vmax.f32 %v3419, 0.0
        %s3436 = scalar_lea.vmem %s265, 256 [#allocation12]
        %3437 = vst [vmem:[%s3436] sm:$0xff] %v3420
        %3438 = vst [vmem:[%s3436 + $0x8] sm:$0xff] %v3421
        %3439 = vst [vmem:[%s3436 + $0x10] sm:$0xff] %v3422
        %3440 = vst [vmem:[%s3436 + $0x18] sm:$0xff] %v3423
        %3441 = vst [vmem:[%s3436 + $0x20] sm:$0xff] %v3424
        %3442 = vst [vmem:[%s3436 + $0x28] sm:$0xff] %v3425
        %3443 = vst [vmem:[%s3436 + $0x30] sm:$0xff] %v3426
        %3444 = vst [vmem:[%s3436 + $0x38] sm:$0xff] %v3427
        %3445 = vst [vmem:[%s3436 + $0x40] sm:$0xff] %v3428
        %3446 = vst [vmem:[%s3436 + $0x48] sm:$0xff] %v3429
        %3447 = vst [vmem:[%s3436 + $0x50] sm:$0xff] %v3430
        %3448 = vst [vmem:[%s3436 + $0x58] sm:$0xff] %v3431
        %3449 = vst [vmem:[%s3436 + $0x60] sm:$0xff] %v3432
        %3450 = vst [vmem:[%s3436 + $0x68] sm:$0xff] %v3433
        %3451 = vst [vmem:[%s3436 + $0x70] sm:$0xff] %v3434
        %3452 = vst [vmem:[%s3436 + $0x78] sm:$0xff] %v3435
        %s3453 = sand.u32 %s136, 1
        %s3454 = scalar_lea.sflag [#allocation4], %s3453
        %s3455 = sand.u32 %s136, 1
        %s3456 = smul.addr %s3455, 384
        %s3457 = scalar_lea.vmem [#allocation12], %s3456
        // Predicated region
        $region61: #{tpu_custom_call.1} parent=39 // pred_check
          %p3458 = pneg %p146
        $region62: #{tpu_custom_call.1} parent=39 // pred_check_branch
          %3460 = sbr.rel (%p3458) target = $region64
        $region63: #{tpu_custom_call.1} parent=39 // pred_region
          %s3462 = ssub.s32 6144, 6144
          %3463 = vsyncadd %s3454, %s3462
          %s3464 = smul.addr %s23, 48
          %s3465 = smul.addr %s3464, 128
          %s3466 = scalar_lea.hbm %s5, %s3465
          %s3467 = sshll.u32 %s3457, 4
          %s3468 = int_to_ptr.vmem [resolvable:$true] %s3467
          %3473 = dma.vmem_to_hbm [thread:$0]  %s3468, 6144, %s3466, %s3454, 128, 128, 8
        $region64: #{tpu_custom_call.1} parent=39 // pred_fallthru
          _
      $region40: #{tpu_custom_call.1} parent=5 // pred_fallthru
        _
      %p3474 = scmp.le.s32.totalorder 2, %s18
      // Predicated region
      $region65: #{tpu_custom_call.1} parent=5 // pred_check
        %p3475 = pneg %p3474
      $region66: #{tpu_custom_call.1} parent=5 // pred_check_branch
        %3477 = sbr.rel (%p3475) target = $region68
      $region67: #{tpu_custom_call.1} parent=5 // pred_region
        %s3478 = ssub.s32 %s18, 2
        // Predicated region
        $region69: #{tpu_custom_call.1} parent=67 // pred_check
          %p3479 = pneg %p152
        $region70: #{tpu_custom_call.1} parent=67 // pred_check_branch
          %3481 = sbr.rel (%p3479) target = $region72
        $region71: #{tpu_custom_call.1} parent=67 // pred_region
          %s3482 = sand.u32 %s137, 1
          %s3483 = scalar_lea.sflag [#allocation4], %s3482
          %s3484 = sand.u32 %s137, 1
          %s3485 = smul.addr %s3484, 384
          %s3486 = scalar_lea.vmem [#allocation12], %s3485
          %3487 = dma.done %s3483, 6144
        $region72: #{tpu_custom_call.1} parent=67 // pred_fallthru
          _
      $region68: #{tpu_custom_call.1} parent=5 // pred_fallthru
        _
    $region6: #{tpu_custom_call.1} parent=1 // loop_footer
      %s22 = sadd.s32 1, %s18
    $region7: #{tpu_custom_call.1} parent=1 // loop_footer_branch
      %17 = sbr.rel target = $region3
    $region8: #{tpu_custom_call.1} parent=1 // loop_exit
      _
    %3488 = vsyncpa [#allocation3], 1
    %s3489 = scalar_lea.sflag [#allocation3], 1
    %3490 = vsyncpa %s3489, 1
    %3491 = vsyncpa [#allocation11], 1
    %3492 = vsyncpa [#allocation4], 1
    %s3493 = scalar_lea.sflag [#allocation4], 1
    %3494 = vsyncpa %s3493, 1
    %3495 = vsyncpa [#allocation5], 1
    %s3496 = scalar_lea.sflag [#allocation5], 1
    %3497 = vsyncpa %s3496, 1
    %3498 = vsyncpa [#allocation7], 1

</llo_original>
